<compile_context>
chip_gen: v7x
topology: tpu7x:2x2x1
jax: 0.10.0
libtpu: 0.0.40
codegen_flags: <defaults>
</compile_context>

<pallas_src>
import functools

import jax
import jax.numpy as jnp
from jax.experimental import pallas as pl
from jax.experimental.pallas import tpu as pltpu


def _down_block_kernel(c_in, mid, ho, wo,
                       pee_ref, peo_ref, poe_ref, poo_ref,
                       w1_ref, b1_ref, w2_ref, b2_ref, w3_ref, b3_ref,
                       w4_ref, b4_ref, w5_ref, b5_ref,
                       out_ref):
    """One batch element of DownBlock.

    Phase refs: (1, c_in, ho+1, wo+1) stride-2 phases of the zero-padded input.
    Weight/bias refs: BN-folded conv parameters in SMEM.
    out_ref: (1, 2*mid, ho, wo) shuffled output.
    """
    f32 = jnp.float32
    pee = pee_ref[0].astype(f32)     # (c_in, ho+1, wo+1)
    peo = peo_ref[0].astype(f32)
    poe = poe_ref[0].astype(f32)
    poo = poo_ref[0].astype(f32)

    def taps(ee, eo, oe, oo):
        # 9 taps of a 3x3 / stride-2 conv in (kh, kw) raster order; each is a
        # static contiguous (ho, wo) slice of one phase plane.
        def s(p, di, dj):
            return p[di:di + ho, dj:dj + wo]
        return (s(ee, 0, 0), s(eo, 0, 0), s(ee, 0, 1),
                s(oe, 0, 0), s(oo, 0, 0), s(oe, 0, 1),
                s(ee, 1, 0), s(eo, 1, 0), s(ee, 1, 1))

    # ------------------------- branch 1 -------------------------
    # depthwise conv1 (3x3, stride 2) + folded bn1   (no relu, as in PyTorch)
    t1 = []
    for c in range(c_in):
        tap = taps(pee[c], peo[c], poe[c], poo[c])
        acc = jnp.full((ho, wo), b1_ref[c], dtype=f32)
        for k in range(9):
            acc = acc + w1_ref[c, k] * tap[k]
        t1.append(acc)

    # conv2 (1x1) + folded bn2 + relu
    out1 = []
    for m in range(mid):
        acc = jnp.full((ho, wo), b2_ref[m], dtype=f32)
        for c in range(c_in):
            acc = acc + w2_ref[m, c] * t1[c]
        out1.append(jnp.maximum(acc, 0.0))

    # ------------------------- branch 2 -------------------------
    # conv3 (1x1) + folded bn3 + relu applied per phase (a 1x1 conv commutes
    # with the space-to-depth decomposition).  Positions corresponding to
    # conv4's zero padding are masked back to zero (with a folded BN bias,
    # relu(bn3(conv3(0))) is generally nonzero).
    ri = jax.lax.broadcasted_iota(jnp.int32, (ho + 1, wo + 1), 0)
    ci = jax.lax.broadcasted_iota(jnp.int32, (ho + 1, wo + 1), 1)
    m_ee = ((ri > 0) & (ci > 0)).astype(f32)
    m_eo = ((ri > 0) & (ci < wo)).astype(f32)
    m_oe = ((ri < ho) & (ci > 0)).astype(f32)
    m_oo = ((ri < ho) & (ci < wo)).astype(f32)

    def conv3_on_phase(phase, mask):
        outs = []
        for m in range(mid):
            acc = jnp.full((ho + 1, wo + 1), b3_ref[m], dtype=f32)
            for c in range(c_in):
                acc = acc + w3_ref[m, c] * phase[c]
            outs.append(jnp.maximum(acc, 0.0) * mask)
        return outs

    t3_ee = conv3_on_phase(pee, m_ee)
    t3_eo = conv3_on_phase(peo, m_eo)
    t3_oe = conv3_on_phase(poe, m_oe)
    t3_oo = conv3_on_phase(poo, m_oo)

    # depthwise conv4 (3x3, stride 2) + folded bn4   (no relu)
    t4 = []
    for m in range(mid):
        tap = taps(t3_ee[m], t3_eo[m], t3_oe[m], t3_oo[m])
        acc = jnp.full((ho, wo), b4_ref[m], dtype=f32)
        for k in range(9):
            acc = acc + w4_ref[m, k] * tap[k]
        t4.append(acc)

    # conv5 (1x1) + folded bn5 + relu
    out2 = []
    for m in range(mid):
        acc = jnp.full((ho, wo), b5_ref[m], dtype=f32)
        for m2 in range(mid):
            acc = acc + w5_ref[m, m2] * t4[m2]
        out2.append(jnp.maximum(acc, 0.0))

    # ------------- concat + channel shuffle (groups = 2) -------------
    # shuffle(concat([out1, out2])): output channel 2k <- out1[k],
    #                                output channel 2k+1 <- out2[k].
    chans = []
    for m in range(mid):
        chans.append(out1[m])
        chans.append(out2[m])
    out_ref[0] = jnp.stack(chans, axis=0).astype(out_ref.dtype)


def down_block(x, params, *, eps=1e-5):
    """DownBlock forward (eval-mode BN) via a single fused Pallas kernel.

    x: (N, C_in, H, W)  ->  (N, 2*mid, H//2, W//2), mid = out_channels // 2.
    """
    n, c_in, h, w = x.shape
    assert h % 2 == 0 and w % 2 == 0, "spatial dims must be even"
    ho, wo = h // 2, w // 2
    mid = params["w2"].shape[0]
    c_out = 2 * mid

    # Fold eval-mode BatchNorm into the (bias-free) conv weights.
    def fold(conv_w2d, g, b, m, v):
        s = g / jnp.sqrt(v + eps)
        return conv_w2d * s[:, None], b - s * m

    w1s, b1s = fold(params["w1"].reshape(c_in, 9),
                    params["g1"], params["b1"], params["m1"], params["v1"])
    w2s, b2s = fold(params["w2"].reshape(mid, c_in),
                    params["g2"], params["b2"], params["m2"], params["v2"])
    w3s, b3s = fold(params["w3"].reshape(mid, c_in),
                    params["g3"], params["b3"], params["m3"], params["v3"])
    w4s, b4s = fold(params["w4"].reshape(mid, 9),
                    params["g4"], params["b4"], params["m4"], params["v4"])
    w5s, b5s = fold(params["w5"].reshape(mid, mid),
                    params["g5"], params["b5"], params["m5"], params["v5"])

    # Space-to-depth phase decomposition of the zero-padded input (layout
    # plumbing only): phase[p,q][i,j] = x_padded[2i+p, 2j+q].
    xp = jnp.pad(x, ((0, 0), (0, 0), (1, 1), (1, 1)))
    p_ee = xp[:, :, 0::2, 0::2]
    p_eo = xp[:, :, 0::2, 1::2]
    p_oe = xp[:, :, 1::2, 0::2]
    p_oo = xp[:, :, 1::2, 1::2]          # each (n, c_in, ho+1, wo+1)

    phase_spec = pl.BlockSpec((1, c_in, ho + 1, wo + 1), lambda i: (i, 0, 0, 0))
    smem_spec = pl.BlockSpec(memory_space=pltpu.MemorySpace.SMEM)

    kernel = functools.partial(_down_block_kernel, c_in, mid, ho, wo)

    return pl.pallas_call(
        kernel,
        out_shape=jax.ShapeDtypeStruct((n, c_out, ho, wo), x.dtype),
        grid=(n,),
        in_specs=[phase_spec] * 4 + [smem_spec] * 10,
        out_specs=pl.BlockSpec((1, c_out, ho, wo), lambda i: (i, 0, 0, 0)),
        compiler_params=pltpu.CompilerParams(
            dimension_semantics=("parallel",),
            vmem_limit_bytes=32 * 1024 * 1024,
        ),
    )(p_ee, p_eo, p_oe, p_oo,
      w1s, b1s, w2s, b2s, w3s, b3s, w4s, b4s, w5s, b5s)


def _reference_down_block(x, p, *, eps=1e-5):
    """Pure-JAX (XLA) reference matching the PyTorch module in eval mode."""
    dn = ("NCHW", "OIHW", "NCHW")
    c_in = x.shape[1]
    mid = p["w2"].shape[0]
    conv = jax.lax.conv_general_dilated

    def bn(y, g, b, m, v):
        inv = 1.0 / jnp.sqrt(v + eps)
        return (y - m[None, :, None, None]) * (g * inv)[None, :, None, None] \
            + b[None, :, None, None]

    out1 = conv(x, p["w1"], (2, 2), ((1, 1), (1, 1)), dimension_numbers=dn,
                feature_group_count=c_in)
    out1 = bn(out1, p["g1"], p["b1"], p["m1"], p["v1"])
    out1 = conv(out1, p["w2"], (1, 1), ((0, 0), (0, 0)), dimension_numbers=dn)
    out1 = jax.nn.relu(bn(out1, p["g2"], p["b2"], p["m2"], p["v2"]))

    out2 = conv(x, p["w3"], (1, 1), ((0, 0), (0, 0)), dimension_numbers=dn)
    out2 = jax.nn.relu(bn(out2, p["g3"], p["b3"], p["m3"], p["v3"]))
    out2 = conv(out2, p["w4"], (2, 2), ((1, 1), (1, 1)), dimension_numbers=dn,
                feature_group_count=mid)
    out2 = bn(out2, p["g4"], p["b4"], p["m4"], p["v4"])
    out2 = conv(out2, p["w5"], (1, 1), ((0, 0), (0, 0)), dimension_numbers=dn)
    out2 = jax.nn.relu(bn(out2, p["g5"], p["b5"], p["m5"], p["v5"]))

    out = jnp.concatenate([out1, out2], axis=1)
    nb, c, hh, ww = out.shape
    return out.reshape(nb, 2, c // 2, hh, ww).transpose(0, 2, 1, 3, 4).reshape(
        nb, c, hh, ww)


if __name__ == "__main__":
    key = jax.random.PRNGKey(0)
    n, c_in, h, w = 2, 4, 16, 16
    out_channels = 8
    mid = out_channels // 2

    ks = jax.random.split(key, 32)
    x = jax.random.normal(ks[0], (n, c_in, h, w), dtype=jnp.float32)

    params = {
        "w1": 0.3 * jax.random.normal(ks[1], (c_in, 1, 3, 3), jnp.float32),
        "w2": 0.3 * jax.random.normal(ks[2], (mid, c_in, 1, 1), jnp.float32),
        "w3": 0.3 * jax.random.normal(ks[3], (mid, c_in, 1, 1), jnp.float32),
        "w4": 0.3 * jax.random.normal(ks[4], (mid, 1, 3, 3), jnp.float32),
        "w5": 0.3 * jax.random.normal(ks[5], (mid, mid, 1, 1), jnp.float32),
    }
    # Non-trivial eval-mode BN parameters (running statistics).
    for i, ch in zip(range(1, 6), (c_in, mid, mid, mid, mid)):
        k0 = 6 + 4 * (i - 1)
        params[f"g{i}"] = 1.0 + 0.1 * jax.random.normal(ks[k0 + 0], (ch,), jnp.float32)
        params[f"b{i}"] = 0.1 * jax.random.normal(ks[k0 + 1], (ch,), jnp.float32)
        params[f"m{i}"] = 0.1 * jax.random.normal(ks[k0 + 2], (ch,), jnp.float32)
        params[f"v{i}"] = jax.random.uniform(ks[k0 + 3], (ch,), jnp.float32, 0.5, 1.5)

    y = jax.block_until_ready(down_block(x, params))
    y_ref = _reference_down_block(x, params)

    assert y.shape == (n, out_channels, h // 2, w // 2), y.shape
    max_err = float(jnp.max(jnp.abs(y - y_ref)))
    assert max_err < 1e-3, f"mismatch vs reference: {max_err}"
    print("KERNEL_OK")
</pallas_src>

<mosaic_0001>
module attributes {stable_mosaic.version = 11 : i64} {
  func.func @_down_block_kernel(%arg0: i32, %arg1: memref<1x4x9x9xf32, #tpu.memory_space<vmem>>, %arg2: memref<1x4x9x9xf32, #tpu.memory_space<vmem>>, %arg3: memref<1x4x9x9xf32, #tpu.memory_space<vmem>>, %arg4: memref<1x4x9x9xf32, #tpu.memory_space<vmem>>, %arg5: memref<4x9xf32, #tpu.memory_space<smem>>, %arg6: memref<4xf32, #tpu.memory_space<smem>>, %arg7: memref<4x4xf32, #tpu.memory_space<smem>>, %arg8: memref<4xf32, #tpu.memory_space<smem>>, %arg9: memref<4x4xf32, #tpu.memory_space<smem>>, %arg10: memref<4xf32, #tpu.memory_space<smem>>, %arg11: memref<4x9xf32, #tpu.memory_space<smem>>, %arg12: memref<4xf32, #tpu.memory_space<smem>>, %arg13: memref<4x4xf32, #tpu.memory_space<smem>>, %arg14: memref<4xf32, #tpu.memory_space<smem>>, %arg15: memref<1x8x8x8xf32, #tpu.memory_space<vmem>>) attributes {dimension_semantics = [#tpu.dimension_semantics<parallel>], iteration_bounds = array<i64: 2>, scalar_prefetch = 0 : i64, scratch_operands = 0 : i64, tpu.core_type = #tpu.core_type<tc>, window_params = [{transform_indices = @transform_0, window_bounds = array<i64: 1, 4, 9, 9>}, {transform_indices = @transform_1, window_bounds = array<i64: 1, 4, 9, 9>}, {transform_indices = @transform_2, window_bounds = array<i64: 1, 4, 9, 9>}, {transform_indices = @transform_3, window_bounds = array<i64: 1, 4, 9, 9>}, {transform_indices = @transform_4, window_bounds = array<i64: 4, 9>}, {transform_indices = @transform_5, window_bounds = array<i64: 4>}, {transform_indices = @transform_6, window_bounds = array<i64: 4, 4>}, {transform_indices = @transform_7, window_bounds = array<i64: 4>}, {transform_indices = @transform_8, window_bounds = array<i64: 4, 4>}, {transform_indices = @transform_9, window_bounds = array<i64: 4>}, {transform_indices = @transform_10, window_bounds = array<i64: 4, 9>}, {transform_indices = @transform_11, window_bounds = array<i64: 4>}, {transform_indices = @transform_12, window_bounds = array<i64: 4, 4>}, {transform_indices = @transform_13, window_bounds = array<i64: 4>}, {transform_indices = @transform_14, window_bounds = array<i64: 1, 8, 8, 8>}]} {
    %c0 = arith.constant 0 : index
    %c0_0 = arith.constant 0 : index
    %c0_1 = arith.constant 0 : index
    %c0_2 = arith.constant 0 : index
    %0 = vector.load %arg1[%c0, %c0_0, %c0_1, %c0_2] : memref<1x4x9x9xf32, #tpu.memory_space<vmem>>, vector<1x4x9x9xf32>
    %1 = vector.shape_cast %0 : vector<1x4x9x9xf32> to vector<4x9x9xf32>
    %c0_3 = arith.constant 0 : index
    %c0_4 = arith.constant 0 : index
    %c0_5 = arith.constant 0 : index
    %c0_6 = arith.constant 0 : index
    %2 = vector.load %arg2[%c0_3, %c0_4, %c0_5, %c0_6] : memref<1x4x9x9xf32, #tpu.memory_space<vmem>>, vector<1x4x9x9xf32>
    %3 = vector.shape_cast %2 : vector<1x4x9x9xf32> to vector<4x9x9xf32>
    %c0_7 = arith.constant 0 : index
    %c0_8 = arith.constant 0 : index
    %c0_9 = arith.constant 0 : index
    %c0_10 = arith.constant 0 : index
    %4 = vector.load %arg3[%c0_7, %c0_8, %c0_9, %c0_10] : memref<1x4x9x9xf32, #tpu.memory_space<vmem>>, vector<1x4x9x9xf32>
    %5 = vector.shape_cast %4 : vector<1x4x9x9xf32> to vector<4x9x9xf32>
    %c0_11 = arith.constant 0 : index
    %c0_12 = arith.constant 0 : index
    %c0_13 = arith.constant 0 : index
    %c0_14 = arith.constant 0 : index
    %6 = vector.load %arg4[%c0_11, %c0_12, %c0_13, %c0_14] : memref<1x4x9x9xf32, #tpu.memory_space<vmem>>, vector<1x4x9x9xf32>
    %7 = vector.shape_cast %6 : vector<1x4x9x9xf32> to vector<4x9x9xf32>
    %8 = vector.extract_strided_slice %1 {offsets = [0, 0, 0], sizes = [1, 9, 9], strides = [1, 1, 1]} : vector<4x9x9xf32> to vector<1x9x9xf32>
    %9 = vector.shape_cast %8 : vector<1x9x9xf32> to vector<9x9xf32>
    %10 = vector.extract_strided_slice %3 {offsets = [0, 0, 0], sizes = [1, 9, 9], strides = [1, 1, 1]} : vector<4x9x9xf32> to vector<1x9x9xf32>
    %11 = vector.shape_cast %10 : vector<1x9x9xf32> to vector<9x9xf32>
    %12 = vector.extract_strided_slice %5 {offsets = [0, 0, 0], sizes = [1, 9, 9], strides = [1, 1, 1]} : vector<4x9x9xf32> to vector<1x9x9xf32>
    %13 = vector.shape_cast %12 : vector<1x9x9xf32> to vector<9x9xf32>
    %14 = vector.extract_strided_slice %7 {offsets = [0, 0, 0], sizes = [1, 9, 9], strides = [1, 1, 1]} : vector<4x9x9xf32> to vector<1x9x9xf32>
    %15 = vector.shape_cast %14 : vector<1x9x9xf32> to vector<9x9xf32>
    %16 = vector.extract_strided_slice %9 {offsets = [0, 0], sizes = [8, 8], strides = [1, 1]} : vector<9x9xf32> to vector<8x8xf32>
    %17 = vector.extract_strided_slice %11 {offsets = [0, 0], sizes = [8, 8], strides = [1, 1]} : vector<9x9xf32> to vector<8x8xf32>
    %18 = vector.extract_strided_slice %9 {offsets = [0, 1], sizes = [8, 8], strides = [1, 1]} : vector<9x9xf32> to vector<8x8xf32>
    %19 = vector.extract_strided_slice %13 {offsets = [0, 0], sizes = [8, 8], strides = [1, 1]} : vector<9x9xf32> to vector<8x8xf32>
    %20 = vector.extract_strided_slice %15 {offsets = [0, 0], sizes = [8, 8], strides = [1, 1]} : vector<9x9xf32> to vector<8x8xf32>
    %21 = vector.extract_strided_slice %13 {offsets = [0, 1], sizes = [8, 8], strides = [1, 1]} : vector<9x9xf32> to vector<8x8xf32>
    %22 = vector.extract_strided_slice %9 {offsets = [1, 0], sizes = [8, 8], strides = [1, 1]} : vector<9x9xf32> to vector<8x8xf32>
    %23 = vector.extract_strided_slice %11 {offsets = [1, 0], sizes = [8, 8], strides = [1, 1]} : vector<9x9xf32> to vector<8x8xf32>
    %24 = vector.extract_strided_slice %9 {offsets = [1, 1], sizes = [8, 8], strides = [1, 1]} : vector<9x9xf32> to vector<8x8xf32>
    %c0_15 = arith.constant 0 : index
    %25 = memref.load %arg6[%c0_15] : memref<4xf32, #tpu.memory_space<smem>>
    %26 = vector.broadcast %25 : f32 to vector<8x8xf32>
    %c0_16 = arith.constant 0 : index
    %c0_17 = arith.constant 0 : index
    %27 = memref.load %arg5[%c0_16, %c0_17] : memref<4x9xf32, #tpu.memory_space<smem>>
    %28 = vector.broadcast %27 : f32 to vector<8x8xf32>
    %29 = arith.mulf %28, %16 : vector<8x8xf32>
    %30 = arith.addf %26, %29 : vector<8x8xf32>
    %c0_18 = arith.constant 0 : index
    %c1 = arith.constant 1 : index
    %31 = memref.load %arg5[%c0_18, %c1] : memref<4x9xf32, #tpu.memory_space<smem>>
    %32 = vector.broadcast %31 : f32 to vector<8x8xf32>
    %33 = arith.mulf %32, %17 : vector<8x8xf32>
    %34 = arith.addf %30, %33 : vector<8x8xf32>
    %c0_19 = arith.constant 0 : index
    %c2 = arith.constant 2 : index
    %35 = memref.load %arg5[%c0_19, %c2] : memref<4x9xf32, #tpu.memory_space<smem>>
    %36 = vector.broadcast %35 : f32 to vector<8x8xf32>
    %37 = arith.mulf %36, %18 : vector<8x8xf32>
    %38 = arith.addf %34, %37 : vector<8x8xf32>
    %c0_20 = arith.constant 0 : index
    %c3 = arith.constant 3 : index
    %39 = memref.load %arg5[%c0_20, %c3] : memref<4x9xf32, #tpu.memory_space<smem>>
    %40 = vector.broadcast %39 : f32 to vector<8x8xf32>
    %41 = arith.mulf %40, %19 : vector<8x8xf32>
    %42 = arith.addf %38, %41 : vector<8x8xf32>
    %c0_21 = arith.constant 0 : index
    %c4 = arith.constant 4 : index
    %43 = memref.load %arg5[%c0_21, %c4] : memref<4x9xf32, #tpu.memory_space<smem>>
    %44 = vector.broadcast %43 : f32 to vector<8x8xf32>
    %45 = arith.mulf %44, %20 : vector<8x8xf32>
    %46 = arith.addf %42, %45 : vector<8x8xf32>
    %c0_22 = arith.constant 0 : index
    %c5 = arith.constant 5 : index
    %47 = memref.load %arg5[%c0_22, %c5] : memref<4x9xf32, #tpu.memory_space<smem>>
    %48 = vector.broadcast %47 : f32 to vector<8x8xf32>
    %49 = arith.mulf %48, %21 : vector<8x8xf32>
    %50 = arith.addf %46, %49 : vector<8x8xf32>
    %c0_23 = arith.constant 0 : index
    %c6 = arith.constant 6 : index
    %51 = memref.load %arg5[%c0_23, %c6] : memref<4x9xf32, #tpu.memory_space<smem>>
    %52 = vector.broadcast %51 : f32 to vector<8x8xf32>
    %53 = arith.mulf %52, %22 : vector<8x8xf32>
    %54 = arith.addf %50, %53 : vector<8x8xf32>
    %c0_24 = arith.constant 0 : index
    %c7 = arith.constant 7 : index
    %55 = memref.load %arg5[%c0_24, %c7] : memref<4x9xf32, #tpu.memory_space<smem>>
    %56 = vector.broadcast %55 : f32 to vector<8x8xf32>
    %57 = arith.mulf %56, %23 : vector<8x8xf32>
    %58 = arith.addf %54, %57 : vector<8x8xf32>
    %c0_25 = arith.constant 0 : index
    %c8 = arith.constant 8 : index
    %59 = memref.load %arg5[%c0_25, %c8] : memref<4x9xf32, #tpu.memory_space<smem>>
    %60 = vector.broadcast %59 : f32 to vector<8x8xf32>
    %61 = arith.mulf %60, %24 : vector<8x8xf32>
    %62 = arith.addf %58, %61 : vector<8x8xf32>
    %63 = vector.extract_strided_slice %1 {offsets = [1, 0, 0], sizes = [1, 9, 9], strides = [1, 1, 1]} : vector<4x9x9xf32> to vector<1x9x9xf32>
    %64 = vector.shape_cast %63 : vector<1x9x9xf32> to vector<9x9xf32>
    %65 = vector.extract_strided_slice %3 {offsets = [1, 0, 0], sizes = [1, 9, 9], strides = [1, 1, 1]} : vector<4x9x9xf32> to vector<1x9x9xf32>
    %66 = vector.shape_cast %65 : vector<1x9x9xf32> to vector<9x9xf32>
    %67 = vector.extract_strided_slice %5 {offsets = [1, 0, 0], sizes = [1, 9, 9], strides = [1, 1, 1]} : vector<4x9x9xf32> to vector<1x9x9xf32>
    %68 = vector.shape_cast %67 : vector<1x9x9xf32> to vector<9x9xf32>
    %69 = vector.extract_strided_slice %7 {offsets = [1, 0, 0], sizes = [1, 9, 9], strides = [1, 1, 1]} : vector<4x9x9xf32> to vector<1x9x9xf32>
    %70 = vector.shape_cast %69 : vector<1x9x9xf32> to vector<9x9xf32>
    %71 = vector.extract_strided_slice %64 {offsets = [0, 0], sizes = [8, 8], strides = [1, 1]} : vector<9x9xf32> to vector<8x8xf32>
    %72 = vector.extract_strided_slice %66 {offsets = [0, 0], sizes = [8, 8], strides = [1, 1]} : vector<9x9xf32> to vector<8x8xf32>
    %73 = vector.extract_strided_slice %64 {offsets = [0, 1], sizes = [8, 8], strides = [1, 1]} : vector<9x9xf32> to vector<8x8xf32>
    %74 = vector.extract_strided_slice %68 {offsets = [0, 0], sizes = [8, 8], strides = [1, 1]} : vector<9x9xf32> to vector<8x8xf32>
    %75 = vector.extract_strided_slice %70 {offsets = [0, 0], sizes = [8, 8], strides = [1, 1]} : vector<9x9xf32> to vector<8x8xf32>
    %76 = vector.extract_strided_slice %68 {offsets = [0, 1], sizes = [8, 8], strides = [1, 1]} : vector<9x9xf32> to vector<8x8xf32>
    %77 = vector.extract_strided_slice %64 {offsets = [1, 0], sizes = [8, 8], strides = [1, 1]} : vector<9x9xf32> to vector<8x8xf32>
    %78 = vector.extract_strided_slice %66 {offsets = [1, 0], sizes = [8, 8], strides = [1, 1]} : vector<9x9xf32> to vector<8x8xf32>
    %79 = vector.extract_strided_slice %64 {offsets = [1, 1], sizes = [8, 8], strides = [1, 1]} : vector<9x9xf32> to vector<8x8xf32>
    %c1_26 = arith.constant 1 : index
    %80 = memref.load %arg6[%c1_26] : memref<4xf32, #tpu.memory_space<smem>>
    %81 = vector.broadcast %80 : f32 to vector<8x8xf32>
    %c1_27 = arith.constant 1 : index
    %c0_28 = arith.constant 0 : index
    %82 = memref.load %arg5[%c1_27, %c0_28] : memref<4x9xf32, #tpu.memory_space<smem>>
    %83 = vector.broadcast %82 : f32 to vector<8x8xf32>
    %84 = arith.mulf %83, %71 : vector<8x8xf32>
    %85 = arith.addf %81, %84 : vector<8x8xf32>
    %c1_29 = arith.constant 1 : index
    %c1_30 = arith.constant 1 : index
    %86 = memref.load %arg5[%c1_29, %c1_30] : memref<4x9xf32, #tpu.memory_space<smem>>
    %87 = vector.broadcast %86 : f32 to vector<8x8xf32>
    %88 = arith.mulf %87, %72 : vector<8x8xf32>
    %89 = arith.addf %85, %88 : vector<8x8xf32>
    %c1_31 = arith.constant 1 : index
    %c2_32 = arith.constant 2 : index
    %90 = memref.load %arg5[%c1_31, %c2_32] : memref<4x9xf32, #tpu.memory_space<smem>>
    %91 = vector.broadcast %90 : f32 to vector<8x8xf32>
    %92 = arith.mulf %91, %73 : vector<8x8xf32>
    %93 = arith.addf %89, %92 : vector<8x8xf32>
    %c1_33 = arith.constant 1 : index
    %c3_34 = arith.constant 3 : index
    %94 = memref.load %arg5[%c1_33, %c3_34] : memref<4x9xf32, #tpu.memory_space<smem>>
    %95 = vector.broadcast %94 : f32 to vector<8x8xf32>
    %96 = arith.mulf %95, %74 : vector<8x8xf32>
    %97 = arith.addf %93, %96 : vector<8x8xf32>
    %c1_35 = arith.constant 1 : index
    %c4_36 = arith.constant 4 : index
    %98 = memref.load %arg5[%c1_35, %c4_36] : memref<4x9xf32, #tpu.memory_space<smem>>
    %99 = vector.broadcast %98 : f32 to vector<8x8xf32>
    %100 = arith.mulf %99, %75 : vector<8x8xf32>
    %101 = arith.addf %97, %100 : vector<8x8xf32>
    %c1_37 = arith.constant 1 : index
    %c5_38 = arith.constant 5 : index
    %102 = memref.load %arg5[%c1_37, %c5_38] : memref<4x9xf32, #tpu.memory_space<smem>>
    %103 = vector.broadcast %102 : f32 to vector<8x8xf32>
    %104 = arith.mulf %103, %76 : vector<8x8xf32>
    %105 = arith.addf %101, %104 : vector<8x8xf32>
    %c1_39 = arith.constant 1 : index
    %c6_40 = arith.constant 6 : index
    %106 = memref.load %arg5[%c1_39, %c6_40] : memref<4x9xf32, #tpu.memory_space<smem>>
    %107 = vector.broadcast %106 : f32 to vector<8x8xf32>
    %108 = arith.mulf %107, %77 : vector<8x8xf32>
    %109 = arith.addf %105, %108 : vector<8x8xf32>
    %c1_41 = arith.constant 1 : index
    %c7_42 = arith.constant 7 : index
    %110 = memref.load %arg5[%c1_41, %c7_42] : memref<4x9xf32, #tpu.memory_space<smem>>
    %111 = vector.broadcast %110 : f32 to vector<8x8xf32>
    %112 = arith.mulf %111, %78 : vector<8x8xf32>
    %113 = arith.addf %109, %112 : vector<8x8xf32>
    %c1_43 = arith.constant 1 : index
    %c8_44 = arith.constant 8 : index
    %114 = memref.load %arg5[%c1_43, %c8_44] : memref<4x9xf32, #tpu.memory_space<smem>>
    %115 = vector.broadcast %114 : f32 to vector<8x8xf32>
    %116 = arith.mulf %115, %79 : vector<8x8xf32>
    %117 = arith.addf %113, %116 : vector<8x8xf32>
    %118 = vector.extract_strided_slice %1 {offsets = [2, 0, 0], sizes = [1, 9, 9], strides = [1, 1, 1]} : vector<4x9x9xf32> to vector<1x9x9xf32>
    %119 = vector.shape_cast %118 : vector<1x9x9xf32> to vector<9x9xf32>
    %120 = vector.extract_strided_slice %3 {offsets = [2, 0, 0], sizes = [1, 9, 9], strides = [1, 1, 1]} : vector<4x9x9xf32> to vector<1x9x9xf32>
    %121 = vector.shape_cast %120 : vector<1x9x9xf32> to vector<9x9xf32>
    %122 = vector.extract_strided_slice %5 {offsets = [2, 0, 0], sizes = [1, 9, 9], strides = [1, 1, 1]} : vector<4x9x9xf32> to vector<1x9x9xf32>
    %123 = vector.shape_cast %122 : vector<1x9x9xf32> to vector<9x9xf32>
    %124 = vector.extract_strided_slice %7 {offsets = [2, 0, 0], sizes = [1, 9, 9], strides = [1, 1, 1]} : vector<4x9x9xf32> to vector<1x9x9xf32>
    %125 = vector.shape_cast %124 : vector<1x9x9xf32> to vector<9x9xf32>
    %126 = vector.extract_strided_slice %119 {offsets = [0, 0], sizes = [8, 8], strides = [1, 1]} : vector<9x9xf32> to vector<8x8xf32>
    %127 = vector.extract_strided_slice %121 {offsets = [0, 0], sizes = [8, 8], strides = [1, 1]} : vector<9x9xf32> to vector<8x8xf32>
    %128 = vector.extract_strided_slice %119 {offsets = [0, 1], sizes = [8, 8], strides = [1, 1]} : vector<9x9xf32> to vector<8x8xf32>
    %129 = vector.extract_strided_slice %123 {offsets = [0, 0], sizes = [8, 8], strides = [1, 1]} : vector<9x9xf32> to vector<8x8xf32>
    %130 = vector.extract_strided_slice %125 {offsets = [0, 0], sizes = [8, 8], strides = [1, 1]} : vector<9x9xf32> to vector<8x8xf32>
    %131 = vector.extract_strided_slice %123 {offsets = [0, 1], sizes = [8, 8], strides = [1, 1]} : vector<9x9xf32> to vector<8x8xf32>
    %132 = vector.extract_strided_slice %119 {offsets = [1, 0], sizes = [8, 8], strides = [1, 1]} : vector<9x9xf32> to vector<8x8xf32>
    %133 = vector.extract_strided_slice %121 {offsets = [1, 0], sizes = [8, 8], strides = [1, 1]} : vector<9x9xf32> to vector<8x8xf32>
    %134 = vector.extract_strided_slice %119 {offsets = [1, 1], sizes = [8, 8], strides = [1, 1]} : vector<9x9xf32> to vector<8x8xf32>
    %c2_45 = arith.constant 2 : index
    %135 = memref.load %arg6[%c2_45] : memref<4xf32, #tpu.memory_space<smem>>
    %136 = vector.broadcast %135 : f32 to vector<8x8xf32>
    %c2_46 = arith.constant 2 : index
    %c0_47 = arith.constant 0 : index
    %137 = memref.load %arg5[%c2_46, %c0_47] : memref<4x9xf32, #tpu.memory_space<smem>>
    %138 = vector.broadcast %137 : f32 to vector<8x8xf32>
    %139 = arith.mulf %138, %126 : vector<8x8xf32>
    %140 = arith.addf %136, %139 : vector<8x8xf32>
    %c2_48 = arith.constant 2 : index
    %c1_49 = arith.constant 1 : index
    %141 = memref.load %arg5[%c2_48, %c1_49] : memref<4x9xf32, #tpu.memory_space<smem>>
    %142 = vector.broadcast %141 : f32 to vector<8x8xf32>
    %143 = arith.mulf %142, %127 : vector<8x8xf32>
    %144 = arith.addf %140, %143 : vector<8x8xf32>
    %c2_50 = arith.constant 2 : index
    %c2_51 = arith.constant 2 : index
    %145 = memref.load %arg5[%c2_50, %c2_51] : memref<4x9xf32, #tpu.memory_space<smem>>
    %146 = vector.broadcast %145 : f32 to vector<8x8xf32>
    %147 = arith.mulf %146, %128 : vector<8x8xf32>
    %148 = arith.addf %144, %147 : vector<8x8xf32>
    %c2_52 = arith.constant 2 : index
    %c3_53 = arith.constant 3 : index
    %149 = memref.load %arg5[%c2_52, %c3_53] : memref<4x9xf32, #tpu.memory_space<smem>>
    %150 = vector.broadcast %149 : f32 to vector<8x8xf32>
    %151 = arith.mulf %150, %129 : vector<8x8xf32>
    %152 = arith.addf %148, %151 : vector<8x8xf32>
    %c2_54 = arith.constant 2 : index
    %c4_55 = arith.constant 4 : index
    %153 = memref.load %arg5[%c2_54, %c4_55] : memref<4x9xf32, #tpu.memory_space<smem>>
    %154 = vector.broadcast %153 : f32 to vector<8x8xf32>
    %155 = arith.mulf %154, %130 : vector<8x8xf32>
    %156 = arith.addf %152, %155 : vector<8x8xf32>
    %c2_56 = arith.constant 2 : index
    %c5_57 = arith.constant 5 : index
    %157 = memref.load %arg5[%c2_56, %c5_57] : memref<4x9xf32, #tpu.memory_space<smem>>
    %158 = vector.broadcast %157 : f32 to vector<8x8xf32>
    %159 = arith.mulf %158, %131 : vector<8x8xf32>
    %160 = arith.addf %156, %159 : vector<8x8xf32>
    %c2_58 = arith.constant 2 : index
    %c6_59 = arith.constant 6 : index
    %161 = memref.load %arg5[%c2_58, %c6_59] : memref<4x9xf32, #tpu.memory_space<smem>>
    %162 = vector.broadcast %161 : f32 to vector<8x8xf32>
    %163 = arith.mulf %162, %132 : vector<8x8xf32>
    %164 = arith.addf %160, %163 : vector<8x8xf32>
    %c2_60 = arith.constant 2 : index
    %c7_61 = arith.constant 7 : index
    %165 = memref.load %arg5[%c2_60, %c7_61] : memref<4x9xf32, #tpu.memory_space<smem>>
    %166 = vector.broadcast %165 : f32 to vector<8x8xf32>
    %167 = arith.mulf %166, %133 : vector<8x8xf32>
    %168 = arith.addf %164, %167 : vector<8x8xf32>
    %c2_62 = arith.constant 2 : index
    %c8_63 = arith.constant 8 : index
    %169 = memref.load %arg5[%c2_62, %c8_63] : memref<4x9xf32, #tpu.memory_space<smem>>
    %170 = vector.broadcast %169 : f32 to vector<8x8xf32>
    %171 = arith.mulf %170, %134 : vector<8x8xf32>
    %172 = arith.addf %168, %171 : vector<8x8xf32>
    %173 = vector.extract_strided_slice %1 {offsets = [3, 0, 0], sizes = [1, 9, 9], strides = [1, 1, 1]} : vector<4x9x9xf32> to vector<1x9x9xf32>
    %174 = vector.shape_cast %173 : vector<1x9x9xf32> to vector<9x9xf32>
    %175 = vector.extract_strided_slice %3 {offsets = [3, 0, 0], sizes = [1, 9, 9], strides = [1, 1, 1]} : vector<4x9x9xf32> to vector<1x9x9xf32>
    %176 = vector.shape_cast %175 : vector<1x9x9xf32> to vector<9x9xf32>
    %177 = vector.extract_strided_slice %5 {offsets = [3, 0, 0], sizes = [1, 9, 9], strides = [1, 1, 1]} : vector<4x9x9xf32> to vector<1x9x9xf32>
    %178 = vector.shape_cast %177 : vector<1x9x9xf32> to vector<9x9xf32>
    %179 = vector.extract_strided_slice %7 {offsets = [3, 0, 0], sizes = [1, 9, 9], strides = [1, 1, 1]} : vector<4x9x9xf32> to vector<1x9x9xf32>
    %180 = vector.shape_cast %179 : vector<1x9x9xf32> to vector<9x9xf32>
    %181 = vector.extract_strided_slice %174 {offsets = [0, 0], sizes = [8, 8], strides = [1, 1]} : vector<9x9xf32> to vector<8x8xf32>
    %182 = vector.extract_strided_slice %176 {offsets = [0, 0], sizes = [8, 8], strides = [1, 1]} : vector<9x9xf32> to vector<8x8xf32>
    %183 = vector.extract_strided_slice %174 {offsets = [0, 1], sizes = [8, 8], strides = [1, 1]} : vector<9x9xf32> to vector<8x8xf32>
    %184 = vector.extract_strided_slice %178 {offsets = [0, 0], sizes = [8, 8], strides = [1, 1]} : vector<9x9xf32> to vector<8x8xf32>
    %185 = vector.extract_strided_slice %180 {offsets = [0, 0], sizes = [8, 8], strides = [1, 1]} : vector<9x9xf32> to vector<8x8xf32>
    %186 = vector.extract_strided_slice %178 {offsets = [0, 1], sizes = [8, 8], strides = [1, 1]} : vector<9x9xf32> to vector<8x8xf32>
    %187 = vector.extract_strided_slice %174 {offsets = [1, 0], sizes = [8, 8], strides = [1, 1]} : vector<9x9xf32> to vector<8x8xf32>
    %188 = vector.extract_strided_slice %176 {offsets = [1, 0], sizes = [8, 8], strides = [1, 1]} : vector<9x9xf32> to vector<8x8xf32>
    %189 = vector.extract_strided_slice %174 {offsets = [1, 1], sizes = [8, 8], strides = [1, 1]} : vector<9x9xf32> to vector<8x8xf32>
    %c3_64 = arith.constant 3 : index
    %190 = memref.load %arg6[%c3_64] : memref<4xf32, #tpu.memory_space<smem>>
    %191 = vector.broadcast %190 : f32 to vector<8x8xf32>
    %c3_65 = arith.constant 3 : index
    %c0_66 = arith.constant 0 : index
    %192 = memref.load %arg5[%c3_65, %c0_66] : memref<4x9xf32, #tpu.memory_space<smem>>
    %193 = vector.broadcast %192 : f32 to vector<8x8xf32>
    %194 = arith.mulf %193, %181 : vector<8x8xf32>
    %195 = arith.addf %191, %194 : vector<8x8xf32>
    %c3_67 = arith.constant 3 : index
    %c1_68 = arith.constant 1 : index
    %196 = memref.load %arg5[%c3_67, %c1_68] : memref<4x9xf32, #tpu.memory_space<smem>>
    %197 = vector.broadcast %196 : f32 to vector<8x8xf32>
    %198 = arith.mulf %197, %182 : vector<8x8xf32>
    %199 = arith.addf %195, %198 : vector<8x8xf32>
    %c3_69 = arith.constant 3 : index
    %c2_70 = arith.constant 2 : index
    %200 = memref.load %arg5[%c3_69, %c2_70] : memref<4x9xf32, #tpu.memory_space<smem>>
    %201 = vector.broadcast %200 : f32 to vector<8x8xf32>
    %202 = arith.mulf %201, %183 : vector<8x8xf32>
    %203 = arith.addf %199, %202 : vector<8x8xf32>
    %c3_71 = arith.constant 3 : index
    %c3_72 = arith.constant 3 : index
    %204 = memref.load %arg5[%c3_71, %c3_72] : memref<4x9xf32, #tpu.memory_space<smem>>
    %205 = vector.broadcast %204 : f32 to vector<8x8xf32>
    %206 = arith.mulf %205, %184 : vector<8x8xf32>
    %207 = arith.addf %203, %206 : vector<8x8xf32>
    %c3_73 = arith.constant 3 : index
    %c4_74 = arith.constant 4 : index
    %208 = memref.load %arg5[%c3_73, %c4_74] : memref<4x9xf32, #tpu.memory_space<smem>>
    %209 = vector.broadcast %208 : f32 to vector<8x8xf32>
    %210 = arith.mulf %209, %185 : vector<8x8xf32>
    %211 = arith.addf %207, %210 : vector<8x8xf32>
    %c3_75 = arith.constant 3 : index
    %c5_76 = arith.constant 5 : index
    %212 = memref.load %arg5[%c3_75, %c5_76] : memref<4x9xf32, #tpu.memory_space<smem>>
    %213 = vector.broadcast %212 : f32 to vector<8x8xf32>
    %214 = arith.mulf %213, %186 : vector<8x8xf32>
    %215 = arith.addf %211, %214 : vector<8x8xf32>
    %c3_77 = arith.constant 3 : index
    %c6_78 = arith.constant 6 : index
    %216 = memref.load %arg5[%c3_77, %c6_78] : memref<4x9xf32, #tpu.memory_space<smem>>
    %217 = vector.broadcast %216 : f32 to vector<8x8xf32>
    %218 = arith.mulf %217, %187 : vector<8x8xf32>
    %219 = arith.addf %215, %218 : vector<8x8xf32>
    %c3_79 = arith.constant 3 : index
    %c7_80 = arith.constant 7 : index
    %220 = memref.load %arg5[%c3_79, %c7_80] : memref<4x9xf32, #tpu.memory_space<smem>>
    %221 = vector.broadcast %220 : f32 to vector<8x8xf32>
    %222 = arith.mulf %221, %188 : vector<8x8xf32>
    %223 = arith.addf %219, %222 : vector<8x8xf32>
    %c3_81 = arith.constant 3 : index
    %c8_82 = arith.constant 8 : index
    %224 = memref.load %arg5[%c3_81, %c8_82] : memref<4x9xf32, #tpu.memory_space<smem>>
    %225 = vector.broadcast %224 : f32 to vector<8x8xf32>
    %226 = arith.mulf %225, %189 : vector<8x8xf32>
    %227 = arith.addf %223, %226 : vector<8x8xf32>
    %c0_83 = arith.constant 0 : index
    %228 = memref.load %arg8[%c0_83] : memref<4xf32, #tpu.memory_space<smem>>
    %229 = vector.broadcast %228 : f32 to vector<8x8xf32>
    %c0_84 = arith.constant 0 : index
    %c0_85 = arith.constant 0 : index
    %230 = memref.load %arg7[%c0_84, %c0_85] : memref<4x4xf32, #tpu.memory_space<smem>>
    %231 = vector.broadcast %230 : f32 to vector<8x8xf32>
    %232 = arith.mulf %231, %62 : vector<8x8xf32>
    %233 = arith.addf %229, %232 : vector<8x8xf32>
    %c0_86 = arith.constant 0 : index
    %c1_87 = arith.constant 1 : index
    %234 = memref.load %arg7[%c0_86, %c1_87] : memref<4x4xf32, #tpu.memory_space<smem>>
    %235 = vector.broadcast %234 : f32 to vector<8x8xf32>
    %236 = arith.mulf %235, %117 : vector<8x8xf32>
    %237 = arith.addf %233, %236 : vector<8x8xf32>
    %c0_88 = arith.constant 0 : index
    %c2_89 = arith.constant 2 : index
    %238 = memref.load %arg7[%c0_88, %c2_89] : memref<4x4xf32, #tpu.memory_space<smem>>
    %239 = vector.broadcast %238 : f32 to vector<8x8xf32>
    %240 = arith.mulf %239, %172 : vector<8x8xf32>
    %241 = arith.addf %237, %240 : vector<8x8xf32>
    %c0_90 = arith.constant 0 : index
    %c3_91 = arith.constant 3 : index
    %242 = memref.load %arg7[%c0_90, %c3_91] : memref<4x4xf32, #tpu.memory_space<smem>>
    %243 = vector.broadcast %242 : f32 to vector<8x8xf32>
    %244 = arith.mulf %243, %227 : vector<8x8xf32>
    %245 = arith.addf %241, %244 : vector<8x8xf32>
    %cst = arith.constant 0.000000e+00 : f32
    %246 = vector.broadcast %cst : f32 to vector<8x8xf32>
    %247 = arith.maximumf %245, %246 : vector<8x8xf32>
    %c1_92 = arith.constant 1 : index
    %248 = memref.load %arg8[%c1_92] : memref<4xf32, #tpu.memory_space<smem>>
    %249 = vector.broadcast %248 : f32 to vector<8x8xf32>
    %c1_93 = arith.constant 1 : index
    %c0_94 = arith.constant 0 : index
    %250 = memref.load %arg7[%c1_93, %c0_94] : memref<4x4xf32, #tpu.memory_space<smem>>
    %251 = vector.broadcast %250 : f32 to vector<8x8xf32>
    %252 = arith.mulf %251, %62 : vector<8x8xf32>
    %253 = arith.addf %249, %252 : vector<8x8xf32>
    %c1_95 = arith.constant 1 : index
    %c1_96 = arith.constant 1 : index
    %254 = memref.load %arg7[%c1_95, %c1_96] : memref<4x4xf32, #tpu.memory_space<smem>>
    %255 = vector.broadcast %254 : f32 to vector<8x8xf32>
    %256 = arith.mulf %255, %117 : vector<8x8xf32>
    %257 = arith.addf %253, %256 : vector<8x8xf32>
    %c1_97 = arith.constant 1 : index
    %c2_98 = arith.constant 2 : index
    %258 = memref.load %arg7[%c1_97, %c2_98] : memref<4x4xf32, #tpu.memory_space<smem>>
    %259 = vector.broadcast %258 : f32 to vector<8x8xf32>
    %260 = arith.mulf %259, %172 : vector<8x8xf32>
    %261 = arith.addf %257, %260 : vector<8x8xf32>
    %c1_99 = arith.constant 1 : index
    %c3_100 = arith.constant 3 : index
    %262 = memref.load %arg7[%c1_99, %c3_100] : memref<4x4xf32, #tpu.memory_space<smem>>
    %263 = vector.broadcast %262 : f32 to vector<8x8xf32>
    %264 = arith.mulf %263, %227 : vector<8x8xf32>
    %265 = arith.addf %261, %264 : vector<8x8xf32>
    %cst_101 = arith.constant 0.000000e+00 : f32
    %266 = vector.broadcast %cst_101 : f32 to vector<8x8xf32>
    %267 = arith.maximumf %265, %266 : vector<8x8xf32>
    %c2_102 = arith.constant 2 : index
    %268 = memref.load %arg8[%c2_102] : memref<4xf32, #tpu.memory_space<smem>>
    %269 = vector.broadcast %268 : f32 to vector<8x8xf32>
    %c2_103 = arith.constant 2 : index
    %c0_104 = arith.constant 0 : index
    %270 = memref.load %arg7[%c2_103, %c0_104] : memref<4x4xf32, #tpu.memory_space<smem>>
    %271 = vector.broadcast %270 : f32 to vector<8x8xf32>
    %272 = arith.mulf %271, %62 : vector<8x8xf32>
    %273 = arith.addf %269, %272 : vector<8x8xf32>
    %c2_105 = arith.constant 2 : index
    %c1_106 = arith.constant 1 : index
    %274 = memref.load %arg7[%c2_105, %c1_106] : memref<4x4xf32, #tpu.memory_space<smem>>
    %275 = vector.broadcast %274 : f32 to vector<8x8xf32>
    %276 = arith.mulf %275, %117 : vector<8x8xf32>
    %277 = arith.addf %273, %276 : vector<8x8xf32>
    %c2_107 = arith.constant 2 : index
    %c2_108 = arith.constant 2 : index
    %278 = memref.load %arg7[%c2_107, %c2_108] : memref<4x4xf32, #tpu.memory_space<smem>>
    %279 = vector.broadcast %278 : f32 to vector<8x8xf32>
    %280 = arith.mulf %279, %172 : vector<8x8xf32>
    %281 = arith.addf %277, %280 : vector<8x8xf32>
    %c2_109 = arith.constant 2 : index
    %c3_110 = arith.constant 3 : index
    %282 = memref.load %arg7[%c2_109, %c3_110] : memref<4x4xf32, #tpu.memory_space<smem>>
    %283 = vector.broadcast %282 : f32 to vector<8x8xf32>
    %284 = arith.mulf %283, %227 : vector<8x8xf32>
    %285 = arith.addf %281, %284 : vector<8x8xf32>
    %cst_111 = arith.constant 0.000000e+00 : f32
    %286 = vector.broadcast %cst_111 : f32 to vector<8x8xf32>
    %287 = arith.maximumf %285, %286 : vector<8x8xf32>
    %c3_112 = arith.constant 3 : index
    %288 = memref.load %arg8[%c3_112] : memref<4xf32, #tpu.memory_space<smem>>
    %289 = vector.broadcast %288 : f32 to vector<8x8xf32>
    %c3_113 = arith.constant 3 : index
    %c0_114 = arith.constant 0 : index
    %290 = memref.load %arg7[%c3_113, %c0_114] : memref<4x4xf32, #tpu.memory_space<smem>>
    %291 = vector.broadcast %290 : f32 to vector<8x8xf32>
    %292 = arith.mulf %291, %62 : vector<8x8xf32>
    %293 = arith.addf %289, %292 : vector<8x8xf32>
    %c3_115 = arith.constant 3 : index
    %c1_116 = arith.constant 1 : index
    %294 = memref.load %arg7[%c3_115, %c1_116] : memref<4x4xf32, #tpu.memory_space<smem>>
    %295 = vector.broadcast %294 : f32 to vector<8x8xf32>
    %296 = arith.mulf %295, %117 : vector<8x8xf32>
    %297 = arith.addf %293, %296 : vector<8x8xf32>
    %c3_117 = arith.constant 3 : index
    %c2_118 = arith.constant 2 : index
    %298 = memref.load %arg7[%c3_117, %c2_118] : memref<4x4xf32, #tpu.memory_space<smem>>
    %299 = vector.broadcast %298 : f32 to vector<8x8xf32>
    %300 = arith.mulf %299, %172 : vector<8x8xf32>
    %301 = arith.addf %297, %300 : vector<8x8xf32>
    %c3_119 = arith.constant 3 : index
    %c3_120 = arith.constant 3 : index
    %302 = memref.load %arg7[%c3_119, %c3_120] : memref<4x4xf32, #tpu.memory_space<smem>>
    %303 = vector.broadcast %302 : f32 to vector<8x8xf32>
    %304 = arith.mulf %303, %227 : vector<8x8xf32>
    %305 = arith.addf %301, %304 : vector<8x8xf32>
    %cst_121 = arith.constant 0.000000e+00 : f32
    %306 = vector.broadcast %cst_121 : f32 to vector<8x8xf32>
    %307 = arith.maximumf %305, %306 : vector<8x8xf32>
    %308 = tpu.iota {dimensions = array<i32: 0>} : vector<9x9xi32>
    %309 = tpu.iota {dimensions = array<i32: 1>} : vector<9x9xi32>
    %c0_i32 = arith.constant 0 : i32
    %310 = vector.broadcast %c0_i32 : i32 to vector<9x9xi32>
    %311 = arith.cmpi sgt, %308, %310 : vector<9x9xi32>
    %c0_i32_122 = arith.constant 0 : i32
    %312 = vector.broadcast %c0_i32_122 : i32 to vector<9x9xi32>
    %313 = arith.cmpi sgt, %309, %312 : vector<9x9xi32>
    %314 = arith.andi %311, %313 : vector<9x9xi1>
    %315 = arith.extui %314 : vector<9x9xi1> to vector<9x9xi32>
    %316 = arith.sitofp %315 : vector<9x9xi32> to vector<9x9xf32>
    %c0_i32_123 = arith.constant 0 : i32
    %317 = vector.broadcast %c0_i32_123 : i32 to vector<9x9xi32>
    %318 = arith.cmpi sgt, %308, %317 : vector<9x9xi32>
    %c8_i32 = arith.constant 8 : i32
    %319 = vector.broadcast %c8_i32 : i32 to vector<9x9xi32>
    %320 = arith.cmpi slt, %309, %319 : vector<9x9xi32>
    %321 = arith.andi %318, %320 : vector<9x9xi1>
    %322 = arith.extui %321 : vector<9x9xi1> to vector<9x9xi32>
    %323 = arith.sitofp %322 : vector<9x9xi32> to vector<9x9xf32>
    %c8_i32_124 = arith.constant 8 : i32
    %324 = vector.broadcast %c8_i32_124 : i32 to vector<9x9xi32>
    %325 = arith.cmpi slt, %308, %324 : vector<9x9xi32>
    %c0_i32_125 = arith.constant 0 : i32
    %326 = vector.broadcast %c0_i32_125 : i32 to vector<9x9xi32>
    %327 = arith.cmpi sgt, %309, %326 : vector<9x9xi32>
    %328 = arith.andi %325, %327 : vector<9x9xi1>
    %329 = arith.extui %328 : vector<9x9xi1> to vector<9x9xi32>
    %330 = arith.sitofp %329 : vector<9x9xi32> to vector<9x9xf32>
    %c8_i32_126 = arith.constant 8 : i32
    %331 = vector.broadcast %c8_i32_126 : i32 to vector<9x9xi32>
    %332 = arith.cmpi slt, %308, %331 : vector<9x9xi32>
    %c8_i32_127 = arith.constant 8 : i32
    %333 = vector.broadcast %c8_i32_127 : i32 to vector<9x9xi32>
    %334 = arith.cmpi slt, %309, %333 : vector<9x9xi32>
    %335 = arith.andi %332, %334 : vector<9x9xi1>
    %336 = arith.extui %335 : vector<9x9xi1> to vector<9x9xi32>
    %337 = arith.sitofp %336 : vector<9x9xi32> to vector<9x9xf32>
    %c0_128 = arith.constant 0 : index
    %338 = memref.load %arg10[%c0_128] : memref<4xf32, #tpu.memory_space<smem>>
    %339 = vector.broadcast %338 : f32 to vector<9x9xf32>
    %c0_129 = arith.constant 0 : index
    %c0_130 = arith.constant 0 : index
    %340 = memref.load %arg9[%c0_129, %c0_130] : memref<4x4xf32, #tpu.memory_space<smem>>
    %341 = vector.extract_strided_slice %1 {offsets = [0, 0, 0], sizes = [1, 9, 9], strides = [1, 1, 1]} : vector<4x9x9xf32> to vector<1x9x9xf32>
    %342 = vector.shape_cast %341 : vector<1x9x9xf32> to vector<9x9xf32>
    %343 = vector.broadcast %340 : f32 to vector<9x9xf32>
    %344 = arith.mulf %343, %342 : vector<9x9xf32>
    %345 = arith.addf %339, %344 : vector<9x9xf32>
    %c0_131 = arith.constant 0 : index
    %c1_132 = arith.constant 1 : index
    %346 = memref.load %arg9[%c0_131, %c1_132] : memref<4x4xf32, #tpu.memory_space<smem>>
    %347 = vector.extract_strided_slice %1 {offsets = [1, 0, 0], sizes = [1, 9, 9], strides = [1, 1, 1]} : vector<4x9x9xf32> to vector<1x9x9xf32>
    %348 = vector.shape_cast %347 : vector<1x9x9xf32> to vector<9x9xf32>
    %349 = vector.broadcast %346 : f32 to vector<9x9xf32>
    %350 = arith.mulf %349, %348 : vector<9x9xf32>
    %351 = arith.addf %345, %350 : vector<9x9xf32>
    %c0_133 = arith.constant 0 : index
    %c2_134 = arith.constant 2 : index
    %352 = memref.load %arg9[%c0_133, %c2_134] : memref<4x4xf32, #tpu.memory_space<smem>>
    %353 = vector.extract_strided_slice %1 {offsets = [2, 0, 0], sizes = [1, 9, 9], strides = [1, 1, 1]} : vector<4x9x9xf32> to vector<1x9x9xf32>
    %354 = vector.shape_cast %353 : vector<1x9x9xf32> to vector<9x9xf32>
    %355 = vector.broadcast %352 : f32 to vector<9x9xf32>
    %356 = arith.mulf %355, %354 : vector<9x9xf32>
    %357 = arith.addf %351, %356 : vector<9x9xf32>
    %c0_135 = arith.constant 0 : index
    %c3_136 = arith.constant 3 : index
    %358 = memref.load %arg9[%c0_135, %c3_136] : memref<4x4xf32, #tpu.memory_space<smem>>
    %359 = vector.extract_strided_slice %1 {offsets = [3, 0, 0], sizes = [1, 9, 9], strides = [1, 1, 1]} : vector<4x9x9xf32> to vector<1x9x9xf32>
    %360 = vector.shape_cast %359 : vector<1x9x9xf32> to vector<9x9xf32>
    %361 = vector.broadcast %358 : f32 to vector<9x9xf32>
    %362 = arith.mulf %361, %360 : vector<9x9xf32>
    %363 = arith.addf %357, %362 : vector<9x9xf32>
    %cst_137 = arith.constant 0.000000e+00 : f32
    %364 = vector.broadcast %cst_137 : f32 to vector<9x9xf32>
    %365 = arith.maximumf %363, %364 : vector<9x9xf32>
    %366 = arith.mulf %365, %316 : vector<9x9xf32>
    %c1_138 = arith.constant 1 : index
    %367 = memref.load %arg10[%c1_138] : memref<4xf32, #tpu.memory_space<smem>>
    %368 = vector.broadcast %367 : f32 to vector<9x9xf32>
    %c1_139 = arith.constant 1 : index
    %c0_140 = arith.constant 0 : index
    %369 = memref.load %arg9[%c1_139, %c0_140] : memref<4x4xf32, #tpu.memory_space<smem>>
    %370 = vector.extract_strided_slice %1 {offsets = [0, 0, 0], sizes = [1, 9, 9], strides = [1, 1, 1]} : vector<4x9x9xf32> to vector<1x9x9xf32>
    %371 = vector.shape_cast %370 : vector<1x9x9xf32> to vector<9x9xf32>
    %372 = vector.broadcast %369 : f32 to vector<9x9xf32>
    %373 = arith.mulf %372, %371 : vector<9x9xf32>
    %374 = arith.addf %368, %373 : vector<9x9xf32>
    %c1_141 = arith.constant 1 : index
    %c1_142 = arith.constant 1 : index
    %375 = memref.load %arg9[%c1_141, %c1_142] : memref<4x4xf32, #tpu.memory_space<smem>>
    %376 = vector.extract_strided_slice %1 {offsets = [1, 0, 0], sizes = [1, 9, 9], strides = [1, 1, 1]} : vector<4x9x9xf32> to vector<1x9x9xf32>
    %377 = vector.shape_cast %376 : vector<1x9x9xf32> to vector<9x9xf32>
    %378 = vector.broadcast %375 : f32 to vector<9x9xf32>
    %379 = arith.mulf %378, %377 : vector<9x9xf32>
    %380 = arith.addf %374, %379 : vector<9x9xf32>
    %c1_143 = arith.constant 1 : index
    %c2_144 = arith.constant 2 : index
    %381 = memref.load %arg9[%c1_143, %c2_144] : memref<4x4xf32, #tpu.memory_space<smem>>
    %382 = vector.extract_strided_slice %1 {offsets = [2, 0, 0], sizes = [1, 9, 9], strides = [1, 1, 1]} : vector<4x9x9xf32> to vector<1x9x9xf32>
    %383 = vector.shape_cast %382 : vector<1x9x9xf32> to vector<9x9xf32>
    %384 = vector.broadcast %381 : f32 to vector<9x9xf32>
    %385 = arith.mulf %384, %383 : vector<9x9xf32>
    %386 = arith.addf %380, %385 : vector<9x9xf32>
    %c1_145 = arith.constant 1 : index
    %c3_146 = arith.constant 3 : index
    %387 = memref.load %arg9[%c1_145, %c3_146] : memref<4x4xf32, #tpu.memory_space<smem>>
    %388 = vector.extract_strided_slice %1 {offsets = [3, 0, 0], sizes = [1, 9, 9], strides = [1, 1, 1]} : vector<4x9x9xf32> to vector<1x9x9xf32>
    %389 = vector.shape_cast %388 : vector<1x9x9xf32> to vector<9x9xf32>
    %390 = vector.broadcast %387 : f32 to vector<9x9xf32>
    %391 = arith.mulf %390, %389 : vector<9x9xf32>
    %392 = arith.addf %386, %391 : vector<9x9xf32>
    %cst_147 = arith.constant 0.000000e+00 : f32
    %393 = vector.broadcast %cst_147 : f32 to vector<9x9xf32>
    %394 = arith.maximumf %392, %393 : vector<9x9xf32>
    %395 = arith.mulf %394, %316 : vector<9x9xf32>
    %c2_148 = arith.constant 2 : index
    %396 = memref.load %arg10[%c2_148] : memref<4xf32, #tpu.memory_space<smem>>
    %397 = vector.broadcast %396 : f32 to vector<9x9xf32>
    %c2_149 = arith.constant 2 : index
    %c0_150 = arith.constant 0 : index
    %398 = memref.load %arg9[%c2_149, %c0_150] : memref<4x4xf32, #tpu.memory_space<smem>>
    %399 = vector.extract_strided_slice %1 {offsets = [0, 0, 0], sizes = [1, 9, 9], strides = [1, 1, 1]} : vector<4x9x9xf32> to vector<1x9x9xf32>
    %400 = vector.shape_cast %399 : vector<1x9x9xf32> to vector<9x9xf32>
    %401 = vector.broadcast %398 : f32 to vector<9x9xf32>
    %402 = arith.mulf %401, %400 : vector<9x9xf32>
    %403 = arith.addf %397, %402 : vector<9x9xf32>
    %c2_151 = arith.constant 2 : index
    %c1_152 = arith.constant 1 : index
    %404 = memref.load %arg9[%c2_151, %c1_152] : memref<4x4xf32, #tpu.memory_space<smem>>
    %405 = vector.extract_strided_slice %1 {offsets = [1, 0, 0], sizes = [1, 9, 9], strides = [1, 1, 1]} : vector<4x9x9xf32> to vector<1x9x9xf32>
    %406 = vector.shape_cast %405 : vector<1x9x9xf32> to vector<9x9xf32>
    %407 = vector.broadcast %404 : f32 to vector<9x9xf32>
    %408 = arith.mulf %407, %406 : vector<9x9xf32>
    %409 = arith.addf %403, %408 : vector<9x9xf32>
    %c2_153 = arith.constant 2 : index
    %c2_154 = arith.constant 2 : index
    %410 = memref.load %arg9[%c2_153, %c2_154] : memref<4x4xf32, #tpu.memory_space<smem>>
    %411 = vector.extract_strided_slice %1 {offsets = [2, 0, 0], sizes = [1, 9, 9], strides = [1, 1, 1]} : vector<4x9x9xf32> to vector<1x9x9xf32>
    %412 = vector.shape_cast %411 : vector<1x9x9xf32> to vector<9x9xf32>
    %413 = vector.broadcast %410 : f32 to vector<9x9xf32>
    %414 = arith.mulf %413, %412 : vector<9x9xf32>
    %415 = arith.addf %409, %414 : vector<9x9xf32>
    %c2_155 = arith.constant 2 : index
    %c3_156 = arith.constant 3 : index
    %416 = memref.load %arg9[%c2_155, %c3_156] : memref<4x4xf32, #tpu.memory_space<smem>>
    %417 = vector.extract_strided_slice %1 {offsets = [3, 0, 0], sizes = [1, 9, 9], strides = [1, 1, 1]} : vector<4x9x9xf32> to vector<1x9x9xf32>
    %418 = vector.shape_cast %417 : vector<1x9x9xf32> to vector<9x9xf32>
    %419 = vector.broadcast %416 : f32 to vector<9x9xf32>
    %420 = arith.mulf %419, %418 : vector<9x9xf32>
    %421 = arith.addf %415, %420 : vector<9x9xf32>
    %cst_157 = arith.constant 0.000000e+00 : f32
    %422 = vector.broadcast %cst_157 : f32 to vector<9x9xf32>
    %423 = arith.maximumf %421, %422 : vector<9x9xf32>
    %424 = arith.mulf %423, %316 : vector<9x9xf32>
    %c3_158 = arith.constant 3 : index
    %425 = memref.load %arg10[%c3_158] : memref<4xf32, #tpu.memory_space<smem>>
    %426 = vector.broadcast %425 : f32 to vector<9x9xf32>
    %c3_159 = arith.constant 3 : index
    %c0_160 = arith.constant 0 : index
    %427 = memref.load %arg9[%c3_159, %c0_160] : memref<4x4xf32, #tpu.memory_space<smem>>
    %428 = vector.extract_strided_slice %1 {offsets = [0, 0, 0], sizes = [1, 9, 9], strides = [1, 1, 1]} : vector<4x9x9xf32> to vector<1x9x9xf32>
    %429 = vector.shape_cast %428 : vector<1x9x9xf32> to vector<9x9xf32>
    %430 = vector.broadcast %427 : f32 to vector<9x9xf32>
    %431 = arith.mulf %430, %429 : vector<9x9xf32>
    %432 = arith.addf %426, %431 : vector<9x9xf32>
    %c3_161 = arith.constant 3 : index
    %c1_162 = arith.constant 1 : index
    %433 = memref.load %arg9[%c3_161, %c1_162] : memref<4x4xf32, #tpu.memory_space<smem>>
    %434 = vector.extract_strided_slice %1 {offsets = [1, 0, 0], sizes = [1, 9, 9], strides = [1, 1, 1]} : vector<4x9x9xf32> to vector<1x9x9xf32>
    %435 = vector.shape_cast %434 : vector<1x9x9xf32> to vector<9x9xf32>
    %436 = vector.broadcast %433 : f32 to vector<9x9xf32>
    %437 = arith.mulf %436, %435 : vector<9x9xf32>
    %438 = arith.addf %432, %437 : vector<9x9xf32>
    %c3_163 = arith.constant 3 : index
    %c2_164 = arith.constant 2 : index
    %439 = memref.load %arg9[%c3_163, %c2_164] : memref<4x4xf32, #tpu.memory_space<smem>>
    %440 = vector.extract_strided_slice %1 {offsets = [2, 0, 0], sizes = [1, 9, 9], strides = [1, 1, 1]} : vector<4x9x9xf32> to vector<1x9x9xf32>
    %441 = vector.shape_cast %440 : vector<1x9x9xf32> to vector<9x9xf32>
    %442 = vector.broadcast %439 : f32 to vector<9x9xf32>
    %443 = arith.mulf %442, %441 : vector<9x9xf32>
    %444 = arith.addf %438, %443 : vector<9x9xf32>
    %c3_165 = arith.constant 3 : index
    %c3_166 = arith.constant 3 : index
    %445 = memref.load %arg9[%c3_165, %c3_166] : memref<4x4xf32, #tpu.memory_space<smem>>
    %446 = vector.extract_strided_slice %1 {offsets = [3, 0, 0], sizes = [1, 9, 9], strides = [1, 1, 1]} : vector<4x9x9xf32> to vector<1x9x9xf32>
    %447 = vector.shape_cast %446 : vector<1x9x9xf32> to vector<9x9xf32>
    %448 = vector.broadcast %445 : f32 to vector<9x9xf32>
    %449 = arith.mulf %448, %447 : vector<9x9xf32>
    %450 = arith.addf %444, %449 : vector<9x9xf32>
    %cst_167 = arith.constant 0.000000e+00 : f32
    %451 = vector.broadcast %cst_167 : f32 to vector<9x9xf32>
    %452 = arith.maximumf %450, %451 : vector<9x9xf32>
    %453 = arith.mulf %452, %316 : vector<9x9xf32>
    %c0_168 = arith.constant 0 : index
    %454 = memref.load %arg10[%c0_168] : memref<4xf32, #tpu.memory_space<smem>>
    %455 = vector.broadcast %454 : f32 to vector<9x9xf32>
    %c0_169 = arith.constant 0 : index
    %c0_170 = arith.constant 0 : index
    %456 = memref.load %arg9[%c0_169, %c0_170] : memref<4x4xf32, #tpu.memory_space<smem>>
    %457 = vector.extract_strided_slice %3 {offsets = [0, 0, 0], sizes = [1, 9, 9], strides = [1, 1, 1]} : vector<4x9x9xf32> to vector<1x9x9xf32>
    %458 = vector.shape_cast %457 : vector<1x9x9xf32> to vector<9x9xf32>
    %459 = vector.broadcast %456 : f32 to vector<9x9xf32>
    %460 = arith.mulf %459, %458 : vector<9x9xf32>
    %461 = arith.addf %455, %460 : vector<9x9xf32>
    %c0_171 = arith.constant 0 : index
    %c1_172 = arith.constant 1 : index
    %462 = memref.load %arg9[%c0_171, %c1_172] : memref<4x4xf32, #tpu.memory_space<smem>>
    %463 = vector.extract_strided_slice %3 {offsets = [1, 0, 0], sizes = [1, 9, 9], strides = [1, 1, 1]} : vector<4x9x9xf32> to vector<1x9x9xf32>
    %464 = vector.shape_cast %463 : vector<1x9x9xf32> to vector<9x9xf32>
    %465 = vector.broadcast %462 : f32 to vector<9x9xf32>
    %466 = arith.mulf %465, %464 : vector<9x9xf32>
    %467 = arith.addf %461, %466 : vector<9x9xf32>
    %c0_173 = arith.constant 0 : index
    %c2_174 = arith.constant 2 : index
    %468 = memref.load %arg9[%c0_173, %c2_174] : memref<4x4xf32, #tpu.memory_space<smem>>
    %469 = vector.extract_strided_slice %3 {offsets = [2, 0, 0], sizes = [1, 9, 9], strides = [1, 1, 1]} : vector<4x9x9xf32> to vector<1x9x9xf32>
    %470 = vector.shape_cast %469 : vector<1x9x9xf32> to vector<9x9xf32>
    %471 = vector.broadcast %468 : f32 to vector<9x9xf32>
    %472 = arith.mulf %471, %470 : vector<9x9xf32>
    %473 = arith.addf %467, %472 : vector<9x9xf32>
    %c0_175 = arith.constant 0 : index
    %c3_176 = arith.constant 3 : index
    %474 = memref.load %arg9[%c0_175, %c3_176] : memref<4x4xf32, #tpu.memory_space<smem>>
    %475 = vector.extract_strided_slice %3 {offsets = [3, 0, 0], sizes = [1, 9, 9], strides = [1, 1, 1]} : vector<4x9x9xf32> to vector<1x9x9xf32>
    %476 = vector.shape_cast %475 : vector<1x9x9xf32> to vector<9x9xf32>
    %477 = vector.broadcast %474 : f32 to vector<9x9xf32>
    %478 = arith.mulf %477, %476 : vector<9x9xf32>
    %479 = arith.addf %473, %478 : vector<9x9xf32>
    %cst_177 = arith.constant 0.000000e+00 : f32
    %480 = vector.broadcast %cst_177 : f32 to vector<9x9xf32>
    %481 = arith.maximumf %479, %480 : vector<9x9xf32>
    %482 = arith.mulf %481, %323 : vector<9x9xf32>
    %c1_178 = arith.constant 1 : index
    %483 = memref.load %arg10[%c1_178] : memref<4xf32, #tpu.memory_space<smem>>
    %484 = vector.broadcast %483 : f32 to vector<9x9xf32>
    %c1_179 = arith.constant 1 : index
    %c0_180 = arith.constant 0 : index
    %485 = memref.load %arg9[%c1_179, %c0_180] : memref<4x4xf32, #tpu.memory_space<smem>>
    %486 = vector.extract_strided_slice %3 {offsets = [0, 0, 0], sizes = [1, 9, 9], strides = [1, 1, 1]} : vector<4x9x9xf32> to vector<1x9x9xf32>
    %487 = vector.shape_cast %486 : vector<1x9x9xf32> to vector<9x9xf32>
    %488 = vector.broadcast %485 : f32 to vector<9x9xf32>
    %489 = arith.mulf %488, %487 : vector<9x9xf32>
    %490 = arith.addf %484, %489 : vector<9x9xf32>
    %c1_181 = arith.constant 1 : index
    %c1_182 = arith.constant 1 : index
    %491 = memref.load %arg9[%c1_181, %c1_182] : memref<4x4xf32, #tpu.memory_space<smem>>
    %492 = vector.extract_strided_slice %3 {offsets = [1, 0, 0], sizes = [1, 9, 9], strides = [1, 1, 1]} : vector<4x9x9xf32> to vector<1x9x9xf32>
    %493 = vector.shape_cast %492 : vector<1x9x9xf32> to vector<9x9xf32>
    %494 = vector.broadcast %491 : f32 to vector<9x9xf32>
    %495 = arith.mulf %494, %493 : vector<9x9xf32>
    %496 = arith.addf %490, %495 : vector<9x9xf32>
    %c1_183 = arith.constant 1 : index
    %c2_184 = arith.constant 2 : index
    %497 = memref.load %arg9[%c1_183, %c2_184] : memref<4x4xf32, #tpu.memory_space<smem>>
    %498 = vector.extract_strided_slice %3 {offsets = [2, 0, 0], sizes = [1, 9, 9], strides = [1, 1, 1]} : vector<4x9x9xf32> to vector<1x9x9xf32>
    %499 = vector.shape_cast %498 : vector<1x9x9xf32> to vector<9x9xf32>
    %500 = vector.broadcast %497 : f32 to vector<9x9xf32>
    %501 = arith.mulf %500, %499 : vector<9x9xf32>
    %502 = arith.addf %496, %501 : vector<9x9xf32>
    %c1_185 = arith.constant 1 : index
    %c3_186 = arith.constant 3 : index
    %503 = memref.load %arg9[%c1_185, %c3_186] : memref<4x4xf32, #tpu.memory_space<smem>>
    %504 = vector.extract_strided_slice %3 {offsets = [3, 0, 0], sizes = [1, 9, 9], strides = [1, 1, 1]} : vector<4x9x9xf32> to vector<1x9x9xf32>
    %505 = vector.shape_cast %504 : vector<1x9x9xf32> to vector<9x9xf32>
    %506 = vector.broadcast %503 : f32 to vector<9x9xf32>
    %507 = arith.mulf %506, %505 : vector<9x9xf32>
    %508 = arith.addf %502, %507 : vector<9x9xf32>
    %cst_187 = arith.constant 0.000000e+00 : f32
    %509 = vector.broadcast %cst_187 : f32 to vector<9x9xf32>
    %510 = arith.maximumf %508, %509 : vector<9x9xf32>
    %511 = arith.mulf %510, %323 : vector<9x9xf32>
    %c2_188 = arith.constant 2 : index
    %512 = memref.load %arg10[%c2_188] : memref<4xf32, #tpu.memory_space<smem>>
    %513 = vector.broadcast %512 : f32 to vector<9x9xf32>
    %c2_189 = arith.constant 2 : index
    %c0_190 = arith.constant 0 : index
    %514 = memref.load %arg9[%c2_189, %c0_190] : memref<4x4xf32, #tpu.memory_space<smem>>
    %515 = vector.extract_strided_slice %3 {offsets = [0, 0, 0], sizes = [1, 9, 9], strides = [1, 1, 1]} : vector<4x9x9xf32> to vector<1x9x9xf32>
    %516 = vector.shape_cast %515 : vector<1x9x9xf32> to vector<9x9xf32>
    %517 = vector.broadcast %514 : f32 to vector<9x9xf32>
    %518 = arith.mulf %517, %516 : vector<9x9xf32>
    %519 = arith.addf %513, %518 : vector<9x9xf32>
    %c2_191 = arith.constant 2 : index
    %c1_192 = arith.constant 1 : index
    %520 = memref.load %arg9[%c2_191, %c1_192] : memref<4x4xf32, #tpu.memory_space<smem>>
    %521 = vector.extract_strided_slice %3 {offsets = [1, 0, 0], sizes = [1, 9, 9], strides = [1, 1, 1]} : vector<4x9x9xf32> to vector<1x9x9xf32>
    %522 = vector.shape_cast %521 : vector<1x9x9xf32> to vector<9x9xf32>
    %523 = vector.broadcast %520 : f32 to vector<9x9xf32>
    %524 = arith.mulf %523, %522 : vector<9x9xf32>
    %525 = arith.addf %519, %524 : vector<9x9xf32>
    %c2_193 = arith.constant 2 : index
    %c2_194 = arith.constant 2 : index
    %526 = memref.load %arg9[%c2_193, %c2_194] : memref<4x4xf32, #tpu.memory_space<smem>>
    %527 = vector.extract_strided_slice %3 {offsets = [2, 0, 0], sizes = [1, 9, 9], strides = [1, 1, 1]} : vector<4x9x9xf32> to vector<1x9x9xf32>
    %528 = vector.shape_cast %527 : vector<1x9x9xf32> to vector<9x9xf32>
    %529 = vector.broadcast %526 : f32 to vector<9x9xf32>
    %530 = arith.mulf %529, %528 : vector<9x9xf32>
    %531 = arith.addf %525, %530 : vector<9x9xf32>
    %c2_195 = arith.constant 2 : index
    %c3_196 = arith.constant 3 : index
    %532 = memref.load %arg9[%c2_195, %c3_196] : memref<4x4xf32, #tpu.memory_space<smem>>
    %533 = vector.extract_strided_slice %3 {offsets = [3, 0, 0], sizes = [1, 9, 9], strides = [1, 1, 1]} : vector<4x9x9xf32> to vector<1x9x9xf32>
    %534 = vector.shape_cast %533 : vector<1x9x9xf32> to vector<9x9xf32>
    %535 = vector.broadcast %532 : f32 to vector<9x9xf32>
    %536 = arith.mulf %535, %534 : vector<9x9xf32>
    %537 = arith.addf %531, %536 : vector<9x9xf32>
    %cst_197 = arith.constant 0.000000e+00 : f32
    %538 = vector.broadcast %cst_197 : f32 to vector<9x9xf32>
    %539 = arith.maximumf %537, %538 : vector<9x9xf32>
    %540 = arith.mulf %539, %323 : vector<9x9xf32>
    %c3_198 = arith.constant 3 : index
    %541 = memref.load %arg10[%c3_198] : memref<4xf32, #tpu.memory_space<smem>>
    %542 = vector.broadcast %541 : f32 to vector<9x9xf32>
    %c3_199 = arith.constant 3 : index
    %c0_200 = arith.constant 0 : index
    %543 = memref.load %arg9[%c3_199, %c0_200] : memref<4x4xf32, #tpu.memory_space<smem>>
    %544 = vector.extract_strided_slice %3 {offsets = [0, 0, 0], sizes = [1, 9, 9], strides = [1, 1, 1]} : vector<4x9x9xf32> to vector<1x9x9xf32>
    %545 = vector.shape_cast %544 : vector<1x9x9xf32> to vector<9x9xf32>
    %546 = vector.broadcast %543 : f32 to vector<9x9xf32>
    %547 = arith.mulf %546, %545 : vector<9x9xf32>
    %548 = arith.addf %542, %547 : vector<9x9xf32>
    %c3_201 = arith.constant 3 : index
    %c1_202 = arith.constant 1 : index
    %549 = memref.load %arg9[%c3_201, %c1_202] : memref<4x4xf32, #tpu.memory_space<smem>>
    %550 = vector.extract_strided_slice %3 {offsets = [1, 0, 0], sizes = [1, 9, 9], strides = [1, 1, 1]} : vector<4x9x9xf32> to vector<1x9x9xf32>
    %551 = vector.shape_cast %550 : vector<1x9x9xf32> to vector<9x9xf32>
    %552 = vector.broadcast %549 : f32 to vector<9x9xf32>
    %553 = arith.mulf %552, %551 : vector<9x9xf32>
    %554 = arith.addf %548, %553 : vector<9x9xf32>
    %c3_203 = arith.constant 3 : index
    %c2_204 = arith.constant 2 : index
    %555 = memref.load %arg9[%c3_203, %c2_204] : memref<4x4xf32, #tpu.memory_space<smem>>
    %556 = vector.extract_strided_slice %3 {offsets = [2, 0, 0], sizes = [1, 9, 9], strides = [1, 1, 1]} : vector<4x9x9xf32> to vector<1x9x9xf32>
    %557 = vector.shape_cast %556 : vector<1x9x9xf32> to vector<9x9xf32>
    %558 = vector.broadcast %555 : f32 to vector<9x9xf32>
    %559 = arith.mulf %558, %557 : vector<9x9xf32>
    %560 = arith.addf %554, %559 : vector<9x9xf32>
    %c3_205 = arith.constant 3 : index
    %c3_206 = arith.constant 3 : index
    %561 = memref.load %arg9[%c3_205, %c3_206] : memref<4x4xf32, #tpu.memory_space<smem>>
    %562 = vector.extract_strided_slice %3 {offsets = [3, 0, 0], sizes = [1, 9, 9], strides = [1, 1, 1]} : vector<4x9x9xf32> to vector<1x9x9xf32>
    %563 = vector.shape_cast %562 : vector<1x9x9xf32> to vector<9x9xf32>
    %564 = vector.broadcast %561 : f32 to vector<9x9xf32>
    %565 = arith.mulf %564, %563 : vector<9x9xf32>
    %566 = arith.addf %560, %565 : vector<9x9xf32>
    %cst_207 = arith.constant 0.000000e+00 : f32
    %567 = vector.broadcast %cst_207 : f32 to vector<9x9xf32>
    %568 = arith.maximumf %566, %567 : vector<9x9xf32>
    %569 = arith.mulf %568, %323 : vector<9x9xf32>
    %c0_208 = arith.constant 0 : index
    %570 = memref.load %arg10[%c0_208] : memref<4xf32, #tpu.memory_space<smem>>
    %571 = vector.broadcast %570 : f32 to vector<9x9xf32>
    %c0_209 = arith.constant 0 : index
    %c0_210 = arith.constant 0 : index
    %572 = memref.load %arg9[%c0_209, %c0_210] : memref<4x4xf32, #tpu.memory_space<smem>>
    %573 = vector.extract_strided_slice %5 {offsets = [0, 0, 0], sizes = [1, 9, 9], strides = [1, 1, 1]} : vector<4x9x9xf32> to vector<1x9x9xf32>
    %574 = vector.shape_cast %573 : vector<1x9x9xf32> to vector<9x9xf32>
    %575 = vector.broadcast %572 : f32 to vector<9x9xf32>
    %576 = arith.mulf %575, %574 : vector<9x9xf32>
    %577 = arith.addf %571, %576 : vector<9x9xf32>
    %c0_211 = arith.constant 0 : index
    %c1_212 = arith.constant 1 : index
    %578 = memref.load %arg9[%c0_211, %c1_212] : memref<4x4xf32, #tpu.memory_space<smem>>
    %579 = vector.extract_strided_slice %5 {offsets = [1, 0, 0], sizes = [1, 9, 9], strides = [1, 1, 1]} : vector<4x9x9xf32> to vector<1x9x9xf32>
    %580 = vector.shape_cast %579 : vector<1x9x9xf32> to vector<9x9xf32>
    %581 = vector.broadcast %578 : f32 to vector<9x9xf32>
    %582 = arith.mulf %581, %580 : vector<9x9xf32>
    %583 = arith.addf %577, %582 : vector<9x9xf32>
    %c0_213 = arith.constant 0 : index
    %c2_214 = arith.constant 2 : index
    %584 = memref.load %arg9[%c0_213, %c2_214] : memref<4x4xf32, #tpu.memory_space<smem>>
    %585 = vector.extract_strided_slice %5 {offsets = [2, 0, 0], sizes = [1, 9, 9], strides = [1, 1, 1]} : vector<4x9x9xf32> to vector<1x9x9xf32>
    %586 = vector.shape_cast %585 : vector<1x9x9xf32> to vector<9x9xf32>
    %587 = vector.broadcast %584 : f32 to vector<9x9xf32>
    %588 = arith.mulf %587, %586 : vector<9x9xf32>
    %589 = arith.addf %583, %588 : vector<9x9xf32>
    %c0_215 = arith.constant 0 : index
    %c3_216 = arith.constant 3 : index
    %590 = memref.load %arg9[%c0_215, %c3_216] : memref<4x4xf32, #tpu.memory_space<smem>>
    %591 = vector.extract_strided_slice %5 {offsets = [3, 0, 0], sizes = [1, 9, 9], strides = [1, 1, 1]} : vector<4x9x9xf32> to vector<1x9x9xf32>
    %592 = vector.shape_cast %591 : vector<1x9x9xf32> to vector<9x9xf32>
    %593 = vector.broadcast %590 : f32 to vector<9x9xf32>
    %594 = arith.mulf %593, %592 : vector<9x9xf32>
    %595 = arith.addf %589, %594 : vector<9x9xf32>
    %cst_217 = arith.constant 0.000000e+00 : f32
    %596 = vector.broadcast %cst_217 : f32 to vector<9x9xf32>
    %597 = arith.maximumf %595, %596 : vector<9x9xf32>
    %598 = arith.mulf %597, %330 : vector<9x9xf32>
    %c1_218 = arith.constant 1 : index
    %599 = memref.load %arg10[%c1_218] : memref<4xf32, #tpu.memory_space<smem>>
    %600 = vector.broadcast %599 : f32 to vector<9x9xf32>
    %c1_219 = arith.constant 1 : index
    %c0_220 = arith.constant 0 : index
    %601 = memref.load %arg9[%c1_219, %c0_220] : memref<4x4xf32, #tpu.memory_space<smem>>
    %602 = vector.extract_strided_slice %5 {offsets = [0, 0, 0], sizes = [1, 9, 9], strides = [1, 1, 1]} : vector<4x9x9xf32> to vector<1x9x9xf32>
    %603 = vector.shape_cast %602 : vector<1x9x9xf32> to vector<9x9xf32>
    %604 = vector.broadcast %601 : f32 to vector<9x9xf32>
    %605 = arith.mulf %604, %603 : vector<9x9xf32>
    %606 = arith.addf %600, %605 : vector<9x9xf32>
    %c1_221 = arith.constant 1 : index
    %c1_222 = arith.constant 1 : index
    %607 = memref.load %arg9[%c1_221, %c1_222] : memref<4x4xf32, #tpu.memory_space<smem>>
    %608 = vector.extract_strided_slice %5 {offsets = [1, 0, 0], sizes = [1, 9, 9], strides = [1, 1, 1]} : vector<4x9x9xf32> to vector<1x9x9xf32>
    %609 = vector.shape_cast %608 : vector<1x9x9xf32> to vector<9x9xf32>
    %610 = vector.broadcast %607 : f32 to vector<9x9xf32>
    %611 = arith.mulf %610, %609 : vector<9x9xf32>
    %612 = arith.addf %606, %611 : vector<9x9xf32>
    %c1_223 = arith.constant 1 : index
    %c2_224 = arith.constant 2 : index
    %613 = memref.load %arg9[%c1_223, %c2_224] : memref<4x4xf32, #tpu.memory_space<smem>>
    %614 = vector.extract_strided_slice %5 {offsets = [2, 0, 0], sizes = [1, 9, 9], strides = [1, 1, 1]} : vector<4x9x9xf32> to vector<1x9x9xf32>
    %615 = vector.shape_cast %614 : vector<1x9x9xf32> to vector<9x9xf32>
    %616 = vector.broadcast %613 : f32 to vector<9x9xf32>
    %617 = arith.mulf %616, %615 : vector<9x9xf32>
    %618 = arith.addf %612, %617 : vector<9x9xf32>
    %c1_225 = arith.constant 1 : index
    %c3_226 = arith.constant 3 : index
    %619 = memref.load %arg9[%c1_225, %c3_226] : memref<4x4xf32, #tpu.memory_space<smem>>
    %620 = vector.extract_strided_slice %5 {offsets = [3, 0, 0], sizes = [1, 9, 9], strides = [1, 1, 1]} : vector<4x9x9xf32> to vector<1x9x9xf32>
    %621 = vector.shape_cast %620 : vector<1x9x9xf32> to vector<9x9xf32>
    %622 = vector.broadcast %619 : f32 to vector<9x9xf32>
    %623 = arith.mulf %622, %621 : vector<9x9xf32>
    %624 = arith.addf %618, %623 : vector<9x9xf32>
    %cst_227 = arith.constant 0.000000e+00 : f32
    %625 = vector.broadcast %cst_227 : f32 to vector<9x9xf32>
    %626 = arith.maximumf %624, %625 : vector<9x9xf32>
    %627 = arith.mulf %626, %330 : vector<9x9xf32>
    %c2_228 = arith.constant 2 : index
    %628 = memref.load %arg10[%c2_228] : memref<4xf32, #tpu.memory_space<smem>>
    %629 = vector.broadcast %628 : f32 to vector<9x9xf32>
    %c2_229 = arith.constant 2 : index
    %c0_230 = arith.constant 0 : index
    %630 = memref.load %arg9[%c2_229, %c0_230] : memref<4x4xf32, #tpu.memory_space<smem>>
    %631 = vector.extract_strided_slice %5 {offsets = [0, 0, 0], sizes = [1, 9, 9], strides = [1, 1, 1]} : vector<4x9x9xf32> to vector<1x9x9xf32>
    %632 = vector.shape_cast %631 : vector<1x9x9xf32> to vector<9x9xf32>
    %633 = vector.broadcast %630 : f32 to vector<9x9xf32>
    %634 = arith.mulf %633, %632 : vector<9x9xf32>
    %635 = arith.addf %629, %634 : vector<9x9xf32>
    %c2_231 = arith.constant 2 : index
    %c1_232 = arith.constant 1 : index
    %636 = memref.load %arg9[%c2_231, %c1_232] : memref<4x4xf32, #tpu.memory_space<smem>>
    %637 = vector.extract_strided_slice %5 {offsets = [1, 0, 0], sizes = [1, 9, 9], strides = [1, 1, 1]} : vector<4x9x9xf32> to vector<1x9x9xf32>
    %638 = vector.shape_cast %637 : vector<1x9x9xf32> to vector<9x9xf32>
    %639 = vector.broadcast %636 : f32 to vector<9x9xf32>
    %640 = arith.mulf %639, %638 : vector<9x9xf32>
    %641 = arith.addf %635, %640 : vector<9x9xf32>
    %c2_233 = arith.constant 2 : index
    %c2_234 = arith.constant 2 : index
    %642 = memref.load %arg9[%c2_233, %c2_234] : memref<4x4xf32, #tpu.memory_space<smem>>
    %643 = vector.extract_strided_slice %5 {offsets = [2, 0, 0], sizes = [1, 9, 9], strides = [1, 1, 1]} : vector<4x9x9xf32> to vector<1x9x9xf32>
    %644 = vector.shape_cast %643 : vector<1x9x9xf32> to vector<9x9xf32>
    %645 = vector.broadcast %642 : f32 to vector<9x9xf32>
    %646 = arith.mulf %645, %644 : vector<9x9xf32>
    %647 = arith.addf %641, %646 : vector<9x9xf32>
    %c2_235 = arith.constant 2 : index
    %c3_236 = arith.constant 3 : index
    %648 = memref.load %arg9[%c2_235, %c3_236] : memref<4x4xf32, #tpu.memory_space<smem>>
    %649 = vector.extract_strided_slice %5 {offsets = [3, 0, 0], sizes = [1, 9, 9], strides = [1, 1, 1]} : vector<4x9x9xf32> to vector<1x9x9xf32>
    %650 = vector.shape_cast %649 : vector<1x9x9xf32> to vector<9x9xf32>
    %651 = vector.broadcast %648 : f32 to vector<9x9xf32>
    %652 = arith.mulf %651, %650 : vector<9x9xf32>
    %653 = arith.addf %647, %652 : vector<9x9xf32>
    %cst_237 = arith.constant 0.000000e+00 : f32
    %654 = vector.broadcast %cst_237 : f32 to vector<9x9xf32>
    %655 = arith.maximumf %653, %654 : vector<9x9xf32>
    %656 = arith.mulf %655, %330 : vector<9x9xf32>
    %c3_238 = arith.constant 3 : index
    %657 = memref.load %arg10[%c3_238] : memref<4xf32, #tpu.memory_space<smem>>
    %658 = vector.broadcast %657 : f32 to vector<9x9xf32>
    %c3_239 = arith.constant 3 : index
    %c0_240 = arith.constant 0 : index
    %659 = memref.load %arg9[%c3_239, %c0_240] : memref<4x4xf32, #tpu.memory_space<smem>>
    %660 = vector.extract_strided_slice %5 {offsets = [0, 0, 0], sizes = [1, 9, 9], strides = [1, 1, 1]} : vector<4x9x9xf32> to vector<1x9x9xf32>
    %661 = vector.shape_cast %660 : vector<1x9x9xf32> to vector<9x9xf32>
    %662 = vector.broadcast %659 : f32 to vector<9x9xf32>
    %663 = arith.mulf %662, %661 : vector<9x9xf32>
    %664 = arith.addf %658, %663 : vector<9x9xf32>
    %c3_241 = arith.constant 3 : index
    %c1_242 = arith.constant 1 : index
    %665 = memref.load %arg9[%c3_241, %c1_242] : memref<4x4xf32, #tpu.memory_space<smem>>
    %666 = vector.extract_strided_slice %5 {offsets = [1, 0, 0], sizes = [1, 9, 9], strides = [1, 1, 1]} : vector<4x9x9xf32> to vector<1x9x9xf32>
    %667 = vector.shape_cast %666 : vector<1x9x9xf32> to vector<9x9xf32>
    %668 = vector.broadcast %665 : f32 to vector<9x9xf32>
    %669 = arith.mulf %668, %667 : vector<9x9xf32>
    %670 = arith.addf %664, %669 : vector<9x9xf32>
    %c3_243 = arith.constant 3 : index
    %c2_244 = arith.constant 2 : index
    %671 = memref.load %arg9[%c3_243, %c2_244] : memref<4x4xf32, #tpu.memory_space<smem>>
    %672 = vector.extract_strided_slice %5 {offsets = [2, 0, 0], sizes = [1, 9, 9], strides = [1, 1, 1]} : vector<4x9x9xf32> to vector<1x9x9xf32>
    %673 = vector.shape_cast %672 : vector<1x9x9xf32> to vector<9x9xf32>
    %674 = vector.broadcast %671 : f32 to vector<9x9xf32>
    %675 = arith.mulf %674, %673 : vector<9x9xf32>
    %676 = arith.addf %670, %675 : vector<9x9xf32>
    %c3_245 = arith.constant 3 : index
    %c3_246 = arith.constant 3 : index
    %677 = memref.load %arg9[%c3_245, %c3_246] : memref<4x4xf32, #tpu.memory_space<smem>>
    %678 = vector.extract_strided_slice %5 {offsets = [3, 0, 0], sizes = [1, 9, 9], strides = [1, 1, 1]} : vector<4x9x9xf32> to vector<1x9x9xf32>
    %679 = vector.shape_cast %678 : vector<1x9x9xf32> to vector<9x9xf32>
    %680 = vector.broadcast %677 : f32 to vector<9x9xf32>
    %681 = arith.mulf %680, %679 : vector<9x9xf32>
    %682 = arith.addf %676, %681 : vector<9x9xf32>
    %cst_247 = arith.constant 0.000000e+00 : f32
    %683 = vector.broadcast %cst_247 : f32 to vector<9x9xf32>
    %684 = arith.maximumf %682, %683 : vector<9x9xf32>
    %685 = arith.mulf %684, %330 : vector<9x9xf32>
    %c0_248 = arith.constant 0 : index
    %686 = memref.load %arg10[%c0_248] : memref<4xf32, #tpu.memory_space<smem>>
    %687 = vector.broadcast %686 : f32 to vector<9x9xf32>
    %c0_249 = arith.constant 0 : index
    %c0_250 = arith.constant 0 : index
    %688 = memref.load %arg9[%c0_249, %c0_250] : memref<4x4xf32, #tpu.memory_space<smem>>
    %689 = vector.extract_strided_slice %7 {offsets = [0, 0, 0], sizes = [1, 9, 9], strides = [1, 1, 1]} : vector<4x9x9xf32> to vector<1x9x9xf32>
    %690 = vector.shape_cast %689 : vector<1x9x9xf32> to vector<9x9xf32>
    %691 = vector.broadcast %688 : f32 to vector<9x9xf32>
    %692 = arith.mulf %691, %690 : vector<9x9xf32>
    %693 = arith.addf %687, %692 : vector<9x9xf32>
    %c0_251 = arith.constant 0 : index
    %c1_252 = arith.constant 1 : index
    %694 = memref.load %arg9[%c0_251, %c1_252] : memref<4x4xf32, #tpu.memory_space<smem>>
    %695 = vector.extract_strided_slice %7 {offsets = [1, 0, 0], sizes = [1, 9, 9], strides = [1, 1, 1]} : vector<4x9x9xf32> to vector<1x9x9xf32>
    %696 = vector.shape_cast %695 : vector<1x9x9xf32> to vector<9x9xf32>
    %697 = vector.broadcast %694 : f32 to vector<9x9xf32>
    %698 = arith.mulf %697, %696 : vector<9x9xf32>
    %699 = arith.addf %693, %698 : vector<9x9xf32>
    %c0_253 = arith.constant 0 : index
    %c2_254 = arith.constant 2 : index
    %700 = memref.load %arg9[%c0_253, %c2_254] : memref<4x4xf32, #tpu.memory_space<smem>>
    %701 = vector.extract_strided_slice %7 {offsets = [2, 0, 0], sizes = [1, 9, 9], strides = [1, 1, 1]} : vector<4x9x9xf32> to vector<1x9x9xf32>
    %702 = vector.shape_cast %701 : vector<1x9x9xf32> to vector<9x9xf32>
    %703 = vector.broadcast %700 : f32 to vector<9x9xf32>
    %704 = arith.mulf %703, %702 : vector<9x9xf32>
    %705 = arith.addf %699, %704 : vector<9x9xf32>
    %c0_255 = arith.constant 0 : index
    %c3_256 = arith.constant 3 : index
    %706 = memref.load %arg9[%c0_255, %c3_256] : memref<4x4xf32, #tpu.memory_space<smem>>
    %707 = vector.extract_strided_slice %7 {offsets = [3, 0, 0], sizes = [1, 9, 9], strides = [1, 1, 1]} : vector<4x9x9xf32> to vector<1x9x9xf32>
    %708 = vector.shape_cast %707 : vector<1x9x9xf32> to vector<9x9xf32>
    %709 = vector.broadcast %706 : f32 to vector<9x9xf32>
    %710 = arith.mulf %709, %708 : vector<9x9xf32>
    %711 = arith.addf %705, %710 : vector<9x9xf32>
    %cst_257 = arith.constant 0.000000e+00 : f32
    %712 = vector.broadcast %cst_257 : f32 to vector<9x9xf32>
    %713 = arith.maximumf %711, %712 : vector<9x9xf32>
    %714 = arith.mulf %713, %337 : vector<9x9xf32>
    %c1_258 = arith.constant 1 : index
    %715 = memref.load %arg10[%c1_258] : memref<4xf32, #tpu.memory_space<smem>>
    %716 = vector.broadcast %715 : f32 to vector<9x9xf32>
    %c1_259 = arith.constant 1 : index
    %c0_260 = arith.constant 0 : index
    %717 = memref.load %arg9[%c1_259, %c0_260] : memref<4x4xf32, #tpu.memory_space<smem>>
    %718 = vector.extract_strided_slice %7 {offsets = [0, 0, 0], sizes = [1, 9, 9], strides = [1, 1, 1]} : vector<4x9x9xf32> to vector<1x9x9xf32>
    %719 = vector.shape_cast %718 : vector<1x9x9xf32> to vector<9x9xf32>
    %720 = vector.broadcast %717 : f32 to vector<9x9xf32>
    %721 = arith.mulf %720, %719 : vector<9x9xf32>
    %722 = arith.addf %716, %721 : vector<9x9xf32>
    %c1_261 = arith.constant 1 : index
    %c1_262 = arith.constant 1 : index
    %723 = memref.load %arg9[%c1_261, %c1_262] : memref<4x4xf32, #tpu.memory_space<smem>>
    %724 = vector.extract_strided_slice %7 {offsets = [1, 0, 0], sizes = [1, 9, 9], strides = [1, 1, 1]} : vector<4x9x9xf32> to vector<1x9x9xf32>
    %725 = vector.shape_cast %724 : vector<1x9x9xf32> to vector<9x9xf32>
    %726 = vector.broadcast %723 : f32 to vector<9x9xf32>
    %727 = arith.mulf %726, %725 : vector<9x9xf32>
    %728 = arith.addf %722, %727 : vector<9x9xf32>
    %c1_263 = arith.constant 1 : index
    %c2_264 = arith.constant 2 : index
    %729 = memref.load %arg9[%c1_263, %c2_264] : memref<4x4xf32, #tpu.memory_space<smem>>
    %730 = vector.extract_strided_slice %7 {offsets = [2, 0, 0], sizes = [1, 9, 9], strides = [1, 1, 1]} : vector<4x9x9xf32> to vector<1x9x9xf32>
    %731 = vector.shape_cast %730 : vector<1x9x9xf32> to vector<9x9xf32>
    %732 = vector.broadcast %729 : f32 to vector<9x9xf32>
    %733 = arith.mulf %732, %731 : vector<9x9xf32>
    %734 = arith.addf %728, %733 : vector<9x9xf32>
    %c1_265 = arith.constant 1 : index
    %c3_266 = arith.constant 3 : index
    %735 = memref.load %arg9[%c1_265, %c3_266] : memref<4x4xf32, #tpu.memory_space<smem>>
    %736 = vector.extract_strided_slice %7 {offsets = [3, 0, 0], sizes = [1, 9, 9], strides = [1, 1, 1]} : vector<4x9x9xf32> to vector<1x9x9xf32>
    %737 = vector.shape_cast %736 : vector<1x9x9xf32> to vector<9x9xf32>
    %738 = vector.broadcast %735 : f32 to vector<9x9xf32>
    %739 = arith.mulf %738, %737 : vector<9x9xf32>
    %740 = arith.addf %734, %739 : vector<9x9xf32>
    %cst_267 = arith.constant 0.000000e+00 : f32
    %741 = vector.broadcast %cst_267 : f32 to vector<9x9xf32>
    %742 = arith.maximumf %740, %741 : vector<9x9xf32>
    %743 = arith.mulf %742, %337 : vector<9x9xf32>
    %c2_268 = arith.constant 2 : index
    %744 = memref.load %arg10[%c2_268] : memref<4xf32, #tpu.memory_space<smem>>
    %745 = vector.broadcast %744 : f32 to vector<9x9xf32>
    %c2_269 = arith.constant 2 : index
    %c0_270 = arith.constant 0 : index
    %746 = memref.load %arg9[%c2_269, %c0_270] : memref<4x4xf32, #tpu.memory_space<smem>>
    %747 = vector.extract_strided_slice %7 {offsets = [0, 0, 0], sizes = [1, 9, 9], strides = [1, 1, 1]} : vector<4x9x9xf32> to vector<1x9x9xf32>
    %748 = vector.shape_cast %747 : vector<1x9x9xf32> to vector<9x9xf32>
    %749 = vector.broadcast %746 : f32 to vector<9x9xf32>
    %750 = arith.mulf %749, %748 : vector<9x9xf32>
    %751 = arith.addf %745, %750 : vector<9x9xf32>
    %c2_271 = arith.constant 2 : index
    %c1_272 = arith.constant 1 : index
    %752 = memref.load %arg9[%c2_271, %c1_272] : memref<4x4xf32, #tpu.memory_space<smem>>
    %753 = vector.extract_strided_slice %7 {offsets = [1, 0, 0], sizes = [1, 9, 9], strides = [1, 1, 1]} : vector<4x9x9xf32> to vector<1x9x9xf32>
    %754 = vector.shape_cast %753 : vector<1x9x9xf32> to vector<9x9xf32>
    %755 = vector.broadcast %752 : f32 to vector<9x9xf32>
    %756 = arith.mulf %755, %754 : vector<9x9xf32>
    %757 = arith.addf %751, %756 : vector<9x9xf32>
    %c2_273 = arith.constant 2 : index
    %c2_274 = arith.constant 2 : index
    %758 = memref.load %arg9[%c2_273, %c2_274] : memref<4x4xf32, #tpu.memory_space<smem>>
    %759 = vector.extract_strided_slice %7 {offsets = [2, 0, 0], sizes = [1, 9, 9], strides = [1, 1, 1]} : vector<4x9x9xf32> to vector<1x9x9xf32>
    %760 = vector.shape_cast %759 : vector<1x9x9xf32> to vector<9x9xf32>
    %761 = vector.broadcast %758 : f32 to vector<9x9xf32>
    %762 = arith.mulf %761, %760 : vector<9x9xf32>
    %763 = arith.addf %757, %762 : vector<9x9xf32>
    %c2_275 = arith.constant 2 : index
    %c3_276 = arith.constant 3 : index
    %764 = memref.load %arg9[%c2_275, %c3_276] : memref<4x4xf32, #tpu.memory_space<smem>>
    %765 = vector.extract_strided_slice %7 {offsets = [3, 0, 0], sizes = [1, 9, 9], strides = [1, 1, 1]} : vector<4x9x9xf32> to vector<1x9x9xf32>
    %766 = vector.shape_cast %765 : vector<1x9x9xf32> to vector<9x9xf32>
    %767 = vector.broadcast %764 : f32 to vector<9x9xf32>
    %768 = arith.mulf %767, %766 : vector<9x9xf32>
    %769 = arith.addf %763, %768 : vector<9x9xf32>
    %cst_277 = arith.constant 0.000000e+00 : f32
    %770 = vector.broadcast %cst_277 : f32 to vector<9x9xf32>
    %771 = arith.maximumf %769, %770 : vector<9x9xf32>
    %772 = arith.mulf %771, %337 : vector<9x9xf32>
    %c3_278 = arith.constant 3 : index
    %773 = memref.load %arg10[%c3_278] : memref<4xf32, #tpu.memory_space<smem>>
    %774 = vector.broadcast %773 : f32 to vector<9x9xf32>
    %c3_279 = arith.constant 3 : index
    %c0_280 = arith.constant 0 : index
    %775 = memref.load %arg9[%c3_279, %c0_280] : memref<4x4xf32, #tpu.memory_space<smem>>
    %776 = vector.extract_strided_slice %7 {offsets = [0, 0, 0], sizes = [1, 9, 9], strides = [1, 1, 1]} : vector<4x9x9xf32> to vector<1x9x9xf32>
    %777 = vector.shape_cast %776 : vector<1x9x9xf32> to vector<9x9xf32>
    %778 = vector.broadcast %775 : f32 to vector<9x9xf32>
    %779 = arith.mulf %778, %777 : vector<9x9xf32>
    %780 = arith.addf %774, %779 : vector<9x9xf32>
    %c3_281 = arith.constant 3 : index
    %c1_282 = arith.constant 1 : index
    %781 = memref.load %arg9[%c3_281, %c1_282] : memref<4x4xf32, #tpu.memory_space<smem>>
    %782 = vector.extract_strided_slice %7 {offsets = [1, 0, 0], sizes = [1, 9, 9], strides = [1, 1, 1]} : vector<4x9x9xf32> to vector<1x9x9xf32>
    %783 = vector.shape_cast %782 : vector<1x9x9xf32> to vector<9x9xf32>
    %784 = vector.broadcast %781 : f32 to vector<9x9xf32>
    %785 = arith.mulf %784, %783 : vector<9x9xf32>
    %786 = arith.addf %780, %785 : vector<9x9xf32>
    %c3_283 = arith.constant 3 : index
    %c2_284 = arith.constant 2 : index
    %787 = memref.load %arg9[%c3_283, %c2_284] : memref<4x4xf32, #tpu.memory_space<smem>>
    %788 = vector.extract_strided_slice %7 {offsets = [2, 0, 0], sizes = [1, 9, 9], strides = [1, 1, 1]} : vector<4x9x9xf32> to vector<1x9x9xf32>
    %789 = vector.shape_cast %788 : vector<1x9x9xf32> to vector<9x9xf32>
    %790 = vector.broadcast %787 : f32 to vector<9x9xf32>
    %791 = arith.mulf %790, %789 : vector<9x9xf32>
    %792 = arith.addf %786, %791 : vector<9x9xf32>
    %c3_285 = arith.constant 3 : index
    %c3_286 = arith.constant 3 : index
    %793 = memref.load %arg9[%c3_285, %c3_286] : memref<4x4xf32, #tpu.memory_space<smem>>
    %794 = vector.extract_strided_slice %7 {offsets = [3, 0, 0], sizes = [1, 9, 9], strides = [1, 1, 1]} : vector<4x9x9xf32> to vector<1x9x9xf32>
    %795 = vector.shape_cast %794 : vector<1x9x9xf32> to vector<9x9xf32>
    %796 = vector.broadcast %793 : f32 to vector<9x9xf32>
    %797 = arith.mulf %796, %795 : vector<9x9xf32>
    %798 = arith.addf %792, %797 : vector<9x9xf32>
    %cst_287 = arith.constant 0.000000e+00 : f32
    %799 = vector.broadcast %cst_287 : f32 to vector<9x9xf32>
    %800 = arith.maximumf %798, %799 : vector<9x9xf32>
    %801 = arith.mulf %800, %337 : vector<9x9xf32>
    %802 = vector.extract_strided_slice %366 {offsets = [0, 0], sizes = [8, 8], strides = [1, 1]} : vector<9x9xf32> to vector<8x8xf32>
    %803 = vector.extract_strided_slice %482 {offsets = [0, 0], sizes = [8, 8], strides = [1, 1]} : vector<9x9xf32> to vector<8x8xf32>
    %804 = vector.extract_strided_slice %366 {offsets = [0, 1], sizes = [8, 8], strides = [1, 1]} : vector<9x9xf32> to vector<8x8xf32>
    %805 = vector.extract_strided_slice %598 {offsets = [0, 0], sizes = [8, 8], strides = [1, 1]} : vector<9x9xf32> to vector<8x8xf32>
    %806 = vector.extract_strided_slice %714 {offsets = [0, 0], sizes = [8, 8], strides = [1, 1]} : vector<9x9xf32> to vector<8x8xf32>
    %807 = vector.extract_strided_slice %598 {offsets = [0, 1], sizes = [8, 8], strides = [1, 1]} : vector<9x9xf32> to vector<8x8xf32>
    %808 = vector.extract_strided_slice %366 {offsets = [1, 0], sizes = [8, 8], strides = [1, 1]} : vector<9x9xf32> to vector<8x8xf32>
    %809 = vector.extract_strided_slice %482 {offsets = [1, 0], sizes = [8, 8], strides = [1, 1]} : vector<9x9xf32> to vector<8x8xf32>
    %810 = vector.extract_strided_slice %366 {offsets = [1, 1], sizes = [8, 8], strides = [1, 1]} : vector<9x9xf32> to vector<8x8xf32>
    %c0_288 = arith.constant 0 : index
    %811 = memref.load %arg12[%c0_288] : memref<4xf32, #tpu.memory_space<smem>>
    %812 = vector.broadcast %811 : f32 to vector<8x8xf32>
    %c0_289 = arith.constant 0 : index
    %c0_290 = arith.constant 0 : index
    %813 = memref.load %arg11[%c0_289, %c0_290] : memref<4x9xf32, #tpu.memory_space<smem>>
    %814 = vector.broadcast %813 : f32 to vector<8x8xf32>
    %815 = arith.mulf %814, %802 : vector<8x8xf32>
    %816 = arith.addf %812, %815 : vector<8x8xf32>
    %c0_291 = arith.constant 0 : index
    %c1_292 = arith.constant 1 : index
    %817 = memref.load %arg11[%c0_291, %c1_292] : memref<4x9xf32, #tpu.memory_space<smem>>
    %818 = vector.broadcast %817 : f32 to vector<8x8xf32>
    %819 = arith.mulf %818, %803 : vector<8x8xf32>
    %820 = arith.addf %816, %819 : vector<8x8xf32>
    %c0_293 = arith.constant 0 : index
    %c2_294 = arith.constant 2 : index
    %821 = memref.load %arg11[%c0_293, %c2_294] : memref<4x9xf32, #tpu.memory_space<smem>>
    %822 = vector.broadcast %821 : f32 to vector<8x8xf32>
    %823 = arith.mulf %822, %804 : vector<8x8xf32>
    %824 = arith.addf %820, %823 : vector<8x8xf32>
    %c0_295 = arith.constant 0 : index
    %c3_296 = arith.constant 3 : index
    %825 = memref.load %arg11[%c0_295, %c3_296] : memref<4x9xf32, #tpu.memory_space<smem>>
    %826 = vector.broadcast %825 : f32 to vector<8x8xf32>
    %827 = arith.mulf %826, %805 : vector<8x8xf32>
    %828 = arith.addf %824, %827 : vector<8x8xf32>
    %c0_297 = arith.constant 0 : index
    %c4_298 = arith.constant 4 : index
    %829 = memref.load %arg11[%c0_297, %c4_298] : memref<4x9xf32, #tpu.memory_space<smem>>
    %830 = vector.broadcast %829 : f32 to vector<8x8xf32>
    %831 = arith.mulf %830, %806 : vector<8x8xf32>
    %832 = arith.addf %828, %831 : vector<8x8xf32>
    %c0_299 = arith.constant 0 : index
    %c5_300 = arith.constant 5 : index
    %833 = memref.load %arg11[%c0_299, %c5_300] : memref<4x9xf32, #tpu.memory_space<smem>>
    %834 = vector.broadcast %833 : f32 to vector<8x8xf32>
    %835 = arith.mulf %834, %807 : vector<8x8xf32>
    %836 = arith.addf %832, %835 : vector<8x8xf32>
    %c0_301 = arith.constant 0 : index
    %c6_302 = arith.constant 6 : index
    %837 = memref.load %arg11[%c0_301, %c6_302] : memref<4x9xf32, #tpu.memory_space<smem>>
    %838 = vector.broadcast %837 : f32 to vector<8x8xf32>
    %839 = arith.mulf %838, %808 : vector<8x8xf32>
    %840 = arith.addf %836, %839 : vector<8x8xf32>
    %c0_303 = arith.constant 0 : index
    %c7_304 = arith.constant 7 : index
    %841 = memref.load %arg11[%c0_303, %c7_304] : memref<4x9xf32, #tpu.memory_space<smem>>
    %842 = vector.broadcast %841 : f32 to vector<8x8xf32>
    %843 = arith.mulf %842, %809 : vector<8x8xf32>
    %844 = arith.addf %840, %843 : vector<8x8xf32>
    %c0_305 = arith.constant 0 : index
    %c8_306 = arith.constant 8 : index
    %845 = memref.load %arg11[%c0_305, %c8_306] : memref<4x9xf32, #tpu.memory_space<smem>>
    %846 = vector.broadcast %845 : f32 to vector<8x8xf32>
    %847 = arith.mulf %846, %810 : vector<8x8xf32>
    %848 = arith.addf %844, %847 : vector<8x8xf32>
    %849 = vector.extract_strided_slice %395 {offsets = [0, 0], sizes = [8, 8], strides = [1, 1]} : vector<9x9xf32> to vector<8x8xf32>
    %850 = vector.extract_strided_slice %511 {offsets = [0, 0], sizes = [8, 8], strides = [1, 1]} : vector<9x9xf32> to vector<8x8xf32>
    %851 = vector.extract_strided_slice %395 {offsets = [0, 1], sizes = [8, 8], strides = [1, 1]} : vector<9x9xf32> to vector<8x8xf32>
    %852 = vector.extract_strided_slice %627 {offsets = [0, 0], sizes = [8, 8], strides = [1, 1]} : vector<9x9xf32> to vector<8x8xf32>
    %853 = vector.extract_strided_slice %743 {offsets = [0, 0], sizes = [8, 8], strides = [1, 1]} : vector<9x9xf32> to vector<8x8xf32>
    %854 = vector.extract_strided_slice %627 {offsets = [0, 1], sizes = [8, 8], strides = [1, 1]} : vector<9x9xf32> to vector<8x8xf32>
    %855 = vector.extract_strided_slice %395 {offsets = [1, 0], sizes = [8, 8], strides = [1, 1]} : vector<9x9xf32> to vector<8x8xf32>
    %856 = vector.extract_strided_slice %511 {offsets = [1, 0], sizes = [8, 8], strides = [1, 1]} : vector<9x9xf32> to vector<8x8xf32>
    %857 = vector.extract_strided_slice %395 {offsets = [1, 1], sizes = [8, 8], strides = [1, 1]} : vector<9x9xf32> to vector<8x8xf32>
    %c1_307 = arith.constant 1 : index
    %858 = memref.load %arg12[%c1_307] : memref<4xf32, #tpu.memory_space<smem>>
    %859 = vector.broadcast %858 : f32 to vector<8x8xf32>
    %c1_308 = arith.constant 1 : index
    %c0_309 = arith.constant 0 : index
    %860 = memref.load %arg11[%c1_308, %c0_309] : memref<4x9xf32, #tpu.memory_space<smem>>
    %861 = vector.broadcast %860 : f32 to vector<8x8xf32>
    %862 = arith.mulf %861, %849 : vector<8x8xf32>
    %863 = arith.addf %859, %862 : vector<8x8xf32>
    %c1_310 = arith.constant 1 : index
    %c1_311 = arith.constant 1 : index
    %864 = memref.load %arg11[%c1_310, %c1_311] : memref<4x9xf32, #tpu.memory_space<smem>>
    %865 = vector.broadcast %864 : f32 to vector<8x8xf32>
    %866 = arith.mulf %865, %850 : vector<8x8xf32>
    %867 = arith.addf %863, %866 : vector<8x8xf32>
    %c1_312 = arith.constant 1 : index
    %c2_313 = arith.constant 2 : index
    %868 = memref.load %arg11[%c1_312, %c2_313] : memref<4x9xf32, #tpu.memory_space<smem>>
    %869 = vector.broadcast %868 : f32 to vector<8x8xf32>
    %870 = arith.mulf %869, %851 : vector<8x8xf32>
    %871 = arith.addf %867, %870 : vector<8x8xf32>
    %c1_314 = arith.constant 1 : index
    %c3_315 = arith.constant 3 : index
    %872 = memref.load %arg11[%c1_314, %c3_315] : memref<4x9xf32, #tpu.memory_space<smem>>
    %873 = vector.broadcast %872 : f32 to vector<8x8xf32>
    %874 = arith.mulf %873, %852 : vector<8x8xf32>
    %875 = arith.addf %871, %874 : vector<8x8xf32>
    %c1_316 = arith.constant 1 : index
    %c4_317 = arith.constant 4 : index
    %876 = memref.load %arg11[%c1_316, %c4_317] : memref<4x9xf32, #tpu.memory_space<smem>>
    %877 = vector.broadcast %876 : f32 to vector<8x8xf32>
    %878 = arith.mulf %877, %853 : vector<8x8xf32>
    %879 = arith.addf %875, %878 : vector<8x8xf32>
    %c1_318 = arith.constant 1 : index
    %c5_319 = arith.constant 5 : index
    %880 = memref.load %arg11[%c1_318, %c5_319] : memref<4x9xf32, #tpu.memory_space<smem>>
    %881 = vector.broadcast %880 : f32 to vector<8x8xf32>
    %882 = arith.mulf %881, %854 : vector<8x8xf32>
    %883 = arith.addf %879, %882 : vector<8x8xf32>
    %c1_320 = arith.constant 1 : index
    %c6_321 = arith.constant 6 : index
    %884 = memref.load %arg11[%c1_320, %c6_321] : memref<4x9xf32, #tpu.memory_space<smem>>
    %885 = vector.broadcast %884 : f32 to vector<8x8xf32>
    %886 = arith.mulf %885, %855 : vector<8x8xf32>
    %887 = arith.addf %883, %886 : vector<8x8xf32>
    %c1_322 = arith.constant 1 : index
    %c7_323 = arith.constant 7 : index
    %888 = memref.load %arg11[%c1_322, %c7_323] : memref<4x9xf32, #tpu.memory_space<smem>>
    %889 = vector.broadcast %888 : f32 to vector<8x8xf32>
    %890 = arith.mulf %889, %856 : vector<8x8xf32>
    %891 = arith.addf %887, %890 : vector<8x8xf32>
    %c1_324 = arith.constant 1 : index
    %c8_325 = arith.constant 8 : index
    %892 = memref.load %arg11[%c1_324, %c8_325] : memref<4x9xf32, #tpu.memory_space<smem>>
    %893 = vector.broadcast %892 : f32 to vector<8x8xf32>
    %894 = arith.mulf %893, %857 : vector<8x8xf32>
    %895 = arith.addf %891, %894 : vector<8x8xf32>
    %896 = vector.extract_strided_slice %424 {offsets = [0, 0], sizes = [8, 8], strides = [1, 1]} : vector<9x9xf32> to vector<8x8xf32>
    %897 = vector.extract_strided_slice %540 {offsets = [0, 0], sizes = [8, 8], strides = [1, 1]} : vector<9x9xf32> to vector<8x8xf32>
    %898 = vector.extract_strided_slice %424 {offsets = [0, 1], sizes = [8, 8], strides = [1, 1]} : vector<9x9xf32> to vector<8x8xf32>
    %899 = vector.extract_strided_slice %656 {offsets = [0, 0], sizes = [8, 8], strides = [1, 1]} : vector<9x9xf32> to vector<8x8xf32>
    %900 = vector.extract_strided_slice %772 {offsets = [0, 0], sizes = [8, 8], strides = [1, 1]} : vector<9x9xf32> to vector<8x8xf32>
    %901 = vector.extract_strided_slice %656 {offsets = [0, 1], sizes = [8, 8], strides = [1, 1]} : vector<9x9xf32> to vector<8x8xf32>
    %902 = vector.extract_strided_slice %424 {offsets = [1, 0], sizes = [8, 8], strides = [1, 1]} : vector<9x9xf32> to vector<8x8xf32>
    %903 = vector.extract_strided_slice %540 {offsets = [1, 0], sizes = [8, 8], strides = [1, 1]} : vector<9x9xf32> to vector<8x8xf32>
    %904 = vector.extract_strided_slice %424 {offsets = [1, 1], sizes = [8, 8], strides = [1, 1]} : vector<9x9xf32> to vector<8x8xf32>
    %c2_326 = arith.constant 2 : index
    %905 = memref.load %arg12[%c2_326] : memref<4xf32, #tpu.memory_space<smem>>
    %906 = vector.broadcast %905 : f32 to vector<8x8xf32>
    %c2_327 = arith.constant 2 : index
    %c0_328 = arith.constant 0 : index
    %907 = memref.load %arg11[%c2_327, %c0_328] : memref<4x9xf32, #tpu.memory_space<smem>>
    %908 = vector.broadcast %907 : f32 to vector<8x8xf32>
    %909 = arith.mulf %908, %896 : vector<8x8xf32>
    %910 = arith.addf %906, %909 : vector<8x8xf32>
    %c2_329 = arith.constant 2 : index
    %c1_330 = arith.constant 1 : index
    %911 = memref.load %arg11[%c2_329, %c1_330] : memref<4x9xf32, #tpu.memory_space<smem>>
    %912 = vector.broadcast %911 : f32 to vector<8x8xf32>
    %913 = arith.mulf %912, %897 : vector<8x8xf32>
    %914 = arith.addf %910, %913 : vector<8x8xf32>
    %c2_331 = arith.constant 2 : index
    %c2_332 = arith.constant 2 : index
    %915 = memref.load %arg11[%c2_331, %c2_332] : memref<4x9xf32, #tpu.memory_space<smem>>
    %916 = vector.broadcast %915 : f32 to vector<8x8xf32>
    %917 = arith.mulf %916, %898 : vector<8x8xf32>
    %918 = arith.addf %914, %917 : vector<8x8xf32>
    %c2_333 = arith.constant 2 : index
    %c3_334 = arith.constant 3 : index
    %919 = memref.load %arg11[%c2_333, %c3_334] : memref<4x9xf32, #tpu.memory_space<smem>>
    %920 = vector.broadcast %919 : f32 to vector<8x8xf32>
    %921 = arith.mulf %920, %899 : vector<8x8xf32>
    %922 = arith.addf %918, %921 : vector<8x8xf32>
    %c2_335 = arith.constant 2 : index
    %c4_336 = arith.constant 4 : index
    %923 = memref.load %arg11[%c2_335, %c4_336] : memref<4x9xf32, #tpu.memory_space<smem>>
    %924 = vector.broadcast %923 : f32 to vector<8x8xf32>
    %925 = arith.mulf %924, %900 : vector<8x8xf32>
    %926 = arith.addf %922, %925 : vector<8x8xf32>
    %c2_337 = arith.constant 2 : index
    %c5_338 = arith.constant 5 : index
    %927 = memref.load %arg11[%c2_337, %c5_338] : memref<4x9xf32, #tpu.memory_space<smem>>
    %928 = vector.broadcast %927 : f32 to vector<8x8xf32>
    %929 = arith.mulf %928, %901 : vector<8x8xf32>
    %930 = arith.addf %926, %929 : vector<8x8xf32>
    %c2_339 = arith.constant 2 : index
    %c6_340 = arith.constant 6 : index
    %931 = memref.load %arg11[%c2_339, %c6_340] : memref<4x9xf32, #tpu.memory_space<smem>>
    %932 = vector.broadcast %931 : f32 to vector<8x8xf32>
    %933 = arith.mulf %932, %902 : vector<8x8xf32>
    %934 = arith.addf %930, %933 : vector<8x8xf32>
    %c2_341 = arith.constant 2 : index
    %c7_342 = arith.constant 7 : index
    %935 = memref.load %arg11[%c2_341, %c7_342] : memref<4x9xf32, #tpu.memory_space<smem>>
    %936 = vector.broadcast %935 : f32 to vector<8x8xf32>
    %937 = arith.mulf %936, %903 : vector<8x8xf32>
    %938 = arith.addf %934, %937 : vector<8x8xf32>
    %c2_343 = arith.constant 2 : index
    %c8_344 = arith.constant 8 : index
    %939 = memref.load %arg11[%c2_343, %c8_344] : memref<4x9xf32, #tpu.memory_space<smem>>
    %940 = vector.broadcast %939 : f32 to vector<8x8xf32>
    %941 = arith.mulf %940, %904 : vector<8x8xf32>
    %942 = arith.addf %938, %941 : vector<8x8xf32>
    %943 = vector.extract_strided_slice %453 {offsets = [0, 0], sizes = [8, 8], strides = [1, 1]} : vector<9x9xf32> to vector<8x8xf32>
    %944 = vector.extract_strided_slice %569 {offsets = [0, 0], sizes = [8, 8], strides = [1, 1]} : vector<9x9xf32> to vector<8x8xf32>
    %945 = vector.extract_strided_slice %453 {offsets = [0, 1], sizes = [8, 8], strides = [1, 1]} : vector<9x9xf32> to vector<8x8xf32>
    %946 = vector.extract_strided_slice %685 {offsets = [0, 0], sizes = [8, 8], strides = [1, 1]} : vector<9x9xf32> to vector<8x8xf32>
    %947 = vector.extract_strided_slice %801 {offsets = [0, 0], sizes = [8, 8], strides = [1, 1]} : vector<9x9xf32> to vector<8x8xf32>
    %948 = vector.extract_strided_slice %685 {offsets = [0, 1], sizes = [8, 8], strides = [1, 1]} : vector<9x9xf32> to vector<8x8xf32>
    %949 = vector.extract_strided_slice %453 {offsets = [1, 0], sizes = [8, 8], strides = [1, 1]} : vector<9x9xf32> to vector<8x8xf32>
    %950 = vector.extract_strided_slice %569 {offsets = [1, 0], sizes = [8, 8], strides = [1, 1]} : vector<9x9xf32> to vector<8x8xf32>
    %951 = vector.extract_strided_slice %453 {offsets = [1, 1], sizes = [8, 8], strides = [1, 1]} : vector<9x9xf32> to vector<8x8xf32>
    %c3_345 = arith.constant 3 : index
    %952 = memref.load %arg12[%c3_345] : memref<4xf32, #tpu.memory_space<smem>>
    %953 = vector.broadcast %952 : f32 to vector<8x8xf32>
    %c3_346 = arith.constant 3 : index
    %c0_347 = arith.constant 0 : index
    %954 = memref.load %arg11[%c3_346, %c0_347] : memref<4x9xf32, #tpu.memory_space<smem>>
    %955 = vector.broadcast %954 : f32 to vector<8x8xf32>
    %956 = arith.mulf %955, %943 : vector<8x8xf32>
    %957 = arith.addf %953, %956 : vector<8x8xf32>
    %c3_348 = arith.constant 3 : index
    %c1_349 = arith.constant 1 : index
    %958 = memref.load %arg11[%c3_348, %c1_349] : memref<4x9xf32, #tpu.memory_space<smem>>
    %959 = vector.broadcast %958 : f32 to vector<8x8xf32>
    %960 = arith.mulf %959, %944 : vector<8x8xf32>
    %961 = arith.addf %957, %960 : vector<8x8xf32>
    %c3_350 = arith.constant 3 : index
    %c2_351 = arith.constant 2 : index
    %962 = memref.load %arg11[%c3_350, %c2_351] : memref<4x9xf32, #tpu.memory_space<smem>>
    %963 = vector.broadcast %962 : f32 to vector<8x8xf32>
    %964 = arith.mulf %963, %945 : vector<8x8xf32>
    %965 = arith.addf %961, %964 : vector<8x8xf32>
    %c3_352 = arith.constant 3 : index
    %c3_353 = arith.constant 3 : index
    %966 = memref.load %arg11[%c3_352, %c3_353] : memref<4x9xf32, #tpu.memory_space<smem>>
    %967 = vector.broadcast %966 : f32 to vector<8x8xf32>
    %968 = arith.mulf %967, %946 : vector<8x8xf32>
    %969 = arith.addf %965, %968 : vector<8x8xf32>
    %c3_354 = arith.constant 3 : index
    %c4_355 = arith.constant 4 : index
    %970 = memref.load %arg11[%c3_354, %c4_355] : memref<4x9xf32, #tpu.memory_space<smem>>
    %971 = vector.broadcast %970 : f32 to vector<8x8xf32>
    %972 = arith.mulf %971, %947 : vector<8x8xf32>
    %973 = arith.addf %969, %972 : vector<8x8xf32>
    %c3_356 = arith.constant 3 : index
    %c5_357 = arith.constant 5 : index
    %974 = memref.load %arg11[%c3_356, %c5_357] : memref<4x9xf32, #tpu.memory_space<smem>>
    %975 = vector.broadcast %974 : f32 to vector<8x8xf32>
    %976 = arith.mulf %975, %948 : vector<8x8xf32>
    %977 = arith.addf %973, %976 : vector<8x8xf32>
    %c3_358 = arith.constant 3 : index
    %c6_359 = arith.constant 6 : index
    %978 = memref.load %arg11[%c3_358, %c6_359] : memref<4x9xf32, #tpu.memory_space<smem>>
    %979 = vector.broadcast %978 : f32 to vector<8x8xf32>
    %980 = arith.mulf %979, %949 : vector<8x8xf32>
    %981 = arith.addf %977, %980 : vector<8x8xf32>
    %c3_360 = arith.constant 3 : index
    %c7_361 = arith.constant 7 : index
    %982 = memref.load %arg11[%c3_360, %c7_361] : memref<4x9xf32, #tpu.memory_space<smem>>
    %983 = vector.broadcast %982 : f32 to vector<8x8xf32>
    %984 = arith.mulf %983, %950 : vector<8x8xf32>
    %985 = arith.addf %981, %984 : vector<8x8xf32>
    %c3_362 = arith.constant 3 : index
    %c8_363 = arith.constant 8 : index
    %986 = memref.load %arg11[%c3_362, %c8_363] : memref<4x9xf32, #tpu.memory_space<smem>>
    %987 = vector.broadcast %986 : f32 to vector<8x8xf32>
    %988 = arith.mulf %987, %951 : vector<8x8xf32>
    %989 = arith.addf %985, %988 : vector<8x8xf32>
    %c0_364 = arith.constant 0 : index
    %990 = memref.load %arg14[%c0_364] : memref<4xf32, #tpu.memory_space<smem>>
    %991 = vector.broadcast %990 : f32 to vector<8x8xf32>
    %c0_365 = arith.constant 0 : index
    %c0_366 = arith.constant 0 : index
    %992 = memref.load %arg13[%c0_365, %c0_366] : memref<4x4xf32, #tpu.memory_space<smem>>
    %993 = vector.broadcast %992 : f32 to vector<8x8xf32>
    %994 = arith.mulf %993, %848 : vector<8x8xf32>
    %995 = arith.addf %991, %994 : vector<8x8xf32>
    %c0_367 = arith.constant 0 : index
    %c1_368 = arith.constant 1 : index
    %996 = memref.load %arg13[%c0_367, %c1_368] : memref<4x4xf32, #tpu.memory_space<smem>>
    %997 = vector.broadcast %996 : f32 to vector<8x8xf32>
    %998 = arith.mulf %997, %895 : vector<8x8xf32>
    %999 = arith.addf %995, %998 : vector<8x8xf32>
    %c0_369 = arith.constant 0 : index
    %c2_370 = arith.constant 2 : index
    %1000 = memref.load %arg13[%c0_369, %c2_370] : memref<4x4xf32, #tpu.memory_space<smem>>
    %1001 = vector.broadcast %1000 : f32 to vector<8x8xf32>
    %1002 = arith.mulf %1001, %942 : vector<8x8xf32>
    %1003 = arith.addf %999, %1002 : vector<8x8xf32>
    %c0_371 = arith.constant 0 : index
    %c3_372 = arith.constant 3 : index
    %1004 = memref.load %arg13[%c0_371, %c3_372] : memref<4x4xf32, #tpu.memory_space<smem>>
    %1005 = vector.broadcast %1004 : f32 to vector<8x8xf32>
    %1006 = arith.mulf %1005, %989 : vector<8x8xf32>
    %1007 = arith.addf %1003, %1006 : vector<8x8xf32>
    %cst_373 = arith.constant 0.000000e+00 : f32
    %1008 = vector.broadcast %cst_373 : f32 to vector<8x8xf32>
    %1009 = arith.maximumf %1007, %1008 : vector<8x8xf32>
    %c1_374 = arith.constant 1 : index
    %1010 = memref.load %arg14[%c1_374] : memref<4xf32, #tpu.memory_space<smem>>
    %1011 = vector.broadcast %1010 : f32 to vector<8x8xf32>
    %c1_375 = arith.constant 1 : index
    %c0_376 = arith.constant 0 : index
    %1012 = memref.load %arg13[%c1_375, %c0_376] : memref<4x4xf32, #tpu.memory_space<smem>>
    %1013 = vector.broadcast %1012 : f32 to vector<8x8xf32>
    %1014 = arith.mulf %1013, %848 : vector<8x8xf32>
    %1015 = arith.addf %1011, %1014 : vector<8x8xf32>
    %c1_377 = arith.constant 1 : index
    %c1_378 = arith.constant 1 : index
    %1016 = memref.load %arg13[%c1_377, %c1_378] : memref<4x4xf32, #tpu.memory_space<smem>>
    %1017 = vector.broadcast %1016 : f32 to vector<8x8xf32>
    %1018 = arith.mulf %1017, %895 : vector<8x8xf32>
    %1019 = arith.addf %1015, %1018 : vector<8x8xf32>
    %c1_379 = arith.constant 1 : index
    %c2_380 = arith.constant 2 : index
    %1020 = memref.load %arg13[%c1_379, %c2_380] : memref<4x4xf32, #tpu.memory_space<smem>>
    %1021 = vector.broadcast %1020 : f32 to vector<8x8xf32>
    %1022 = arith.mulf %1021, %942 : vector<8x8xf32>
    %1023 = arith.addf %1019, %1022 : vector<8x8xf32>
    %c1_381 = arith.constant 1 : index
    %c3_382 = arith.constant 3 : index
    %1024 = memref.load %arg13[%c1_381, %c3_382] : memref<4x4xf32, #tpu.memory_space<smem>>
    %1025 = vector.broadcast %1024 : f32 to vector<8x8xf32>
    %1026 = arith.mulf %1025, %989 : vector<8x8xf32>
    %1027 = arith.addf %1023, %1026 : vector<8x8xf32>
    %cst_383 = arith.constant 0.000000e+00 : f32
    %1028 = vector.broadcast %cst_383 : f32 to vector<8x8xf32>
    %1029 = arith.maximumf %1027, %1028 : vector<8x8xf32>
    %c2_384 = arith.constant 2 : index
    %1030 = memref.load %arg14[%c2_384] : memref<4xf32, #tpu.memory_space<smem>>
    %1031 = vector.broadcast %1030 : f32 to vector<8x8xf32>
    %c2_385 = arith.constant 2 : index
    %c0_386 = arith.constant 0 : index
    %1032 = memref.load %arg13[%c2_385, %c0_386] : memref<4x4xf32, #tpu.memory_space<smem>>
    %1033 = vector.broadcast %1032 : f32 to vector<8x8xf32>
    %1034 = arith.mulf %1033, %848 : vector<8x8xf32>
    %1035 = arith.addf %1031, %1034 : vector<8x8xf32>
    %c2_387 = arith.constant 2 : index
    %c1_388 = arith.constant 1 : index
    %1036 = memref.load %arg13[%c2_387, %c1_388] : memref<4x4xf32, #tpu.memory_space<smem>>
    %1037 = vector.broadcast %1036 : f32 to vector<8x8xf32>
    %1038 = arith.mulf %1037, %895 : vector<8x8xf32>
    %1039 = arith.addf %1035, %1038 : vector<8x8xf32>
    %c2_389 = arith.constant 2 : index
    %c2_390 = arith.constant 2 : index
    %1040 = memref.load %arg13[%c2_389, %c2_390] : memref<4x4xf32, #tpu.memory_space<smem>>
    %1041 = vector.broadcast %1040 : f32 to vector<8x8xf32>
    %1042 = arith.mulf %1041, %942 : vector<8x8xf32>
    %1043 = arith.addf %1039, %1042 : vector<8x8xf32>
    %c2_391 = arith.constant 2 : index
    %c3_392 = arith.constant 3 : index
    %1044 = memref.load %arg13[%c2_391, %c3_392] : memref<4x4xf32, #tpu.memory_space<smem>>
    %1045 = vector.broadcast %1044 : f32 to vector<8x8xf32>
    %1046 = arith.mulf %1045, %989 : vector<8x8xf32>
    %1047 = arith.addf %1043, %1046 : vector<8x8xf32>
    %cst_393 = arith.constant 0.000000e+00 : f32
    %1048 = vector.broadcast %cst_393 : f32 to vector<8x8xf32>
    %1049 = arith.maximumf %1047, %1048 : vector<8x8xf32>
    %c3_394 = arith.constant 3 : index
    %1050 = memref.load %arg14[%c3_394] : memref<4xf32, #tpu.memory_space<smem>>
    %1051 = vector.broadcast %1050 : f32 to vector<8x8xf32>
    %c3_395 = arith.constant 3 : index
    %c0_396 = arith.constant 0 : index
    %1052 = memref.load %arg13[%c3_395, %c0_396] : memref<4x4xf32, #tpu.memory_space<smem>>
    %1053 = vector.broadcast %1052 : f32 to vector<8x8xf32>
    %1054 = arith.mulf %1053, %848 : vector<8x8xf32>
    %1055 = arith.addf %1051, %1054 : vector<8x8xf32>
    %c3_397 = arith.constant 3 : index
    %c1_398 = arith.constant 1 : index
    %1056 = memref.load %arg13[%c3_397, %c1_398] : memref<4x4xf32, #tpu.memory_space<smem>>
    %1057 = vector.broadcast %1056 : f32 to vector<8x8xf32>
    %1058 = arith.mulf %1057, %895 : vector<8x8xf32>
    %1059 = arith.addf %1055, %1058 : vector<8x8xf32>
    %c3_399 = arith.constant 3 : index
    %c2_400 = arith.constant 2 : index
    %1060 = memref.load %arg13[%c3_399, %c2_400] : memref<4x4xf32, #tpu.memory_space<smem>>
    %1061 = vector.broadcast %1060 : f32 to vector<8x8xf32>
    %1062 = arith.mulf %1061, %942 : vector<8x8xf32>
    %1063 = arith.addf %1059, %1062 : vector<8x8xf32>
    %c3_401 = arith.constant 3 : index
    %c3_402 = arith.constant 3 : index
    %1064 = memref.load %arg13[%c3_401, %c3_402] : memref<4x4xf32, #tpu.memory_space<smem>>
    %1065 = vector.broadcast %1064 : f32 to vector<8x8xf32>
    %1066 = arith.mulf %1065, %989 : vector<8x8xf32>
    %1067 = arith.addf %1063, %1066 : vector<8x8xf32>
    %cst_403 = arith.constant 0.000000e+00 : f32
    %1068 = vector.broadcast %cst_403 : f32 to vector<8x8xf32>
    %1069 = arith.maximumf %1067, %1068 : vector<8x8xf32>
    %1070 = vector.shape_cast %247 : vector<8x8xf32> to vector<1x8x8xf32>
    %1071 = vector.shape_cast %1009 : vector<8x8xf32> to vector<1x8x8xf32>
    %1072 = vector.shape_cast %267 : vector<8x8xf32> to vector<1x8x8xf32>
    %1073 = vector.shape_cast %1029 : vector<8x8xf32> to vector<1x8x8xf32>
    %1074 = vector.shape_cast %287 : vector<8x8xf32> to vector<1x8x8xf32>
    %1075 = vector.shape_cast %1049 : vector<8x8xf32> to vector<1x8x8xf32>
    %1076 = vector.shape_cast %307 : vector<8x8xf32> to vector<1x8x8xf32>
    %1077 = vector.shape_cast %1069 : vector<8x8xf32> to vector<1x8x8xf32>
    %1078 = tpu.concatenate %1070, %1071, %1072, %1073, %1074, %1075, %1076, %1077 in 0 : vector<1x8x8xf32>, vector<1x8x8xf32>, vector<1x8x8xf32>, vector<1x8x8xf32>, vector<1x8x8xf32>, vector<1x8x8xf32>, vector<1x8x8xf32>, vector<1x8x8xf32> -> vector<8x8x8xf32>
    %c0_404 = arith.constant 0 : index
    %c0_405 = arith.constant 0 : index
    %c0_406 = arith.constant 0 : index
    %c0_407 = arith.constant 0 : index
    %1079 = vector.load %arg15[%c0_404, %c0_405, %c0_406, %c0_407] : memref<1x8x8x8xf32, #tpu.memory_space<vmem>>, vector<1x8x8x8xf32>
    %1080 = vector.shape_cast %1079 : vector<1x8x8x8xf32> to vector<8x8x8xf32>
    %1081 = vector.shape_cast %1078 : vector<8x8x8xf32> to vector<1x8x8x8xf32>
    tpu.vector_store %arg15[%c0_404, %c0_405, %c0_406, %c0_407], %1081 {strides = array<i32>} : memref<1x8x8x8xf32, #tpu.memory_space<vmem>>, vector<1x8x8x8xf32>,
    return
  }
  func.func @transform_0(%arg0: i32) -> (i32, i32, i32, i32) {
    %c0_i32 = arith.constant 0 : i32
    %c0_i32_0 = arith.constant 0 : i32
    %c0_i32_1 = arith.constant 0 : i32
    %c0_i32_2 = arith.constant 0 : i32
    return %arg0, %c0_i32, %c0_i32_0, %c0_i32_1 : i32, i32, i32, i32
  }
  func.func @transform_1(%arg0: i32) -> (i32, i32, i32, i32) {
    %c0_i32 = arith.constant 0 : i32
    %c0_i32_0 = arith.constant 0 : i32
    %c0_i32_1 = arith.constant 0 : i32
    %c0_i32_2 = arith.constant 0 : i32
    return %arg0, %c0_i32, %c0_i32_0, %c0_i32_1 : i32, i32, i32, i32
  }
  func.func @transform_2(%arg0: i32) -> (i32, i32, i32, i32) {
    %c0_i32 = arith.constant 0 : i32
    %c0_i32_0 = arith.constant 0 : i32
    %c0_i32_1 = arith.constant 0 : i32
    %c0_i32_2 = arith.constant 0 : i32
    return %arg0, %c0_i32, %c0_i32_0, %c0_i32_1 : i32, i32, i32, i32
  }
  func.func @transform_3(%arg0: i32) -> (i32, i32, i32, i32) {
    %c0_i32 = arith.constant 0 : i32
    %c0_i32_0 = arith.constant 0 : i32
    %c0_i32_1 = arith.constant 0 : i32
    %c0_i32_2 = arith.constant 0 : i32
    return %arg0, %c0_i32, %c0_i32_0, %c0_i32_1 : i32, i32, i32, i32
  }
  func.func @transform_4(%arg0: i32) -> (i32, i32) {
    %c0_i32 = arith.constant 0 : i32
    %c0_i32_0 = arith.constant 0 : i32
    %c0_i32_1 = arith.constant 0 : i32
    return %c0_i32, %c0_i32_0 : i32, i32
  }
  func.func @transform_5(%arg0: i32) -> i32 {
    %c0_i32 = arith.constant 0 : i32
    %c0_i32_0 = arith.constant 0 : i32
    return %c0_i32 : i32
  }
  func.func @transform_6(%arg0: i32) -> (i32, i32) {
    %c0_i32 = arith.constant 0 : i32
    %c0_i32_0 = arith.constant 0 : i32
    %c0_i32_1 = arith.constant 0 : i32
    return %c0_i32, %c0_i32_0 : i32, i32
  }
  func.func @transform_7(%arg0: i32) -> i32 {
    %c0_i32 = arith.constant 0 : i32
    %c0_i32_0 = arith.constant 0 : i32
    return %c0_i32 : i32
  }
  func.func @transform_8(%arg0: i32) -> (i32, i32) {
    %c0_i32 = arith.constant 0 : i32
    %c0_i32_0 = arith.constant 0 : i32
    %c0_i32_1 = arith.constant 0 : i32
    return %c0_i32, %c0_i32_0 : i32, i32
  }
  func.func @transform_9(%arg0: i32) -> i32 {
    %c0_i32 = arith.constant 0 : i32
    %c0_i32_0 = arith.constant 0 : i32
    return %c0_i32 : i32
  }
  func.func @transform_10(%arg0: i32) -> (i32, i32) {
    %c0_i32 = arith.constant 0 : i32
    %c0_i32_0 = arith.constant 0 : i32
    %c0_i32_1 = arith.constant 0 : i32
    return %c0_i32, %c0_i32_0 : i32, i32
  }
  func.func @transform_11(%arg0: i32) -> i32 {
    %c0_i32 = arith.constant 0 : i32
    %c0_i32_0 = arith.constant 0 : i32
    return %c0_i32 : i32
  }
  func.func @transform_12(%arg0: i32) -> (i32, i32) {
    %c0_i32 = arith.constant 0 : i32
    %c0_i32_0 = arith.constant 0 : i32
    %c0_i32_1 = arith.constant 0 : i32
    return %c0_i32, %c0_i32_0 : i32, i32
  }
  func.func @transform_13(%arg0: i32) -> i32 {
    %c0_i32 = arith.constant 0 : i32
    %c0_i32_0 = arith.constant 0 : i32
    return %c0_i32 : i32
  }
  func.func @transform_14(%arg0: i32) -> (i32, i32, i32, i32) {
    %c0_i32 = arith.constant 0 : i32
    %c0_i32_0 = arith.constant 0 : i32
    %c0_i32_1 = arith.constant 0 : i32
    %c0_i32_2 = arith.constant 0 : i32
    return %arg0, %c0_i32, %c0_i32_0, %c0_i32_1 : i32, i32, i32, i32
  }
}

</mosaic_0001>

<llo_original>
// kernel: tpu_custom_call.1
$region0: #{tpu_custom_call.1}
  #allocation0 [shape = 'u32[]', space=smem, size = 0x4, offset = 0x4, fixed_abs, tag = 'smem constant byte address 0x4 - core index']
  #allocation1 [shape = 'u32[144,128]{1,0:T(1,128)}', space=vmem, size = 0x12000, scoped, tag = 'internal scratch']
  %s0 = inlined_call_operand.vmem [shape: f32[2,4,9,9], index: 0, kind: input, shape index: {}]
  %s1 = inlined_call_operand.vmem [shape: f32[2,4,9,9], index: 1, kind: input, shape index: {}]
  %s2 = inlined_call_operand.vmem [shape: f32[2,4,9,9], index: 2, kind: input, shape index: {}]
  %s3 = inlined_call_operand.vmem [shape: f32[2,4,9,9], index: 3, kind: input, shape index: {}]
  %s4 = inlined_call_operand.vmem [shape: f32[4,9], index: 4, kind: input, shape index: {}]
  %s5 = inlined_call_operand.vmem [shape: f32[4], index: 5, kind: input, shape index: {}]
  %s6 = inlined_call_operand.vmem [shape: f32[4,4], index: 6, kind: input, shape index: {}]
  %s7 = inlined_call_operand.vmem [shape: f32[4], index: 7, kind: input, shape index: {}]
  %s8 = inlined_call_operand.vmem [shape: f32[4,4], index: 8, kind: input, shape index: {}]
  %s9 = inlined_call_operand.vmem [shape: f32[4], index: 9, kind: input, shape index: {}]
  %s10 = inlined_call_operand.vmem [shape: f32[4,9], index: 10, kind: input, shape index: {}]
  %s11 = inlined_call_operand.vmem [shape: f32[4], index: 11, kind: input, shape index: {}]
  %s12 = inlined_call_operand.vmem [shape: f32[4,4], index: 12, kind: input, shape index: {}]
  %s13 = inlined_call_operand.vmem [shape: f32[4], index: 13, kind: input, shape index: {}]
  %s14 = inlined_call_operand.hbm [shape: f32[2,8,8,8], index: 14, kind: output, shape index: {}]
  %s15 = sld [smem:[#allocation0]]
  $region129: #{tpu_custom_call.1} parent=0
    _
  %s17 = ssub.s32 1, %s15
  %s18 = scalar_select 0, %s17, %s15
  $region1: #{tpu_custom_call.1} parent=0
    #allocation2 [shape = 'u8[2048]{0}', space=smem, size = 0x800, scoped, tag = 'input window, operand 4, single buffered']
    #allocation3 [shape = 's32[2]{0}', space=sflag, size = 0x8, scoped, tag = 'scoped memory for tpu_custom_call.1']
    #allocation4 [shape = 's32[2]{0}', space=sflag, size = 0x8, scoped, tag = 'scoped memory for tpu_custom_call.1']
    #allocation5 [shape = 'u8[512]{0}', space=smem, size = 0x200, scoped, tag = 'input window, operand 5, single buffered']
    #allocation6 [shape = 's32[1]{0}', space=sflag, size = 0x4, scoped, tag = 'scoped memory for tpu_custom_call.1']
    #allocation7 [shape = 'u8[2048]{0}', space=smem, size = 0x800, scoped, tag = 'input window, operand 6, single buffered']
    #allocation8 [shape = 'u8[512]{0}', space=smem, size = 0x200, scoped, tag = 'input window, operand 7, single buffered']
    #allocation9 [shape = 's32[1]{0}', space=sflag, size = 0x4, scoped, tag = 'scoped memory for tpu_custom_call.1']
    #allocation10 [shape = 'u8[2048]{0}', space=smem, size = 0x800, scoped, tag = 'input window, operand 8, single buffered']
    #allocation11 [shape = 'u8[512]{0}', space=smem, size = 0x200, scoped, tag = 'input window, operand 9, single buffered']
    #allocation12 [shape = 's32[1]{0}', space=sflag, size = 0x4, scoped, tag = 'scoped memory for tpu_custom_call.1']
    #allocation13 [shape = 'u8[2048]{0}', space=smem, size = 0x800, scoped, tag = 'input window, operand 10, single buffered']
    #allocation14 [shape = 'u8[512]{0}', space=smem, size = 0x200, scoped, tag = 'input window, operand 11, single buffered']
    #allocation15 [shape = 's32[1]{0}', space=sflag, size = 0x4, scoped, tag = 'scoped memory for tpu_custom_call.1']
    #allocation16 [shape = 'u8[2048]{0}', space=smem, size = 0x800, scoped, tag = 'input window, operand 12, single buffered']
    #allocation17 [shape = 'u8[512]{0}', space=smem, size = 0x200, scoped, tag = 'input window, operand 13, single buffered']
    #allocation18 [shape = 's32[1]{0}', space=sflag, size = 0x4, scoped, tag = 'scoped memory for tpu_custom_call.1']
    #allocation19 [shape = 'u8[65536]{0}', space=vmem, size = 0x10000, scoped, tag = 'output window, operand 0']
    %19 = vsyncpa [#allocation4], 0
    %20 = vsyncpa [#allocation6], 0
    %21 = vsyncpa [#allocation9], 0
    %22 = vsyncpa [#allocation12], 0
    %23 = vsyncpa [#allocation15], 0
    %24 = vsyncpa [#allocation18], 0
    %25 = vsyncpa [#allocation3], 0
    %s26 = scalar_lea.sflag [#allocation3], 1
    %27 = vsyncpa %s26, 0
    loop: start=0, step=1, limit=4
    $region2: #{tpu_custom_call.1} parent=1 // loop_pre_header
      _
    $region3: #{tpu_custom_call.1} parent=1 // loop_header
      %s29 = sphi 0, %s33
      %p30 = scmp.ge.s32.totalorder %s29, 4
      %s39 = sphi 0, %s41
      %s42 = sphi 0, %s39
      %s43 = sphi 0, %s42
      %s59 = sphi 0, %s43
      %s65 = sphi 0, %s67
      %s68 = sphi 0, %s65
      %s69 = sphi 0, %s68
      %s85 = sphi 0, %s69
      %s91 = sphi 0, %s93
      %s94 = sphi 0, %s91
      %s95 = sphi 0, %s94
      %s111 = sphi 0, %s95
      %s117 = sphi 0, %s119
      %s120 = sphi 0, %s117
      %s121 = sphi 0, %s120
      %s137 = sphi 0, %s121
      %s141 = sphi 0, %s141
      %s143 = sphi 0, %s141
      %s144 = sphi 0, %s143
      %s158 = sphi 0, %s144
      %s162 = sphi 0, %s162
      %s164 = sphi 0, %s162
      %s165 = sphi 0, %s164
      %s179 = sphi 0, %s165
      %s183 = sphi 0, %s183
      %s185 = sphi 0, %s183
      %s186 = sphi 0, %s185
      %s200 = sphi 0, %s186
      %s204 = sphi 0, %s204
      %s206 = sphi 0, %s204
      %s207 = sphi 0, %s206
      %s221 = sphi 0, %s207
      %s225 = sphi 0, %s225
      %s227 = sphi 0, %s225
      %s228 = sphi 0, %s227
      %s242 = sphi 0, %s228
      %s246 = sphi 0, %s246
      %s248 = sphi 0, %s246
      %s249 = sphi 0, %s248
      %s263 = sphi 0, %s249
      %s267 = sphi 0, %s267
      %s269 = sphi 0, %s267
      %s270 = sphi 0, %s269
      %s284 = sphi 0, %s270
      %s288 = sphi 0, %s288
      %s290 = sphi 0, %s288
      %s291 = sphi 0, %s290
      %s305 = sphi 0, %s291
      %s309 = sphi 0, %s309
      %s311 = sphi 0, %s309
      %s312 = sphi 0, %s311
      %s326 = sphi 0, %s312
      %s330 = sphi 0, %s330
      %s332 = sphi 0, %s330
      %s333 = sphi 0, %s332
      %s347 = sphi 0, %s333
      %s353 = sphi 0, %s355
      %s356 = sphi 0, %s353
      %s357 = sphi 0, %s356
      %s373 = sphi 0, %s357
    $region4: #{tpu_custom_call.1} parent=1 // loop_header_branch
      %32 = sbr.rel (%p30) target = $region8
    $region5: #{tpu_custom_call.1} parent=1 // loop_body
      %s34 = ssub.s32 %s29, 1
      %s35 = ssub.s32 %s29, 2
      %s36 = sadd.s32 %s29, 1
      %s37 = ssub.s32 %s29, %s36
      %p38 = scmp.eq.s32.totalorder %s37, 0
      %s40 = sadd.s32 %s39, 1
      %s41 = scalar_select %p38, %s39, %s40
      %p44 = pneg %p38
      %p45 = scmp.eq.s32.totalorder %s29, 1
      %p46 = por %p44, %p45
      %p47 = scmp.ne.s32.totalorder %s39, %s42
      %p48 = scmp.eq.s32.totalorder %s29, 0
      %p49 = por %p47, %p48
      %p50 = scmp.ne.s32.totalorder %s39, %s42
      %p51 = scmp.eq.s32.totalorder %s34, 1
      %p52 = por %p50, %p51
      %p53 = scmp.ne.s32.totalorder %s42, %s43
      %p54 = scmp.eq.s32.totalorder %s34, 0
      %p55 = por %p53, %p54
      %p56 = scmp.ne.s32.totalorder %s42, %s43
      %p57 = scmp.eq.s32.totalorder %s35, 1
      %p58 = por %p56, %p57
      %p60 = scmp.ne.s32.totalorder %s43, %s59
      %p61 = scmp.eq.s32.totalorder %s35, 0
      %p62 = por %p60, %p61
      %s63 = ssub.s32 %s29, %s36
      %p64 = scmp.eq.s32.totalorder %s63, 0
      %s66 = sadd.s32 %s65, 1
      %s67 = scalar_select %p64, %s65, %s66
      %p70 = pneg %p64
      %p71 = scmp.eq.s32.totalorder %s29, 1
      %p72 = por %p70, %p71
      %p73 = scmp.ne.s32.totalorder %s65, %s68
      %p74 = scmp.eq.s32.totalorder %s29, 0
      %p75 = por %p73, %p74
      %p76 = scmp.ne.s32.totalorder %s65, %s68
      %p77 = scmp.eq.s32.totalorder %s34, 1
      %p78 = por %p76, %p77
      %p79 = scmp.ne.s32.totalorder %s68, %s69
      %p80 = scmp.eq.s32.totalorder %s34, 0
      %p81 = por %p79, %p80
      %p82 = scmp.ne.s32.totalorder %s68, %s69
      %p83 = scmp.eq.s32.totalorder %s35, 1
      %p84 = por %p82, %p83
      %p86 = scmp.ne.s32.totalorder %s69, %s85
      %p87 = scmp.eq.s32.totalorder %s35, 0
      %p88 = por %p86, %p87
      %s89 = ssub.s32 %s29, %s36
      %p90 = scmp.eq.s32.totalorder %s89, 0
      %s92 = sadd.s32 %s91, 1
      %s93 = scalar_select %p90, %s91, %s92
      %p96 = pneg %p90
      %p97 = scmp.eq.s32.totalorder %s29, 1
      %p98 = por %p96, %p97
      %p99 = scmp.ne.s32.totalorder %s91, %s94
      %p100 = scmp.eq.s32.totalorder %s29, 0
      %p101 = por %p99, %p100
      %p102 = scmp.ne.s32.totalorder %s91, %s94
      %p103 = scmp.eq.s32.totalorder %s34, 1
      %p104 = por %p102, %p103
      %p105 = scmp.ne.s32.totalorder %s94, %s95
      %p106 = scmp.eq.s32.totalorder %s34, 0
      %p107 = por %p105, %p106
      %p108 = scmp.ne.s32.totalorder %s94, %s95
      %p109 = scmp.eq.s32.totalorder %s35, 1
      %p110 = por %p108, %p109
      %p112 = scmp.ne.s32.totalorder %s95, %s111
      %p113 = scmp.eq.s32.totalorder %s35, 0
      %p114 = por %p112, %p113
      %s115 = ssub.s32 %s29, %s36
      %p116 = scmp.eq.s32.totalorder %s115, 0
      %s118 = sadd.s32 %s117, 1
      %s119 = scalar_select %p116, %s117, %s118
      %p122 = pneg %p116
      %p123 = scmp.eq.s32.totalorder %s29, 1
      %p124 = por %p122, %p123
      %p125 = scmp.ne.s32.totalorder %s117, %s120
      %p126 = scmp.eq.s32.totalorder %s29, 0
      %p127 = por %p125, %p126
      %p128 = scmp.ne.s32.totalorder %s117, %s120
      %p129 = scmp.eq.s32.totalorder %s34, 1
      %p130 = por %p128, %p129
      %p131 = scmp.ne.s32.totalorder %s120, %s121
      %p132 = scmp.eq.s32.totalorder %s34, 0
      %p133 = por %p131, %p132
      %p134 = scmp.ne.s32.totalorder %s120, %s121
      %p135 = scmp.eq.s32.totalorder %s35, 1
      %p136 = por %p134, %p135
      %p138 = scmp.ne.s32.totalorder %s121, %s137
      %p139 = scmp.eq.s32.totalorder %s35, 0
      %p140 = por %p138, %p139
      %s142 = sadd.s32 %s141, 1
      %p145 = scmp.eq.s32.totalorder %s29, 1
      %p146 = scmp.ne.s32.totalorder %s141, %s143
      %p147 = scmp.eq.s32.totalorder %s29, 0
      %p148 = por %p146, %p147
      %p149 = scmp.ne.s32.totalorder %s141, %s143
      %p150 = scmp.eq.s32.totalorder %s34, 1
      %p151 = por %p149, %p150
      %p152 = scmp.ne.s32.totalorder %s143, %s144
      %p153 = scmp.eq.s32.totalorder %s34, 0
      %p154 = por %p152, %p153
      %p155 = scmp.ne.s32.totalorder %s143, %s144
      %p156 = scmp.eq.s32.totalorder %s35, 1
      %p157 = por %p155, %p156
      %p159 = scmp.ne.s32.totalorder %s144, %s158
      %p160 = scmp.eq.s32.totalorder %s35, 0
      %p161 = por %p159, %p160
      %s163 = sadd.s32 %s162, 1
      %p166 = scmp.eq.s32.totalorder %s29, 1
      %p167 = scmp.ne.s32.totalorder %s162, %s164
      %p168 = scmp.eq.s32.totalorder %s29, 0
      %p169 = por %p167, %p168
      %p170 = scmp.ne.s32.totalorder %s162, %s164
      %p171 = scmp.eq.s32.totalorder %s34, 1
      %p172 = por %p170, %p171
      %p173 = scmp.ne.s32.totalorder %s164, %s165
      %p174 = scmp.eq.s32.totalorder %s34, 0
      %p175 = por %p173, %p174
      %p176 = scmp.ne.s32.totalorder %s164, %s165
      %p177 = scmp.eq.s32.totalorder %s35, 1
      %p178 = por %p176, %p177
      %p180 = scmp.ne.s32.totalorder %s165, %s179
      %p181 = scmp.eq.s32.totalorder %s35, 0
      %p182 = por %p180, %p181
      %s184 = sadd.s32 %s183, 1
      %p187 = scmp.eq.s32.totalorder %s29, 1
      %p188 = scmp.ne.s32.totalorder %s183, %s185
      %p189 = scmp.eq.s32.totalorder %s29, 0
      %p190 = por %p188, %p189
      %p191 = scmp.ne.s32.totalorder %s183, %s185
      %p192 = scmp.eq.s32.totalorder %s34, 1
      %p193 = por %p191, %p192
      %p194 = scmp.ne.s32.totalorder %s185, %s186
      %p195 = scmp.eq.s32.totalorder %s34, 0
      %p196 = por %p194, %p195
      %p197 = scmp.ne.s32.totalorder %s185, %s186
      %p198 = scmp.eq.s32.totalorder %s35, 1
      %p199 = por %p197, %p198
      %p201 = scmp.ne.s32.totalorder %s186, %s200
      %p202 = scmp.eq.s32.totalorder %s35, 0
      %p203 = por %p201, %p202
      %s205 = sadd.s32 %s204, 1
      %p208 = scmp.eq.s32.totalorder %s29, 1
      %p209 = scmp.ne.s32.totalorder %s204, %s206
      %p210 = scmp.eq.s32.totalorder %s29, 0
      %p211 = por %p209, %p210
      %p212 = scmp.ne.s32.totalorder %s204, %s206
      %p213 = scmp.eq.s32.totalorder %s34, 1
      %p214 = por %p212, %p213
      %p215 = scmp.ne.s32.totalorder %s206, %s207
      %p216 = scmp.eq.s32.totalorder %s34, 0
      %p217 = por %p215, %p216
      %p218 = scmp.ne.s32.totalorder %s206, %s207
      %p219 = scmp.eq.s32.totalorder %s35, 1
      %p220 = por %p218, %p219
      %p222 = scmp.ne.s32.totalorder %s207, %s221
      %p223 = scmp.eq.s32.totalorder %s35, 0
      %p224 = por %p222, %p223
      %s226 = sadd.s32 %s225, 1
      %p229 = scmp.eq.s32.totalorder %s29, 1
      %p230 = scmp.ne.s32.totalorder %s225, %s227
      %p231 = scmp.eq.s32.totalorder %s29, 0
      %p232 = por %p230, %p231
      %p233 = scmp.ne.s32.totalorder %s225, %s227
      %p234 = scmp.eq.s32.totalorder %s34, 1
      %p235 = por %p233, %p234
      %p236 = scmp.ne.s32.totalorder %s227, %s228
      %p237 = scmp.eq.s32.totalorder %s34, 0
      %p238 = por %p236, %p237
      %p239 = scmp.ne.s32.totalorder %s227, %s228
      %p240 = scmp.eq.s32.totalorder %s35, 1
      %p241 = por %p239, %p240
      %p243 = scmp.ne.s32.totalorder %s228, %s242
      %p244 = scmp.eq.s32.totalorder %s35, 0
      %p245 = por %p243, %p244
      %s247 = sadd.s32 %s246, 1
      %p250 = scmp.eq.s32.totalorder %s29, 1
      %p251 = scmp.ne.s32.totalorder %s246, %s248
      %p252 = scmp.eq.s32.totalorder %s29, 0
      %p253 = por %p251, %p252
      %p254 = scmp.ne.s32.totalorder %s246, %s248
      %p255 = scmp.eq.s32.totalorder %s34, 1
      %p256 = por %p254, %p255
      %p257 = scmp.ne.s32.totalorder %s248, %s249
      %p258 = scmp.eq.s32.totalorder %s34, 0
      %p259 = por %p257, %p258
      %p260 = scmp.ne.s32.totalorder %s248, %s249
      %p261 = scmp.eq.s32.totalorder %s35, 1
      %p262 = por %p260, %p261
      %p264 = scmp.ne.s32.totalorder %s249, %s263
      %p265 = scmp.eq.s32.totalorder %s35, 0
      %p266 = por %p264, %p265
      %s268 = sadd.s32 %s267, 1
      %p271 = scmp.eq.s32.totalorder %s29, 1
      %p272 = scmp.ne.s32.totalorder %s267, %s269
      %p273 = scmp.eq.s32.totalorder %s29, 0
      %p274 = por %p272, %p273
      %p275 = scmp.ne.s32.totalorder %s267, %s269
      %p276 = scmp.eq.s32.totalorder %s34, 1
      %p277 = por %p275, %p276
      %p278 = scmp.ne.s32.totalorder %s269, %s270
      %p279 = scmp.eq.s32.totalorder %s34, 0
      %p280 = por %p278, %p279
      %p281 = scmp.ne.s32.totalorder %s269, %s270
      %p282 = scmp.eq.s32.totalorder %s35, 1
      %p283 = por %p281, %p282
      %p285 = scmp.ne.s32.totalorder %s270, %s284
      %p286 = scmp.eq.s32.totalorder %s35, 0
      %p287 = por %p285, %p286
      %s289 = sadd.s32 %s288, 1
      %p292 = scmp.eq.s32.totalorder %s29, 1
      %p293 = scmp.ne.s32.totalorder %s288, %s290
      %p294 = scmp.eq.s32.totalorder %s29, 0
      %p295 = por %p293, %p294
      %p296 = scmp.ne.s32.totalorder %s288, %s290
      %p297 = scmp.eq.s32.totalorder %s34, 1
      %p298 = por %p296, %p297
      %p299 = scmp.ne.s32.totalorder %s290, %s291
      %p300 = scmp.eq.s32.totalorder %s34, 0
      %p301 = por %p299, %p300
      %p302 = scmp.ne.s32.totalorder %s290, %s291
      %p303 = scmp.eq.s32.totalorder %s35, 1
      %p304 = por %p302, %p303
      %p306 = scmp.ne.s32.totalorder %s291, %s305
      %p307 = scmp.eq.s32.totalorder %s35, 0
      %p308 = por %p306, %p307
      %s310 = sadd.s32 %s309, 1
      %p313 = scmp.eq.s32.totalorder %s29, 1
      %p314 = scmp.ne.s32.totalorder %s309, %s311
      %p315 = scmp.eq.s32.totalorder %s29, 0
      %p316 = por %p314, %p315
      %p317 = scmp.ne.s32.totalorder %s309, %s311
      %p318 = scmp.eq.s32.totalorder %s34, 1
      %p319 = por %p317, %p318
      %p320 = scmp.ne.s32.totalorder %s311, %s312
      %p321 = scmp.eq.s32.totalorder %s34, 0
      %p322 = por %p320, %p321
      %p323 = scmp.ne.s32.totalorder %s311, %s312
      %p324 = scmp.eq.s32.totalorder %s35, 1
      %p325 = por %p323, %p324
      %p327 = scmp.ne.s32.totalorder %s312, %s326
      %p328 = scmp.eq.s32.totalorder %s35, 0
      %p329 = por %p327, %p328
      %s331 = sadd.s32 %s330, 1
      %p334 = scmp.eq.s32.totalorder %s29, 1
      %p335 = scmp.ne.s32.totalorder %s330, %s332
      %p336 = scmp.eq.s32.totalorder %s29, 0
      %p337 = por %p335, %p336
      %p338 = scmp.ne.s32.totalorder %s330, %s332
      %p339 = scmp.eq.s32.totalorder %s34, 1
      %p340 = por %p338, %p339
      %p341 = scmp.ne.s32.totalorder %s332, %s333
      %p342 = scmp.eq.s32.totalorder %s34, 0
      %p343 = por %p341, %p342
      %p344 = scmp.ne.s32.totalorder %s332, %s333
      %p345 = scmp.eq.s32.totalorder %s35, 1
      %p346 = por %p344, %p345
      %p348 = scmp.ne.s32.totalorder %s333, %s347
      %p349 = scmp.eq.s32.totalorder %s35, 0
      %p350 = por %p348, %p349
      %s351 = ssub.s32 %s29, %s36
      %p352 = scmp.eq.s32.totalorder %s351, 0
      %s354 = sadd.s32 %s353, 1
      %s355 = scalar_select %p352, %s353, %s354
      %p358 = pneg %p352
      %p359 = scmp.eq.s32.totalorder %s29, 1
      %p360 = por %p358, %p359
      %p361 = scmp.ne.s32.totalorder %s353, %s356
      %p362 = scmp.eq.s32.totalorder %s29, 0
      %p363 = por %p361, %p362
      %p364 = scmp.ne.s32.totalorder %s353, %s356
      %p365 = scmp.eq.s32.totalorder %s34, 1
      %p366 = por %p364, %p365
      %p367 = scmp.ne.s32.totalorder %s356, %s357
      %p368 = scmp.eq.s32.totalorder %s34, 0
      %p369 = por %p367, %p368
      %p370 = scmp.ne.s32.totalorder %s356, %s357
      %p371 = scmp.eq.s32.totalorder %s35, 1
      %p372 = por %p370, %p371
      %p374 = scmp.ne.s32.totalorder %s357, %s373
      %p375 = scmp.eq.s32.totalorder %s35, 0
      %p376 = por %p374, %p375
      %p377 = scmp.le.s32.totalorder 1, %s29
      %p378 = scmp.lt.s32.totalorder %s29, 3
      %p379 = pnand %p377, %p378
      %p380 = pneg %p379
      // Predicated region
      $region9: #{tpu_custom_call.1} parent=5 // pred_check
        _
      $region10: #{tpu_custom_call.1} parent=5 // pred_check_branch
        %382 = sbr.rel (%p379) target = $region12
      $region11: #{tpu_custom_call.1} parent=5 // pred_region
        %s383 = ssub.s32 %s29, 1
        // Predicated region
        $region13: #{tpu_custom_call.1} parent=11 // pred_check
          %p384 = pneg %p154
        $region14: #{tpu_custom_call.1} parent=11 // pred_check_branch
          %386 = sbr.rel (%p384) target = $region16
        $region15: #{tpu_custom_call.1} parent=11 // pred_region
          %s388 = ssub.s32 64, 64
          %389 = vsyncadd [#allocation4], %s388
          %s391 = sshll.u32 %s4, 4
          %s392 = int_to_ptr.vmem [resolvable:$true] %s391
          %394 = dma.vmem_to_smem %s392, 64, [#allocation2], [#allocation4]
        $region16: #{tpu_custom_call.1} parent=11 // pred_fallthru
          _
        // Predicated region
        $region17: #{tpu_custom_call.1} parent=11 // pred_check
          %p395 = pneg %p175
        $region18: #{tpu_custom_call.1} parent=11 // pred_check_branch
          %397 = sbr.rel (%p395) target = $region20
        $region19: #{tpu_custom_call.1} parent=11 // pred_region
          %s399 = ssub.s32 16, 16
          %400 = vsyncadd [#allocation6], %s399
          %s402 = sshll.u32 %s5, 4
          %s403 = int_to_ptr.vmem [resolvable:$true] %s402
          %405 = dma.vmem_to_smem %s403, 16, [#allocation5], [#allocation6]
        $region20: #{tpu_custom_call.1} parent=11 // pred_fallthru
          _
        // Predicated region
        $region21: #{tpu_custom_call.1} parent=11 // pred_check
          %p406 = pneg %p196
        $region22: #{tpu_custom_call.1} parent=11 // pred_check_branch
          %408 = sbr.rel (%p406) target = $region24
        $region23: #{tpu_custom_call.1} parent=11 // pred_region
          %s410 = ssub.s32 64, 64
          %411 = vsyncadd [#allocation6], %s410
          %s413 = sshll.u32 %s6, 4
          %s414 = int_to_ptr.vmem [resolvable:$true] %s413
          %416 = dma.vmem_to_smem %s414, 64, [#allocation7], [#allocation6]
        $region24: #{tpu_custom_call.1} parent=11 // pred_fallthru
          _
        // Predicated region
        $region25: #{tpu_custom_call.1} parent=11 // pred_check
          %p417 = pneg %p217
        $region26: #{tpu_custom_call.1} parent=11 // pred_check_branch
          %419 = sbr.rel (%p417) target = $region28
        $region27: #{tpu_custom_call.1} parent=11 // pred_region
          %s421 = ssub.s32 16, 16
          %422 = vsyncadd [#allocation9], %s421
          %s424 = sshll.u32 %s7, 4
          %s425 = int_to_ptr.vmem [resolvable:$true] %s424
          %427 = dma.vmem_to_smem %s425, 16, [#allocation8], [#allocation9]
        $region28: #{tpu_custom_call.1} parent=11 // pred_fallthru
          _
        // Predicated region
        $region29: #{tpu_custom_call.1} parent=11 // pred_check
          %p428 = pneg %p238
        $region30: #{tpu_custom_call.1} parent=11 // pred_check_branch
          %430 = sbr.rel (%p428) target = $region32
        $region31: #{tpu_custom_call.1} parent=11 // pred_region
          %s432 = ssub.s32 64, 64
          %433 = vsyncadd [#allocation9], %s432
          %s435 = sshll.u32 %s8, 4
          %s436 = int_to_ptr.vmem [resolvable:$true] %s435
          %438 = dma.vmem_to_smem %s436, 64, [#allocation10], [#allocation9]
        $region32: #{tpu_custom_call.1} parent=11 // pred_fallthru
          _
        // Predicated region
        $region33: #{tpu_custom_call.1} parent=11 // pred_check
          %p439 = pneg %p259
        $region34: #{tpu_custom_call.1} parent=11 // pred_check_branch
          %441 = sbr.rel (%p439) target = $region36
        $region35: #{tpu_custom_call.1} parent=11 // pred_region
          %s443 = ssub.s32 16, 16
          %444 = vsyncadd [#allocation12], %s443
          %s446 = sshll.u32 %s9, 4
          %s447 = int_to_ptr.vmem [resolvable:$true] %s446
          %449 = dma.vmem_to_smem %s447, 16, [#allocation11], [#allocation12]
        $region36: #{tpu_custom_call.1} parent=11 // pred_fallthru
          _
        // Predicated region
        $region37: #{tpu_custom_call.1} parent=11 // pred_check
          %p450 = pneg %p280
        $region38: #{tpu_custom_call.1} parent=11 // pred_check_branch
          %452 = sbr.rel (%p450) target = $region40
        $region39: #{tpu_custom_call.1} parent=11 // pred_region
          %s454 = ssub.s32 64, 64
          %455 = vsyncadd [#allocation12], %s454
          %s457 = sshll.u32 %s10, 4
          %s458 = int_to_ptr.vmem [resolvable:$true] %s457
          %460 = dma.vmem_to_smem %s458, 64, [#allocation13], [#allocation12]
        $region40: #{tpu_custom_call.1} parent=11 // pred_fallthru
          _
        // Predicated region
        $region41: #{tpu_custom_call.1} parent=11 // pred_check
          %p461 = pneg %p301
        $region42: #{tpu_custom_call.1} parent=11 // pred_check_branch
          %463 = sbr.rel (%p461) target = $region44
        $region43: #{tpu_custom_call.1} parent=11 // pred_region
          %s465 = ssub.s32 16, 16
          %466 = vsyncadd [#allocation15], %s465
          %s468 = sshll.u32 %s11, 4
          %s469 = int_to_ptr.vmem [resolvable:$true] %s468
          %471 = dma.vmem_to_smem %s469, 16, [#allocation14], [#allocation15]
        $region44: #{tpu_custom_call.1} parent=11 // pred_fallthru
          _
        // Predicated region
        $region45: #{tpu_custom_call.1} parent=11 // pred_check
          %p472 = pneg %p322
        $region46: #{tpu_custom_call.1} parent=11 // pred_check_branch
          %474 = sbr.rel (%p472) target = $region48
        $region47: #{tpu_custom_call.1} parent=11 // pred_region
          %s476 = ssub.s32 64, 64
          %477 = vsyncadd [#allocation15], %s476
          %s479 = sshll.u32 %s12, 4
          %s480 = int_to_ptr.vmem [resolvable:$true] %s479
          %482 = dma.vmem_to_smem %s480, 64, [#allocation16], [#allocation15]
        $region48: #{tpu_custom_call.1} parent=11 // pred_fallthru
          _
        // Predicated region
        $region49: #{tpu_custom_call.1} parent=11 // pred_check
          %p483 = pneg %p343
        $region50: #{tpu_custom_call.1} parent=11 // pred_check_branch
          %485 = sbr.rel (%p483) target = $region52
        $region51: #{tpu_custom_call.1} parent=11 // pred_region
          %s487 = ssub.s32 16, 16
          %488 = vsyncadd [#allocation18], %s487
          %s490 = sshll.u32 %s13, 4
          %s491 = int_to_ptr.vmem [resolvable:$true] %s490
          %493 = dma.vmem_to_smem %s491, 16, [#allocation17], [#allocation18]
        $region52: #{tpu_custom_call.1} parent=11 // pred_fallthru
          _
      $region12: #{tpu_custom_call.1} parent=5 // pred_fallthru
        _
      %p494 = scmp.lt.s32.totalorder %s29, 2
      // Predicated region
      $region53: #{tpu_custom_call.1} parent=5 // pred_check
        %p495 = pneg %p494
      $region54: #{tpu_custom_call.1} parent=5 // pred_check_branch
        %497 = sbr.rel (%p495) target = $region56
      $region55: #{tpu_custom_call.1} parent=5 // pred_region
        // Predicated region
        $region57: #{tpu_custom_call.1} parent=55 // pred_check
          %p498 = pneg %p49
        $region58: #{tpu_custom_call.1} parent=55 // pred_check_branch
          %500 = sbr.rel (%p498) target = $region60
        $region59: #{tpu_custom_call.1} parent=55 // pred_region
          %p501 = scmp.lt.s32.totalorder %s29, 1
          %s502 = scalar_select %p501, %s29, 1
          %s503 = smul.addr %s502, 8
          %s504 = smul.addr %s503, 8
          %s505 = scalar_lea.vmem %s0, %s504
        $region60: #{tpu_custom_call.1} parent=55 // pred_fallthru
          _
        // Predicated region
        $region61: #{tpu_custom_call.1} parent=55 // pred_check
          %p506 = pneg %p75
        $region62: #{tpu_custom_call.1} parent=55 // pred_check_branch
          %508 = sbr.rel (%p506) target = $region64
        $region63: #{tpu_custom_call.1} parent=55 // pred_region
          %p509 = scmp.lt.s32.totalorder %s29, 1
          %s510 = scalar_select %p509, %s29, 1
          %s511 = smul.addr %s510, 8
          %s512 = smul.addr %s511, 8
          %s513 = scalar_lea.vmem %s1, %s512
        $region64: #{tpu_custom_call.1} parent=55 // pred_fallthru
          _
        // Predicated region
        $region65: #{tpu_custom_call.1} parent=55 // pred_check
          %p514 = pneg %p101
        $region66: #{tpu_custom_call.1} parent=55 // pred_check_branch
          %516 = sbr.rel (%p514) target = $region68
        $region67: #{tpu_custom_call.1} parent=55 // pred_region
          %p517 = scmp.lt.s32.totalorder %s29, 1
          %s518 = scalar_select %p517, %s29, 1
          %s519 = smul.addr %s518, 8
          %s520 = smul.addr %s519, 8
          %s521 = scalar_lea.vmem %s2, %s520
        $region68: #{tpu_custom_call.1} parent=55 // pred_fallthru
          _
        // Predicated region
        $region69: #{tpu_custom_call.1} parent=55 // pred_check
          %p522 = pneg %p127
        $region70: #{tpu_custom_call.1} parent=55 // pred_check_branch
          %524 = sbr.rel (%p522) target = $region72
        $region71: #{tpu_custom_call.1} parent=55 // pred_region
          %p525 = scmp.lt.s32.totalorder %s29, 1
          %s526 = scalar_select %p525, %s29, 1
          %s527 = smul.addr %s526, 8
          %s528 = smul.addr %s527, 8
          %s529 = scalar_lea.vmem %s3, %s528
        $region72: #{tpu_custom_call.1} parent=55 // pred_fallthru
          _
      $region56: #{tpu_custom_call.1} parent=5 // pred_fallthru
        _
      %p530 = scmp.le.s32.totalorder 1, %s29
      %p531 = scmp.lt.s32.totalorder %s29, 3
      %p532 = pnand %p530, %p531
      %p533 = pneg %p532
      // Predicated region
      $region73: #{tpu_custom_call.1} parent=5 // pred_check
        _
      $region74: #{tpu_custom_call.1} parent=5 // pred_check_branch
        %535 = sbr.rel (%p532) target = $region76
      $region75: #{tpu_custom_call.1} parent=5 // pred_region
        %s536 = ssub.s32 %s29, 1
        // Predicated region
        $region77: #{tpu_custom_call.1} parent=75 // pred_check
          %p537 = pneg %p154
        $region78: #{tpu_custom_call.1} parent=75 // pred_check_branch
          %539 = sbr.rel (%p537) target = $region80
        $region79: #{tpu_custom_call.1} parent=75 // pred_region
          %540 = dma.done [#allocation4], 64
        $region80: #{tpu_custom_call.1} parent=75 // pred_fallthru
          _
        // Predicated region
        $region81: #{tpu_custom_call.1} parent=75 // pred_check
          %p541 = pneg %p175
        $region82: #{tpu_custom_call.1} parent=75 // pred_check_branch
          %543 = sbr.rel (%p541) target = $region84
        $region83: #{tpu_custom_call.1} parent=75 // pred_region
          %544 = dma.done [#allocation6], 16
        $region84: #{tpu_custom_call.1} parent=75 // pred_fallthru
          _
        // Predicated region
        $region85: #{tpu_custom_call.1} parent=75 // pred_check
          %p545 = pneg %p196
        $region86: #{tpu_custom_call.1} parent=75 // pred_check_branch
          %547 = sbr.rel (%p545) target = $region88
        $region87: #{tpu_custom_call.1} parent=75 // pred_region
          %548 = dma.done [#allocation6], 64
        $region88: #{tpu_custom_call.1} parent=75 // pred_fallthru
          _
        // Predicated region
        $region89: #{tpu_custom_call.1} parent=75 // pred_check
          %p549 = pneg %p217
        $region90: #{tpu_custom_call.1} parent=75 // pred_check_branch
          %551 = sbr.rel (%p549) target = $region92
        $region91: #{tpu_custom_call.1} parent=75 // pred_region
          %552 = dma.done [#allocation9], 16
        $region92: #{tpu_custom_call.1} parent=75 // pred_fallthru
          _
        // Predicated region
        $region93: #{tpu_custom_call.1} parent=75 // pred_check
          %p553 = pneg %p238
        $region94: #{tpu_custom_call.1} parent=75 // pred_check_branch
          %555 = sbr.rel (%p553) target = $region96
        $region95: #{tpu_custom_call.1} parent=75 // pred_region
          %556 = dma.done [#allocation9], 64
        $region96: #{tpu_custom_call.1} parent=75 // pred_fallthru
          _
        // Predicated region
        $region97: #{tpu_custom_call.1} parent=75 // pred_check
          %p557 = pneg %p259
        $region98: #{tpu_custom_call.1} parent=75 // pred_check_branch
          %559 = sbr.rel (%p557) target = $region100
        $region99: #{tpu_custom_call.1} parent=75 // pred_region
          %560 = dma.done [#allocation12], 16
        $region100: #{tpu_custom_call.1} parent=75 // pred_fallthru
          _
        // Predicated region
        $region101: #{tpu_custom_call.1} parent=75 // pred_check
          %p561 = pneg %p280
        $region102: #{tpu_custom_call.1} parent=75 // pred_check_branch
          %563 = sbr.rel (%p561) target = $region104
        $region103: #{tpu_custom_call.1} parent=75 // pred_region
          %564 = dma.done [#allocation12], 64
        $region104: #{tpu_custom_call.1} parent=75 // pred_fallthru
          _
        // Predicated region
        $region105: #{tpu_custom_call.1} parent=75 // pred_check
          %p565 = pneg %p301
        $region106: #{tpu_custom_call.1} parent=75 // pred_check_branch
          %567 = sbr.rel (%p565) target = $region108
        $region107: #{tpu_custom_call.1} parent=75 // pred_region
          %568 = dma.done [#allocation15], 16
        $region108: #{tpu_custom_call.1} parent=75 // pred_fallthru
          _
        // Predicated region
        $region109: #{tpu_custom_call.1} parent=75 // pred_check
          %p569 = pneg %p322
        $region110: #{tpu_custom_call.1} parent=75 // pred_check_branch
          %571 = sbr.rel (%p569) target = $region112
        $region111: #{tpu_custom_call.1} parent=75 // pred_region
          %572 = dma.done [#allocation15], 64
        $region112: #{tpu_custom_call.1} parent=75 // pred_fallthru
          _
        // Predicated region
        $region113: #{tpu_custom_call.1} parent=75 // pred_check
          %p573 = pneg %p343
        $region114: #{tpu_custom_call.1} parent=75 // pred_check_branch
          %575 = sbr.rel (%p573) target = $region116
        $region115: #{tpu_custom_call.1} parent=75 // pred_region
          %576 = dma.done [#allocation18], 16
        $region116: #{tpu_custom_call.1} parent=75 // pred_fallthru
          _
        %577 = sfence
        %p578 = scmp.lt.s32.totalorder %s34, 1
        %s579 = scalar_select %p578, %s34, 1
        %s580 = smul.addr %s579, 8
        %s581 = smul.addr %s580, 8
        %s582 = scalar_lea.vmem %s0, %s581
        %p583 = pneg %p55
        %p584 = pneg %p52
        %p585 = scmp.lt.s32.totalorder %s34, 1
        %s586 = scalar_select %p585, %s34, 1
        %s587 = smul.addr %s586, 8
        %s588 = smul.addr %s587, 8
        %s589 = scalar_lea.vmem %s1, %s588
        %p590 = pneg %p81
        %p591 = pneg %p78
        %p592 = scmp.lt.s32.totalorder %s34, 1
        %s593 = scalar_select %p592, %s34, 1
        %s594 = smul.addr %s593, 8
        %s595 = smul.addr %s594, 8
        %s596 = scalar_lea.vmem %s2, %s595
        %p597 = pneg %p107
        %p598 = pneg %p104
        %p599 = scmp.lt.s32.totalorder %s34, 1
        %s600 = scalar_select %p599, %s34, 1
        %s601 = smul.addr %s600, 8
        %s602 = smul.addr %s601, 8
        %s603 = scalar_lea.vmem %s3, %s602
        %p604 = pneg %p133
        %p605 = pneg %p130
        %p606 = pneg %p154
        %p607 = pneg %p151
        %p608 = pneg %p175
        %p609 = pneg %p172
        %p610 = pneg %p196
        %p611 = pneg %p193
        %p612 = pneg %p217
        %p613 = pneg %p214
        %p614 = pneg %p238
        %p615 = pneg %p235
        %p616 = pneg %p259
        %p617 = pneg %p256
        %p618 = pneg %p280
        %p619 = pneg %p277
        %p620 = pneg %p301
        %p621 = pneg %p298
        %p622 = pneg %p322
        %p623 = pneg %p319
        %p624 = pneg %p343
        %p625 = pneg %p340
        %p626 = pneg %p369
        %p627 = pneg %p366
        %s628 = sand.u32 %s356, 1
        %s629 = scalar_lea.sflag [#allocation3], %s628
        %s630 = sand.u32 %s356, 1
        %s631 = smul.addr %s630, 64
        %s632 = scalar_lea.vmem [#allocation19], %s631
        %p633 = scmp.lt.s32.totalorder %s34, 1
        %s634 = scalar_select %p633, %s34, 1
        %s635 = smul.addr %s634, 8
        %s636 = smul.addr %s635, 8
        %s637 = scalar_lea.vmem %s0, %s636
        %p638 = scmp.lt.s32.totalorder %s34, 1
        %s639 = scalar_select %p638, %s34, 1
        %s640 = smul.addr %s639, 8
        %s641 = smul.addr %s640, 8
        %s642 = scalar_lea.vmem %s1, %s641
        %p643 = scmp.lt.s32.totalorder %s34, 1
        %s644 = scalar_select %p643, %s34, 1
        %s645 = smul.addr %s644, 8
        %s646 = smul.addr %s645, 8
        %s647 = scalar_lea.vmem %s2, %s646
        %p648 = scmp.lt.s32.totalorder %s34, 1
        %s649 = scalar_select %p648, %s34, 1
        %s650 = smul.addr %s649, 8
        %s651 = smul.addr %s650, 8
        %s652 = scalar_lea.vmem %s3, %s651
        %v653 = vld [vmem:[%s637] sm:$0xff]
        %v654 = vld [vmem:[%s637 + $0x8] sm:$0x1]
        %v655 = vld [vmem:[%s637 + $0x10] sm:$0xff]
        %v656 = vld [vmem:[%s637 + $0x18] sm:$0x1]
        %v657 = vld [vmem:[%s637 + $0x20] sm:$0xff]
        %v658 = vld [vmem:[%s637 + $0x28] sm:$0x1]
        %v659 = vld [vmem:[%s637 + $0x30] sm:$0xff]
        %v660 = vld [vmem:[%s637 + $0x38] sm:$0x1]
        %v661 = vld [vmem:[%s642] sm:$0xff]
        %v662 = vld [vmem:[%s642 + $0x8] sm:$0x1]
        %v663 = vld [vmem:[%s642 + $0x10] sm:$0xff]
        %v664 = vld [vmem:[%s642 + $0x18] sm:$0x1]
        %v665 = vld [vmem:[%s642 + $0x20] sm:$0xff]
        %v666 = vld [vmem:[%s642 + $0x28] sm:$0x1]
        %v667 = vld [vmem:[%s642 + $0x30] sm:$0xff]
        %v668 = vld [vmem:[%s642 + $0x38] sm:$0x1]
        %v669 = vld [vmem:[%s647] sm:$0xff]
        %v670 = vld [vmem:[%s647 + $0x10] sm:$0xff]
        %v671 = vld [vmem:[%s647 + $0x20] sm:$0xff]
        %v672 = vld [vmem:[%s647 + $0x30] sm:$0xff]
        %v673 = vld [vmem:[%s652] sm:$0xff]
        %v674 = vld [vmem:[%s652 + $0x10] sm:$0xff]
        %v675 = vld [vmem:[%s652 + $0x20] sm:$0xff]
        %v676 = vld [vmem:[%s652 + $0x30] sm:$0xff]
        %s677 = sld [smem:[#allocation5]]
        %v678 = vstv %s677
        %s679 = sld [smem:[#allocation2]]
        %v680 = vstv %s679
        %v681 = vmul.f32 %v680, %v653
        %v682 = vadd.f32 %v678, %v681
        %s683 = sld [smem:[#allocation2 + $0x1]]
        %v684 = vstv %s683
        %v685 = vmul.f32 %v684, %v661
        %v686 = vadd.f32 %v682, %v685
        %s687 = sld [smem:[#allocation2 + $0x2]]
        %v688 = vstv %s687
        %v689 = vmul.f32 %v688, %v653
        %691 = vrot.lane.b32.xlu0 %v689, 127
        %v692 = vpop.permute.xlu0 %691
        %v694 = vadd.f32 %v686, %v692
        %s695 = sld [smem:[#allocation2 + $0x3]]
        %v696 = vstv %s695
        %v697 = vmul.f32 %v696, %v669
        %v698 = vadd.f32 %v694, %v697
        %s699 = sld [smem:[#allocation2 + $0x4]]
        %v700 = vstv %s699
        %v701 = vmul.f32 %v700, %v673
        %v702 = vadd.f32 %v698, %v701
        %s703 = sld [smem:[#allocation2 + $0x5]]
        %v704 = vstv %s703
        %v705 = vmul.f32 %v704, %v669
        %707 = vrot.lane.b32.xlu0 %v705, 127
        %v708 = vpop.permute.xlu0 %707
        %v710 = vadd.f32 %v702, %v708
        %s711 = sld [smem:[#allocation2 + $0x6]]
        %v712 = vstv %s711
        %v713 = vmul.f32 %v712, %v653
        %v714 = vmul.f32 %v712, %v654
        %vm717 = vcmask 1046528
        %v718 = vrot.slane %v713, 1
        %v719 = vrot.slane %v714, 1
        %v720 = vsel %vm717, %v718, %v719
        %v722 = vadd.f32 %v710, %v720
        %s723 = sld [smem:[#allocation2 + $0x7]]
        %v724 = vstv %s723
        %v725 = vmul.f32 %v724, %v661
        %v726 = vmul.f32 %v724, %v662
        %v729 = vrot.slane %v725, 1
        %v730 = vrot.slane %v726, 1
        %v731 = vsel %vm717, %v729, %v730
        %v733 = vadd.f32 %v722, %v731
        %s734 = sld [smem:[#allocation2 + $0x8]]
        %v735 = vstv %s734
        %v736 = vmul.f32 %v735, %v653
        %v737 = vmul.f32 %v735, %v654
        %v740 = vrot.slane %v736, 1
        %v741 = vrot.slane %v737, 1
        %v742 = vsel %vm717, %v740, %v741
        %743 = vrot.lane.b32.xlu0 %v742, 127
        %v744 = vpop.permute.xlu0 %743
        %v746 = vadd.f32 %v733, %v744
        %s747 = sld [smem:[#allocation5 + $0x1]]
        %v748 = vstv %s747
        %s749 = sld [smem:[#allocation2 + $0x80]]
        %v750 = vstv %s749
        %v751 = vmul.f32 %v750, %v655
        %v752 = vadd.f32 %v748, %v751
        %s753 = sld [smem:[#allocation2 + $0x81]]
        %v754 = vstv %s753
        %v755 = vmul.f32 %v754, %v663
        %v756 = vadd.f32 %v752, %v755
        %s757 = sld [smem:[#allocation2 + $0x82]]
        %v758 = vstv %s757
        %v759 = vmul.f32 %v758, %v655
        %761 = vrot.lane.b32.xlu0 %v759, 127
        %v762 = vpop.permute.xlu0 %761
        %v764 = vadd.f32 %v756, %v762
        %s765 = sld [smem:[#allocation2 + $0x83]]
        %v766 = vstv %s765
        %v767 = vmul.f32 %v766, %v670
        %v768 = vadd.f32 %v764, %v767
        %s769 = sld [smem:[#allocation2 + $0x84]]
        %v770 = vstv %s769
        %v771 = vmul.f32 %v770, %v674
        %v772 = vadd.f32 %v768, %v771
        %s773 = sld [smem:[#allocation2 + $0x85]]
        %v774 = vstv %s773
        %v775 = vmul.f32 %v774, %v670
        %777 = vrot.lane.b32.xlu0 %v775, 127
        %v778 = vpop.permute.xlu0 %777
        %v780 = vadd.f32 %v772, %v778
        %s781 = sld [smem:[#allocation2 + $0x86]]
        %v782 = vstv %s781
        %v783 = vmul.f32 %v782, %v655
        %v784 = vmul.f32 %v782, %v656
        %v787 = vrot.slane %v783, 1
        %v788 = vrot.slane %v784, 1
        %v789 = vsel %vm717, %v787, %v788
        %v791 = vadd.f32 %v780, %v789
        %s792 = sld [smem:[#allocation2 + $0x87]]
        %v793 = vstv %s792
        %v794 = vmul.f32 %v793, %v663
        %v795 = vmul.f32 %v793, %v664
        %v798 = vrot.slane %v794, 1
        %v799 = vrot.slane %v795, 1
        %v800 = vsel %vm717, %v798, %v799
        %v802 = vadd.f32 %v791, %v800
        %s803 = sld [smem:[#allocation2 + $0x88]]
        %v804 = vstv %s803
        %v805 = vmul.f32 %v804, %v655
        %v806 = vmul.f32 %v804, %v656
        %v809 = vrot.slane %v805, 1
        %v810 = vrot.slane %v806, 1
        %v811 = vsel %vm717, %v809, %v810
        %812 = vrot.lane.b32.xlu0 %v811, 127
        %v813 = vpop.permute.xlu0 %812
        %v815 = vadd.f32 %v802, %v813
        %s816 = sld [smem:[#allocation5 + $0x2]]
        %v817 = vstv %s816
        %s818 = sld [smem:[#allocation2 + $0x100]]
        %v819 = vstv %s818
        %v820 = vmul.f32 %v819, %v657
        %v821 = vadd.f32 %v817, %v820
        %s822 = sld [smem:[#allocation2 + $0x101]]
        %v823 = vstv %s822
        %v824 = vmul.f32 %v823, %v665
        %v825 = vadd.f32 %v821, %v824
        %s826 = sld [smem:[#allocation2 + $0x102]]
        %v827 = vstv %s826
        %v828 = vmul.f32 %v827, %v657
        %830 = vrot.lane.b32.xlu0 %v828, 127
        %v831 = vpop.permute.xlu0 %830
        %v833 = vadd.f32 %v825, %v831
        %s834 = sld [smem:[#allocation2 + $0x103]]
        %v835 = vstv %s834
        %v836 = vmul.f32 %v835, %v671
        %v837 = vadd.f32 %v833, %v836
        %s838 = sld [smem:[#allocation2 + $0x104]]
        %v839 = vstv %s838
        %v840 = vmul.f32 %v839, %v675
        %v841 = vadd.f32 %v837, %v840
        %s842 = sld [smem:[#allocation2 + $0x105]]
        %v843 = vstv %s842
        %v844 = vmul.f32 %v843, %v671
        %846 = vrot.lane.b32.xlu0 %v844, 127
        %v847 = vpop.permute.xlu0 %846
        %v849 = vadd.f32 %v841, %v847
        %s850 = sld [smem:[#allocation2 + $0x106]]
        %v851 = vstv %s850
        %v852 = vmul.f32 %v851, %v657
        %v853 = vmul.f32 %v851, %v658
        %v856 = vrot.slane %v852, 1
        %v857 = vrot.slane %v853, 1
        %v858 = vsel %vm717, %v856, %v857
        %v860 = vadd.f32 %v849, %v858
        %s861 = sld [smem:[#allocation2 + $0x107]]
        %v862 = vstv %s861
        %v863 = vmul.f32 %v862, %v665
        %v864 = vmul.f32 %v862, %v666
        %v867 = vrot.slane %v863, 1
        %v868 = vrot.slane %v864, 1
        %v869 = vsel %vm717, %v867, %v868
        %v871 = vadd.f32 %v860, %v869
        %s872 = sld [smem:[#allocation2 + $0x108]]
        %v873 = vstv %s872
        %v874 = vmul.f32 %v873, %v657
        %v875 = vmul.f32 %v873, %v658
        %v878 = vrot.slane %v874, 1
        %v879 = vrot.slane %v875, 1
        %v880 = vsel %vm717, %v878, %v879
        %881 = vrot.lane.b32.xlu0 %v880, 127
        %v882 = vpop.permute.xlu0 %881
        %v884 = vadd.f32 %v871, %v882
        %s885 = sld [smem:[#allocation5 + $0x3]]
        %v886 = vstv %s885
        %s887 = sld [smem:[#allocation2 + $0x180]]
        %v888 = vstv %s887
        %v889 = vmul.f32 %v888, %v659
        %v890 = vadd.f32 %v886, %v889
        %s891 = sld [smem:[#allocation2 + $0x181]]
        %v892 = vstv %s891
        %v893 = vmul.f32 %v892, %v667
        %v894 = vadd.f32 %v890, %v893
        %s895 = sld [smem:[#allocation2 + $0x182]]
        %v896 = vstv %s895
        %v897 = vmul.f32 %v896, %v659
        %899 = vrot.lane.b32.xlu0 %v897, 127
        %v900 = vpop.permute.xlu0 %899
        %v902 = vadd.f32 %v894, %v900
        %s903 = sld [smem:[#allocation2 + $0x183]]
        %v904 = vstv %s903
        %v905 = vmul.f32 %v904, %v672
        %v906 = vadd.f32 %v902, %v905
        %s907 = sld [smem:[#allocation2 + $0x184]]
        %v908 = vstv %s907
        %v909 = vmul.f32 %v908, %v676
        %v910 = vadd.f32 %v906, %v909
        %s911 = sld [smem:[#allocation2 + $0x185]]
        %v912 = vstv %s911
        %v913 = vmul.f32 %v912, %v672
        %915 = vrot.lane.b32.xlu0 %v913, 127
        %v916 = vpop.permute.xlu0 %915
        %v918 = vadd.f32 %v910, %v916
        %s919 = sld [smem:[#allocation2 + $0x186]]
        %v920 = vstv %s919
        %v921 = vmul.f32 %v920, %v659
        %v922 = vmul.f32 %v920, %v660
        %v925 = vrot.slane %v921, 1
        %v926 = vrot.slane %v922, 1
        %v927 = vsel %vm717, %v925, %v926
        %v929 = vadd.f32 %v918, %v927
        %s930 = sld [smem:[#allocation2 + $0x187]]
        %v931 = vstv %s930
        %v932 = vmul.f32 %v931, %v667
        %v933 = vmul.f32 %v931, %v668
        %v936 = vrot.slane %v932, 1
        %v937 = vrot.slane %v933, 1
        %v938 = vsel %vm717, %v936, %v937
        %v940 = vadd.f32 %v929, %v938
        %s941 = sld [smem:[#allocation2 + $0x188]]
        %v942 = vstv %s941
        %v943 = vmul.f32 %v942, %v659
        %v944 = vmul.f32 %v942, %v660
        %v947 = vrot.slane %v943, 1
        %v948 = vrot.slane %v944, 1
        %v949 = vsel %vm717, %v947, %v948
        %950 = vrot.lane.b32.xlu0 %v949, 127
        %v951 = vpop.permute.xlu0 %950
        %v953 = vadd.f32 %v940, %v951
        %s954 = sld [smem:[#allocation8]]
        %v955 = vstv %s954
        %s956 = sld [smem:[#allocation7]]
        %v957 = vstv %s956
        %v958 = vmul.f32 %v957, %v746
        %v959 = vadd.f32 %v955, %v958
        %s960 = sld [smem:[#allocation7 + $0x1]]
        %v961 = vstv %s960
        %v962 = vmul.f32 %v961, %v815
        %v963 = vadd.f32 %v959, %v962
        %s964 = sld [smem:[#allocation7 + $0x2]]
        %v965 = vstv %s964
        %v966 = vmul.f32 %v965, %v884
        %v967 = vadd.f32 %v963, %v966
        %s968 = sld [smem:[#allocation7 + $0x3]]
        %v969 = vstv %s968
        %v970 = vmul.f32 %v969, %v953
        %v971 = vadd.f32 %v967, %v970
        %v972 = vmax.f32 %v971, 0.0
        %s973 = sld [smem:[#allocation8 + $0x1]]
        %v974 = vstv %s973
        %s975 = sld [smem:[#allocation7 + $0x80]]
        %v976 = vstv %s975
        %v977 = vmul.f32 %v976, %v746
        %v978 = vadd.f32 %v974, %v977
        %s979 = sld [smem:[#allocation7 + $0x81]]
        %v980 = vstv %s979
        %v981 = vmul.f32 %v980, %v815
        %v982 = vadd.f32 %v978, %v981
        %s983 = sld [smem:[#allocation7 + $0x82]]
        %v984 = vstv %s983
        %v985 = vmul.f32 %v984, %v884
        %v986 = vadd.f32 %v982, %v985
        %s987 = sld [smem:[#allocation7 + $0x83]]
        %v988 = vstv %s987
        %v989 = vmul.f32 %v988, %v953
        %v990 = vadd.f32 %v986, %v989
        %v991 = vmax.f32 %v990, 0.0
        %s992 = sld [smem:[#allocation8 + $0x2]]
        %v993 = vstv %s992
        %s994 = sld [smem:[#allocation7 + $0x100]]
        %v995 = vstv %s994
        %v996 = vmul.f32 %v995, %v746
        %v997 = vadd.f32 %v993, %v996
        %s998 = sld [smem:[#allocation7 + $0x101]]
        %v999 = vstv %s998
        %v1000 = vmul.f32 %v999, %v815
        %v1001 = vadd.f32 %v997, %v1000
        %s1002 = sld [smem:[#allocation7 + $0x102]]
        %v1003 = vstv %s1002
        %v1004 = vmul.f32 %v1003, %v884
        %v1005 = vadd.f32 %v1001, %v1004
        %s1006 = sld [smem:[#allocation7 + $0x103]]
        %v1007 = vstv %s1006
        %v1008 = vmul.f32 %v1007, %v953
        %v1009 = vadd.f32 %v1005, %v1008
        %v1010 = vmax.f32 %v1009, 0.0
        %s1011 = sld [smem:[#allocation8 + $0x3]]
        %v1012 = vstv %s1011
        %s1013 = sld [smem:[#allocation7 + $0x180]]
        %v1014 = vstv %s1013
        %v1015 = vmul.f32 %v1014, %v746
        %v1016 = vadd.f32 %v1012, %v1015
        %s1017 = sld [smem:[#allocation7 + $0x181]]
        %v1018 = vstv %s1017
        %v1019 = vmul.f32 %v1018, %v815
        %v1020 = vadd.f32 %v1016, %v1019
        %s1021 = sld [smem:[#allocation7 + $0x182]]
        %v1022 = vstv %s1021
        %v1023 = vmul.f32 %v1022, %v884
        %v1024 = vadd.f32 %v1020, %v1023
        %s1025 = sld [smem:[#allocation7 + $0x183]]
        %v1026 = vstv %s1025
        %v1027 = vmul.f32 %v1026, %v953
        %v1028 = vadd.f32 %v1024, %v1027
        %v1029 = vmax.f32 %v1028, 0.0
        %v1030 = vlaneseq
        %v1031 = vshrl.u32 %v1030, 7
        %v1032 = vadd.s32 %v1031, 8
        %v1033 = vlaneseq
        %v1034 = vand.u32 %v1033, 127
        %vm1035 = vcmp.gt.s32.totalorder %v1031, 0
        %vm1036 = vcmp.gt.s32.totalorder %v1032, 0
        %vm1037 = vcmp.gt.s32.totalorder %v1034, 0
        %vm1038 = vmand %vm1035, %vm1037
        %vm1039 = vmand %vm1036, %vm1037
        %v1040 = vsel %vm1038, 1, 0
        %v1041 = vsel %vm1039, 1, 0
        %v1042 = vcvt.s32.f32 %v1040
        %v1043 = vcvt.s32.f32 %v1041
        %vm1044 = vcmp.lt.s32.totalorder %v1034, 8
        %vm1045 = vmand %vm1035, %vm1044
        %vm1046 = vmand %vm1036, %vm1044
        %v1047 = vsel %vm1045, 1, 0
        %v1048 = vsel %vm1046, 1, 0
        %v1049 = vcvt.s32.f32 %v1047
        %v1050 = vcvt.s32.f32 %v1048
        %vm1051 = vcmp.lt.s32.totalorder %v1031, 8
        %vm1052 = vmand %vm1051, %vm1037
        %v1053 = vsel %vm1052, 1, 0
        %v1054 = vcvt.s32.f32 %v1053
        %vm1055 = vmand %vm1051, %vm1044
        %v1056 = vsel %vm1055, 1, 0
        %v1057 = vcvt.s32.f32 %v1056
        %s1058 = sld [smem:[#allocation11]]
        %v1059 = vstv %s1058
        %s1060 = sld [smem:[#allocation10]]
        %v1061 = vstv %s1060
        %v1062 = vmul.f32 %v1061, %v653
        %v1063 = vmul.f32 %v1061, %v654
        %v1064 = vadd.f32 %v1059, %v1062
        %v1065 = vadd.f32 %v1059, %v1063
        %s1066 = sld [smem:[#allocation10 + $0x1]]
        %v1067 = vstv %s1066
        %v1068 = vmul.f32 %v1067, %v655
        %v1069 = vmul.f32 %v1067, %v656
        %v1070 = vadd.f32 %v1064, %v1068
        %v1071 = vadd.f32 %v1065, %v1069
        %s1072 = sld [smem:[#allocation10 + $0x2]]
        %v1073 = vstv %s1072
        %v1074 = vmul.f32 %v1073, %v657
        %v1075 = vmul.f32 %v1073, %v658
        %v1076 = vadd.f32 %v1070, %v1074
        %v1077 = vadd.f32 %v1071, %v1075
        %s1078 = sld [smem:[#allocation10 + $0x3]]
        %v1079 = vstv %s1078
        %v1080 = vmul.f32 %v1079, %v659
        %v1081 = vmul.f32 %v1079, %v660
        %v1082 = vadd.f32 %v1076, %v1080
        %v1083 = vadd.f32 %v1077, %v1081
        %v1084 = vmax.f32 %v1082, 0.0
        %v1085 = vmax.f32 %v1083, 0.0
        %v1086 = vmul.f32 %v1084, %v1042
        %v1087 = vmul.f32 %v1085, %v1043
        %s1088 = sld [smem:[#allocation11 + $0x1]]
        %v1089 = vstv %s1088
        %s1090 = sld [smem:[#allocation10 + $0x80]]
        %v1091 = vstv %s1090
        %v1092 = vmul.f32 %v1091, %v653
        %v1093 = vmul.f32 %v1091, %v654
        %v1094 = vadd.f32 %v1089, %v1092
        %v1095 = vadd.f32 %v1089, %v1093
        %s1096 = sld [smem:[#allocation10 + $0x81]]
        %v1097 = vstv %s1096
        %v1098 = vmul.f32 %v1097, %v655
        %v1099 = vmul.f32 %v1097, %v656
        %v1100 = vadd.f32 %v1094, %v1098
        %v1101 = vadd.f32 %v1095, %v1099
        %s1102 = sld [smem:[#allocation10 + $0x82]]
        %v1103 = vstv %s1102
        %v1104 = vmul.f32 %v1103, %v657
        %v1105 = vmul.f32 %v1103, %v658
        %v1106 = vadd.f32 %v1100, %v1104
        %v1107 = vadd.f32 %v1101, %v1105
        %s1108 = sld [smem:[#allocation10 + $0x83]]
        %v1109 = vstv %s1108
        %v1110 = vmul.f32 %v1109, %v659
        %v1111 = vmul.f32 %v1109, %v660
        %v1112 = vadd.f32 %v1106, %v1110
        %v1113 = vadd.f32 %v1107, %v1111
        %v1114 = vmax.f32 %v1112, 0.0
        %v1115 = vmax.f32 %v1113, 0.0
        %v1116 = vmul.f32 %v1114, %v1042
        %v1117 = vmul.f32 %v1115, %v1043
        %s1118 = sld [smem:[#allocation11 + $0x2]]
        %v1119 = vstv %s1118
        %s1120 = sld [smem:[#allocation10 + $0x100]]
        %v1121 = vstv %s1120
        %v1122 = vmul.f32 %v1121, %v653
        %v1123 = vmul.f32 %v1121, %v654
        %v1124 = vadd.f32 %v1119, %v1122
        %v1125 = vadd.f32 %v1119, %v1123
        %s1126 = sld [smem:[#allocation10 + $0x101]]
        %v1127 = vstv %s1126
        %v1128 = vmul.f32 %v1127, %v655
        %v1129 = vmul.f32 %v1127, %v656
        %v1130 = vadd.f32 %v1124, %v1128
        %v1131 = vadd.f32 %v1125, %v1129
        %s1132 = sld [smem:[#allocation10 + $0x102]]
        %v1133 = vstv %s1132
        %v1134 = vmul.f32 %v1133, %v657
        %v1135 = vmul.f32 %v1133, %v658
        %v1136 = vadd.f32 %v1130, %v1134
        %v1137 = vadd.f32 %v1131, %v1135
        %s1138 = sld [smem:[#allocation10 + $0x103]]
        %v1139 = vstv %s1138
        %v1140 = vmul.f32 %v1139, %v659
        %v1141 = vmul.f32 %v1139, %v660
        %v1142 = vadd.f32 %v1136, %v1140
        %v1143 = vadd.f32 %v1137, %v1141
        %v1144 = vmax.f32 %v1142, 0.0
        %v1145 = vmax.f32 %v1143, 0.0
        %v1146 = vmul.f32 %v1144, %v1042
        %v1147 = vmul.f32 %v1145, %v1043
        %s1148 = sld [smem:[#allocation11 + $0x3]]
        %v1149 = vstv %s1148
        %s1150 = sld [smem:[#allocation10 + $0x180]]
        %v1151 = vstv %s1150
        %v1152 = vmul.f32 %v1151, %v653
        %v1153 = vmul.f32 %v1151, %v654
        %v1154 = vadd.f32 %v1149, %v1152
        %v1155 = vadd.f32 %v1149, %v1153
        %s1156 = sld [smem:[#allocation10 + $0x181]]
        %v1157 = vstv %s1156
        %v1158 = vmul.f32 %v1157, %v655
        %v1159 = vmul.f32 %v1157, %v656
        %v1160 = vadd.f32 %v1154, %v1158
        %v1161 = vadd.f32 %v1155, %v1159
        %s1162 = sld [smem:[#allocation10 + $0x182]]
        %v1163 = vstv %s1162
        %v1164 = vmul.f32 %v1163, %v657
        %v1165 = vmul.f32 %v1163, %v658
        %v1166 = vadd.f32 %v1160, %v1164
        %v1167 = vadd.f32 %v1161, %v1165
        %s1168 = sld [smem:[#allocation10 + $0x183]]
        %v1169 = vstv %s1168
        %v1170 = vmul.f32 %v1169, %v659
        %v1171 = vmul.f32 %v1169, %v660
        %v1172 = vadd.f32 %v1166, %v1170
        %v1173 = vadd.f32 %v1167, %v1171
        %v1174 = vmax.f32 %v1172, 0.0
        %v1175 = vmax.f32 %v1173, 0.0
        %v1176 = vmul.f32 %v1174, %v1042
        %v1177 = vmul.f32 %v1175, %v1043
        %v1178 = vmul.f32 %v1061, %v661
        %v1179 = vmul.f32 %v1061, %v662
        %v1180 = vadd.f32 %v1059, %v1178
        %v1181 = vadd.f32 %v1059, %v1179
        %v1182 = vmul.f32 %v1067, %v663
        %v1183 = vmul.f32 %v1067, %v664
        %v1184 = vadd.f32 %v1180, %v1182
        %v1185 = vadd.f32 %v1181, %v1183
        %v1186 = vmul.f32 %v1073, %v665
        %v1187 = vmul.f32 %v1073, %v666
        %v1188 = vadd.f32 %v1184, %v1186
        %v1189 = vadd.f32 %v1185, %v1187
        %v1190 = vmul.f32 %v1079, %v667
        %v1191 = vmul.f32 %v1079, %v668
        %v1192 = vadd.f32 %v1188, %v1190
        %v1193 = vadd.f32 %v1189, %v1191
        %v1194 = vmax.f32 %v1192, 0.0
        %v1195 = vmax.f32 %v1193, 0.0
        %v1196 = vmul.f32 %v1194, %v1049
        %v1197 = vmul.f32 %v1195, %v1050
        %v1198 = vmul.f32 %v1091, %v661
        %v1199 = vmul.f32 %v1091, %v662
        %v1200 = vadd.f32 %v1089, %v1198
        %v1201 = vadd.f32 %v1089, %v1199
        %v1202 = vmul.f32 %v1097, %v663
        %v1203 = vmul.f32 %v1097, %v664
        %v1204 = vadd.f32 %v1200, %v1202
        %v1205 = vadd.f32 %v1201, %v1203
        %v1206 = vmul.f32 %v1103, %v665
        %v1207 = vmul.f32 %v1103, %v666
        %v1208 = vadd.f32 %v1204, %v1206
        %v1209 = vadd.f32 %v1205, %v1207
        %v1210 = vmul.f32 %v1109, %v667
        %v1211 = vmul.f32 %v1109, %v668
        %v1212 = vadd.f32 %v1208, %v1210
        %v1213 = vadd.f32 %v1209, %v1211
        %v1214 = vmax.f32 %v1212, 0.0
        %v1215 = vmax.f32 %v1213, 0.0
        %v1216 = vmul.f32 %v1214, %v1049
        %v1217 = vmul.f32 %v1215, %v1050
        %v1218 = vmul.f32 %v1121, %v661
        %v1219 = vmul.f32 %v1121, %v662
        %v1220 = vadd.f32 %v1119, %v1218
        %v1221 = vadd.f32 %v1119, %v1219
        %v1222 = vmul.f32 %v1127, %v663
        %v1223 = vmul.f32 %v1127, %v664
        %v1224 = vadd.f32 %v1220, %v1222
        %v1225 = vadd.f32 %v1221, %v1223
        %v1226 = vmul.f32 %v1133, %v665
        %v1227 = vmul.f32 %v1133, %v666
        %v1228 = vadd.f32 %v1224, %v1226
        %v1229 = vadd.f32 %v1225, %v1227
        %v1230 = vmul.f32 %v1139, %v667
        %v1231 = vmul.f32 %v1139, %v668
        %v1232 = vadd.f32 %v1228, %v1230
        %v1233 = vadd.f32 %v1229, %v1231
        %v1234 = vmax.f32 %v1232, 0.0
        %v1235 = vmax.f32 %v1233, 0.0
        %v1236 = vmul.f32 %v1234, %v1049
        %v1237 = vmul.f32 %v1235, %v1050
        %v1238 = vmul.f32 %v1151, %v661
        %v1239 = vmul.f32 %v1151, %v662
        %v1240 = vadd.f32 %v1149, %v1238
        %v1241 = vadd.f32 %v1149, %v1239
        %v1242 = vmul.f32 %v1157, %v663
        %v1243 = vmul.f32 %v1157, %v664
        %v1244 = vadd.f32 %v1240, %v1242
        %v1245 = vadd.f32 %v1241, %v1243
        %v1246 = vmul.f32 %v1163, %v665
        %v1247 = vmul.f32 %v1163, %v666
        %v1248 = vadd.f32 %v1244, %v1246
        %v1249 = vadd.f32 %v1245, %v1247
        %v1250 = vmul.f32 %v1169, %v667
        %v1251 = vmul.f32 %v1169, %v668
        %v1252 = vadd.f32 %v1248, %v1250
        %v1253 = vadd.f32 %v1249, %v1251
        %v1254 = vmax.f32 %v1252, 0.0
        %v1255 = vmax.f32 %v1253, 0.0
        %v1256 = vmul.f32 %v1254, %v1049
        %v1257 = vmul.f32 %v1255, %v1050
        %v1258 = vmul.f32 %v1061, %v669
        %v1259 = vadd.f32 %v1059, %v1258
        %v1260 = vmul.f32 %v1067, %v670
        %v1261 = vadd.f32 %v1259, %v1260
        %v1262 = vmul.f32 %v1073, %v671
        %v1263 = vadd.f32 %v1261, %v1262
        %v1264 = vmul.f32 %v1079, %v672
        %v1265 = vadd.f32 %v1263, %v1264
        %v1266 = vmax.f32 %v1265, 0.0
        %v1267 = vmul.f32 %v1266, %v1054
        %v1268 = vmul.f32 %v1091, %v669
        %v1269 = vadd.f32 %v1089, %v1268
        %v1270 = vmul.f32 %v1097, %v670
        %v1271 = vadd.f32 %v1269, %v1270
        %v1272 = vmul.f32 %v1103, %v671
        %v1273 = vadd.f32 %v1271, %v1272
        %v1274 = vmul.f32 %v1109, %v672
        %v1275 = vadd.f32 %v1273, %v1274
        %v1276 = vmax.f32 %v1275, 0.0
        %v1277 = vmul.f32 %v1276, %v1054
        %v1278 = vmul.f32 %v1121, %v669
        %v1279 = vadd.f32 %v1119, %v1278
        %v1280 = vmul.f32 %v1127, %v670
        %v1281 = vadd.f32 %v1279, %v1280
        %v1282 = vmul.f32 %v1133, %v671
        %v1283 = vadd.f32 %v1281, %v1282
        %v1284 = vmul.f32 %v1139, %v672
        %v1285 = vadd.f32 %v1283, %v1284
        %v1286 = vmax.f32 %v1285, 0.0
        %v1287 = vmul.f32 %v1286, %v1054
        %v1288 = vmul.f32 %v1151, %v669
        %v1289 = vadd.f32 %v1149, %v1288
        %v1290 = vmul.f32 %v1157, %v670
        %v1291 = vadd.f32 %v1289, %v1290
        %v1292 = vmul.f32 %v1163, %v671
        %v1293 = vadd.f32 %v1291, %v1292
        %v1294 = vmul.f32 %v1169, %v672
        %v1295 = vadd.f32 %v1293, %v1294
        %v1296 = vmax.f32 %v1295, 0.0
        %v1297 = vmul.f32 %v1296, %v1054
        %v1298 = vmul.f32 %v1061, %v673
        %v1299 = vadd.f32 %v1059, %v1298
        %v1300 = vmul.f32 %v1067, %v674
        %v1301 = vadd.f32 %v1299, %v1300
        %v1302 = vmul.f32 %v1073, %v675
        %v1303 = vadd.f32 %v1301, %v1302
        %v1304 = vmul.f32 %v1079, %v676
        %v1305 = vadd.f32 %v1303, %v1304
        %v1306 = vmax.f32 %v1305, 0.0
        %v1307 = vmul.f32 %v1306, %v1057
        %v1308 = vmul.f32 %v1091, %v673
        %v1309 = vadd.f32 %v1089, %v1308
        %v1310 = vmul.f32 %v1097, %v674
        %v1311 = vadd.f32 %v1309, %v1310
        %v1312 = vmul.f32 %v1103, %v675
        %v1313 = vadd.f32 %v1311, %v1312
        %v1314 = vmul.f32 %v1109, %v676
        %v1315 = vadd.f32 %v1313, %v1314
        %v1316 = vmax.f32 %v1315, 0.0
        %v1317 = vmul.f32 %v1316, %v1057
        %v1318 = vmul.f32 %v1121, %v673
        %v1319 = vadd.f32 %v1119, %v1318
        %v1320 = vmul.f32 %v1127, %v674
        %v1321 = vadd.f32 %v1319, %v1320
        %v1322 = vmul.f32 %v1133, %v675
        %v1323 = vadd.f32 %v1321, %v1322
        %v1324 = vmul.f32 %v1139, %v676
        %v1325 = vadd.f32 %v1323, %v1324
        %v1326 = vmax.f32 %v1325, 0.0
        %v1327 = vmul.f32 %v1326, %v1057
        %v1328 = vmul.f32 %v1151, %v673
        %v1329 = vadd.f32 %v1149, %v1328
        %v1330 = vmul.f32 %v1157, %v674
        %v1331 = vadd.f32 %v1329, %v1330
        %v1332 = vmul.f32 %v1163, %v675
        %v1333 = vadd.f32 %v1331, %v1332
        %v1334 = vmul.f32 %v1169, %v676
        %v1335 = vadd.f32 %v1333, %v1334
        %v1336 = vmax.f32 %v1335, 0.0
        %v1337 = vmul.f32 %v1336, %v1057
        %s1338 = sld [smem:[#allocation14]]
        %v1339 = vstv %s1338
        %s1340 = sld [smem:[#allocation13]]
        %v1341 = vstv %s1340
        %v1342 = vmul.f32 %v1341, %v1086
        %v1343 = vadd.f32 %v1339, %v1342
        %s1344 = sld [smem:[#allocation13 + $0x1]]
        %v1345 = vstv %s1344
        %v1346 = vmul.f32 %v1345, %v1196
        %v1347 = vadd.f32 %v1343, %v1346
        %s1348 = sld [smem:[#allocation13 + $0x2]]
        %v1349 = vstv %s1348
        %v1350 = vmul.f32 %v1349, %v1086
        %1352 = vrot.lane.b32.xlu0 %v1350, 127
        %v1353 = vpop.permute.xlu0 %1352
        %v1355 = vadd.f32 %v1347, %v1353
        %s1356 = sld [smem:[#allocation13 + $0x3]]
        %v1357 = vstv %s1356
        %v1358 = vmul.f32 %v1357, %v1267
        %v1359 = vadd.f32 %v1355, %v1358
        %s1360 = sld [smem:[#allocation13 + $0x4]]
        %v1361 = vstv %s1360
        %v1362 = vmul.f32 %v1361, %v1307
        %v1363 = vadd.f32 %v1359, %v1362
        %s1364 = sld [smem:[#allocation13 + $0x5]]
        %v1365 = vstv %s1364
        %v1366 = vmul.f32 %v1365, %v1267
        %1368 = vrot.lane.b32.xlu0 %v1366, 127
        %v1369 = vpop.permute.xlu0 %1368
        %v1371 = vadd.f32 %v1363, %v1369
        %s1372 = sld [smem:[#allocation13 + $0x6]]
        %v1373 = vstv %s1372
        %v1374 = vmul.f32 %v1373, %v1086
        %v1375 = vmul.f32 %v1373, %v1087
        %v1378 = vrot.slane %v1374, 1
        %v1379 = vrot.slane %v1375, 1
        %v1380 = vsel %vm717, %v1378, %v1379
        %v1382 = vadd.f32 %v1371, %v1380
        %s1383 = sld [smem:[#allocation13 + $0x7]]
        %v1384 = vstv %s1383
        %v1385 = vmul.f32 %v1384, %v1196
        %v1386 = vmul.f32 %v1384, %v1197
        %v1389 = vrot.slane %v1385, 1
        %v1390 = vrot.slane %v1386, 1
        %v1391 = vsel %vm717, %v1389, %v1390
        %v1393 = vadd.f32 %v1382, %v1391
        %s1394 = sld [smem:[#allocation13 + $0x8]]
        %v1395 = vstv %s1394
        %v1396 = vmul.f32 %v1395, %v1086
        %v1397 = vmul.f32 %v1395, %v1087
        %v1400 = vrot.slane %v1396, 1
        %v1401 = vrot.slane %v1397, 1
        %v1402 = vsel %vm717, %v1400, %v1401
        %1403 = vrot.lane.b32.xlu0 %v1402, 127
        %v1404 = vpop.permute.xlu0 %1403
        %v1406 = vadd.f32 %v1393, %v1404
        %s1407 = sld [smem:[#allocation14 + $0x1]]
        %v1408 = vstv %s1407
        %s1409 = sld [smem:[#allocation13 + $0x80]]
        %v1410 = vstv %s1409
        %v1411 = vmul.f32 %v1410, %v1116
        %v1412 = vadd.f32 %v1408, %v1411
        %s1413 = sld [smem:[#allocation13 + $0x81]]
        %v1414 = vstv %s1413
        %v1415 = vmul.f32 %v1414, %v1216
        %v1416 = vadd.f32 %v1412, %v1415
        %s1417 = sld [smem:[#allocation13 + $0x82]]
        %v1418 = vstv %s1417
        %v1419 = vmul.f32 %v1418, %v1116
        %1421 = vrot.lane.b32.xlu0 %v1419, 127
        %v1422 = vpop.permute.xlu0 %1421
        %v1424 = vadd.f32 %v1416, %v1422
        %s1425 = sld [smem:[#allocation13 + $0x83]]
        %v1426 = vstv %s1425
        %v1427 = vmul.f32 %v1426, %v1277
        %v1428 = vadd.f32 %v1424, %v1427
        %s1429 = sld [smem:[#allocation13 + $0x84]]
        %v1430 = vstv %s1429
        %v1431 = vmul.f32 %v1430, %v1317
        %v1432 = vadd.f32 %v1428, %v1431
        %s1433 = sld [smem:[#allocation13 + $0x85]]
        %v1434 = vstv %s1433
        %v1435 = vmul.f32 %v1434, %v1277
        %1437 = vrot.lane.b32.xlu0 %v1435, 127
        %v1438 = vpop.permute.xlu0 %1437
        %v1440 = vadd.f32 %v1432, %v1438
        %s1441 = sld [smem:[#allocation13 + $0x86]]
        %v1442 = vstv %s1441
        %v1443 = vmul.f32 %v1442, %v1116
        %v1444 = vmul.f32 %v1442, %v1117
        %v1447 = vrot.slane %v1443, 1
        %v1448 = vrot.slane %v1444, 1
        %v1449 = vsel %vm717, %v1447, %v1448
        %v1451 = vadd.f32 %v1440, %v1449
        %s1452 = sld [smem:[#allocation13 + $0x87]]
        %v1453 = vstv %s1452
        %v1454 = vmul.f32 %v1453, %v1216
        %v1455 = vmul.f32 %v1453, %v1217
        %v1458 = vrot.slane %v1454, 1
        %v1459 = vrot.slane %v1455, 1
        %v1460 = vsel %vm717, %v1458, %v1459
        %v1462 = vadd.f32 %v1451, %v1460
        %s1463 = sld [smem:[#allocation13 + $0x88]]
        %v1464 = vstv %s1463
        %v1465 = vmul.f32 %v1464, %v1116
        %v1466 = vmul.f32 %v1464, %v1117
        %v1469 = vrot.slane %v1465, 1
        %v1470 = vrot.slane %v1466, 1
        %v1471 = vsel %vm717, %v1469, %v1470
        %1472 = vrot.lane.b32.xlu0 %v1471, 127
        %v1473 = vpop.permute.xlu0 %1472
        %v1475 = vadd.f32 %v1462, %v1473
        %s1476 = sld [smem:[#allocation14 + $0x2]]
        %v1477 = vstv %s1476
        %s1478 = sld [smem:[#allocation13 + $0x100]]
        %v1479 = vstv %s1478
        %v1480 = vmul.f32 %v1479, %v1146
        %v1481 = vadd.f32 %v1477, %v1480
        %s1482 = sld [smem:[#allocation13 + $0x101]]
        %v1483 = vstv %s1482
        %v1484 = vmul.f32 %v1483, %v1236
        %v1485 = vadd.f32 %v1481, %v1484
        %s1486 = sld [smem:[#allocation13 + $0x102]]
        %v1487 = vstv %s1486
        %v1488 = vmul.f32 %v1487, %v1146
        %1490 = vrot.lane.b32.xlu0 %v1488, 127
        %v1491 = vpop.permute.xlu0 %1490
        %v1493 = vadd.f32 %v1485, %v1491
        %s1494 = sld [smem:[#allocation13 + $0x103]]
        %v1495 = vstv %s1494
        %v1496 = vmul.f32 %v1495, %v1287
        %v1497 = vadd.f32 %v1493, %v1496
        %s1498 = sld [smem:[#allocation13 + $0x104]]
        %v1499 = vstv %s1498
        %v1500 = vmul.f32 %v1499, %v1327
        %v1501 = vadd.f32 %v1497, %v1500
        %s1502 = sld [smem:[#allocation13 + $0x105]]
        %v1503 = vstv %s1502
        %v1504 = vmul.f32 %v1503, %v1287
        %1506 = vrot.lane.b32.xlu0 %v1504, 127
        %v1507 = vpop.permute.xlu0 %1506
        %v1509 = vadd.f32 %v1501, %v1507
        %s1510 = sld [smem:[#allocation13 + $0x106]]
        %v1511 = vstv %s1510
        %v1512 = vmul.f32 %v1511, %v1146
        %v1513 = vmul.f32 %v1511, %v1147
        %v1516 = vrot.slane %v1512, 1
        %v1517 = vrot.slane %v1513, 1
        %v1518 = vsel %vm717, %v1516, %v1517
        %v1520 = vadd.f32 %v1509, %v1518
        %s1521 = sld [smem:[#allocation13 + $0x107]]
        %v1522 = vstv %s1521
        %v1523 = vmul.f32 %v1522, %v1236
        %v1524 = vmul.f32 %v1522, %v1237
        %v1527 = vrot.slane %v1523, 1
        %v1528 = vrot.slane %v1524, 1
        %v1529 = vsel %vm717, %v1527, %v1528
        %v1531 = vadd.f32 %v1520, %v1529
        %s1532 = sld [smem:[#allocation13 + $0x108]]
        %v1533 = vstv %s1532
        %v1534 = vmul.f32 %v1533, %v1146
        %v1535 = vmul.f32 %v1533, %v1147
        %v1538 = vrot.slane %v1534, 1
        %v1539 = vrot.slane %v1535, 1
        %v1540 = vsel %vm717, %v1538, %v1539
        %1541 = vrot.lane.b32.xlu0 %v1540, 127
        %v1542 = vpop.permute.xlu0 %1541
        %v1544 = vadd.f32 %v1531, %v1542
        %s1545 = sld [smem:[#allocation14 + $0x3]]
        %v1546 = vstv %s1545
        %s1547 = sld [smem:[#allocation13 + $0x180]]
        %v1548 = vstv %s1547
        %v1549 = vmul.f32 %v1548, %v1176
        %v1550 = vadd.f32 %v1546, %v1549
        %s1551 = sld [smem:[#allocation13 + $0x181]]
        %v1552 = vstv %s1551
        %v1553 = vmul.f32 %v1552, %v1256
        %v1554 = vadd.f32 %v1550, %v1553
        %s1555 = sld [smem:[#allocation13 + $0x182]]
        %v1556 = vstv %s1555
        %v1557 = vmul.f32 %v1556, %v1176
        %1559 = vrot.lane.b32.xlu0 %v1557, 127
        %v1560 = vpop.permute.xlu0 %1559
        %v1562 = vadd.f32 %v1554, %v1560
        %s1563 = sld [smem:[#allocation13 + $0x183]]
        %v1564 = vstv %s1563
        %v1565 = vmul.f32 %v1564, %v1297
        %v1566 = vadd.f32 %v1562, %v1565
        %s1567 = sld [smem:[#allocation13 + $0x184]]
        %v1568 = vstv %s1567
        %v1569 = vmul.f32 %v1568, %v1337
        %v1570 = vadd.f32 %v1566, %v1569
        %s1571 = sld [smem:[#allocation13 + $0x185]]
        %v1572 = vstv %s1571
        %v1573 = vmul.f32 %v1572, %v1297
        %1575 = vrot.lane.b32.xlu0 %v1573, 127
        %v1576 = vpop.permute.xlu0 %1575
        %v1578 = vadd.f32 %v1570, %v1576
        %s1579 = sld [smem:[#allocation13 + $0x186]]
        %v1580 = vstv %s1579
        %v1581 = vmul.f32 %v1580, %v1176
        %v1582 = vmul.f32 %v1580, %v1177
        %v1585 = vrot.slane %v1581, 1
        %v1586 = vrot.slane %v1582, 1
        %v1587 = vsel %vm717, %v1585, %v1586
        %v1589 = vadd.f32 %v1578, %v1587
        %s1590 = sld [smem:[#allocation13 + $0x187]]
        %v1591 = vstv %s1590
        %v1592 = vmul.f32 %v1591, %v1256
        %v1593 = vmul.f32 %v1591, %v1257
        %v1596 = vrot.slane %v1592, 1
        %v1597 = vrot.slane %v1593, 1
        %v1598 = vsel %vm717, %v1596, %v1597
        %v1600 = vadd.f32 %v1589, %v1598
        %s1601 = sld [smem:[#allocation13 + $0x188]]
        %v1602 = vstv %s1601
        %v1603 = vmul.f32 %v1602, %v1176
        %v1604 = vmul.f32 %v1602, %v1177
        %v1607 = vrot.slane %v1603, 1
        %v1608 = vrot.slane %v1604, 1
        %v1609 = vsel %vm717, %v1607, %v1608
        %1610 = vrot.lane.b32.xlu0 %v1609, 127
        %v1611 = vpop.permute.xlu0 %1610
        %v1613 = vadd.f32 %v1600, %v1611
        %s1614 = sld [smem:[#allocation17]]
        %v1615 = vstv %s1614
        %s1616 = sld [smem:[#allocation16]]
        %v1617 = vstv %s1616
        %v1618 = vmul.f32 %v1617, %v1406
        %v1619 = vadd.f32 %v1615, %v1618
        %s1620 = sld [smem:[#allocation16 + $0x1]]
        %v1621 = vstv %s1620
        %v1622 = vmul.f32 %v1621, %v1475
        %v1623 = vadd.f32 %v1619, %v1622
        %s1624 = sld [smem:[#allocation16 + $0x2]]
        %v1625 = vstv %s1624
        %v1626 = vmul.f32 %v1625, %v1544
        %v1627 = vadd.f32 %v1623, %v1626
        %s1628 = sld [smem:[#allocation16 + $0x3]]
        %v1629 = vstv %s1628
        %v1630 = vmul.f32 %v1629, %v1613
        %v1631 = vadd.f32 %v1627, %v1630
        %v1632 = vmax.f32 %v1631, 0.0
        %s1633 = sld [smem:[#allocation17 + $0x1]]
        %v1634 = vstv %s1633
        %s1635 = sld [smem:[#allocation16 + $0x80]]
        %v1636 = vstv %s1635
        %v1637 = vmul.f32 %v1636, %v1406
        %v1638 = vadd.f32 %v1634, %v1637
        %s1639 = sld [smem:[#allocation16 + $0x81]]
        %v1640 = vstv %s1639
        %v1641 = vmul.f32 %v1640, %v1475
        %v1642 = vadd.f32 %v1638, %v1641
        %s1643 = sld [smem:[#allocation16 + $0x82]]
        %v1644 = vstv %s1643
        %v1645 = vmul.f32 %v1644, %v1544
        %v1646 = vadd.f32 %v1642, %v1645
        %s1647 = sld [smem:[#allocation16 + $0x83]]
        %v1648 = vstv %s1647
        %v1649 = vmul.f32 %v1648, %v1613
        %v1650 = vadd.f32 %v1646, %v1649
        %v1651 = vmax.f32 %v1650, 0.0
        %s1652 = sld [smem:[#allocation17 + $0x2]]
        %v1653 = vstv %s1652
        %s1654 = sld [smem:[#allocation16 + $0x100]]
        %v1655 = vstv %s1654
        %v1656 = vmul.f32 %v1655, %v1406
        %v1657 = vadd.f32 %v1653, %v1656
        %s1658 = sld [smem:[#allocation16 + $0x101]]
        %v1659 = vstv %s1658
        %v1660 = vmul.f32 %v1659, %v1475
        %v1661 = vadd.f32 %v1657, %v1660
        %s1662 = sld [smem:[#allocation16 + $0x102]]
        %v1663 = vstv %s1662
        %v1664 = vmul.f32 %v1663, %v1544
        %v1665 = vadd.f32 %v1661, %v1664
        %s1666 = sld [smem:[#allocation16 + $0x103]]
        %v1667 = vstv %s1666
        %v1668 = vmul.f32 %v1667, %v1613
        %v1669 = vadd.f32 %v1665, %v1668
        %v1670 = vmax.f32 %v1669, 0.0
        %s1671 = sld [smem:[#allocation17 + $0x3]]
        %v1672 = vstv %s1671
        %s1673 = sld [smem:[#allocation16 + $0x180]]
        %v1674 = vstv %s1673
        %v1675 = vmul.f32 %v1674, %v1406
        %v1676 = vadd.f32 %v1672, %v1675
        %s1677 = sld [smem:[#allocation16 + $0x181]]
        %v1678 = vstv %s1677
        %v1679 = vmul.f32 %v1678, %v1475
        %v1680 = vadd.f32 %v1676, %v1679
        %s1681 = sld [smem:[#allocation16 + $0x182]]
        %v1682 = vstv %s1681
        %v1683 = vmul.f32 %v1682, %v1544
        %v1684 = vadd.f32 %v1680, %v1683
        %s1685 = sld [smem:[#allocation16 + $0x183]]
        %v1686 = vstv %s1685
        %v1687 = vmul.f32 %v1686, %v1613
        %v1688 = vadd.f32 %v1684, %v1687
        %v1689 = vmax.f32 %v1688, 0.0
        %vm1690 = vcmask 64512
        %1691 = vst.msk [vmem:[%s632] sm:$0xff] %vm1690, %v972
        %1692 = vst.msk [vmem:[%s632 + $0x8] sm:$0xff] %vm1690, %v1632
        %1693 = vst.msk [vmem:[%s632 + $0x10] sm:$0xff] %vm1690, %v991
        %1694 = vst.msk [vmem:[%s632 + $0x18] sm:$0xff] %vm1690, %v1651
        %1695 = vst.msk [vmem:[%s632 + $0x20] sm:$0xff] %vm1690, %v1010
        %1696 = vst.msk [vmem:[%s632 + $0x28] sm:$0xff] %vm1690, %v1670
        %1697 = vst.msk [vmem:[%s632 + $0x30] sm:$0xff] %vm1690, %v1029
        %1698 = vst.msk [vmem:[%s632 + $0x38] sm:$0xff] %vm1690, %v1689
        %s1699 = sand.u32 %s356, 1
        %s1700 = scalar_lea.sflag [#allocation3], %s1699
        %s1701 = sand.u32 %s356, 1
        %s1702 = smul.addr %s1701, 64
        %s1703 = scalar_lea.vmem [#allocation19], %s1702
        // Predicated region
        $region117: #{tpu_custom_call.1} parent=75 // pred_check
          %p1704 = pneg %p366
        $region118: #{tpu_custom_call.1} parent=75 // pred_check_branch
          %1706 = sbr.rel (%p1704) target = $region120
        $region119: #{tpu_custom_call.1} parent=75 // pred_region
          %s1708 = ssub.s32 1024, 1024
          %1709 = vsyncadd %s1700, %s1708
          %s1710 = smul.addr %s34, 8
          %s1711 = smul.addr %s1710, 128
          %s1712 = scalar_lea.hbm %s14, %s1711
          %s1713 = sshll.u32 %s1703, 4
          %s1714 = int_to_ptr.vmem [resolvable:$true] %s1713
          %1719 = dma.vmem_to_hbm [thread:$0]  %s1714, 1024, %s1712, %s1700, 128, 128, 8
        $region120: #{tpu_custom_call.1} parent=75 // pred_fallthru
          _
      $region76: #{tpu_custom_call.1} parent=5 // pred_fallthru
        _
      %p1720 = scmp.le.s32.totalorder 2, %s29
      // Predicated region
      $region121: #{tpu_custom_call.1} parent=5 // pred_check
        %p1721 = pneg %p1720
      $region122: #{tpu_custom_call.1} parent=5 // pred_check_branch
        %1723 = sbr.rel (%p1721) target = $region124
      $region123: #{tpu_custom_call.1} parent=5 // pred_region
        %s1724 = ssub.s32 %s29, 2
        // Predicated region
        $region125: #{tpu_custom_call.1} parent=123 // pred_check
          %p1725 = pneg %p372
        $region126: #{tpu_custom_call.1} parent=123 // pred_check_branch
          %1727 = sbr.rel (%p1725) target = $region128
        $region127: #{tpu_custom_call.1} parent=123 // pred_region
          %s1728 = sand.u32 %s357, 1
          %s1729 = scalar_lea.sflag [#allocation3], %s1728
          %s1730 = sand.u32 %s357, 1
          %s1731 = smul.addr %s1730, 64
          %s1732 = scalar_lea.vmem [#allocation19], %s1731
          %1733 = dma.done %s1729, 1024
        $region128: #{tpu_custom_call.1} parent=123 // pred_fallthru
          _
      $region124: #{tpu_custom_call.1} parent=5 // pred_fallthru
        _
    $region6: #{tpu_custom_call.1} parent=1 // loop_footer
      %s33 = sadd.s32 1, %s29
    $region7: #{tpu_custom_call.1} parent=1 // loop_footer_branch
      %28 = sbr.rel target = $region3
    $region8: #{tpu_custom_call.1} parent=1 // loop_exit
      _
    %1734 = vsyncpa [#allocation3], 1
    %s1735 = scalar_lea.sflag [#allocation3], 1
    %1736 = vsyncpa %s1735, 1
    %1737 = vsyncpa [#allocation4], 1
    %s1738 = scalar_lea.sflag [#allocation4], 1
    %1739 = vsyncpa %s1738, 1
    %1740 = vsyncpa [#allocation6], 1
    %1741 = vsyncpa [#allocation9], 1
    %1742 = vsyncpa [#allocation12], 1
    %1743 = vsyncpa [#allocation15], 1
    %1744 = vsyncpa [#allocation18], 1

</llo_original>
